<compile_context>
chip_gen: v6e
topology: v6e:2x2x1
jax: 0.10.0
libtpu: 0.0.40
codegen_flags: <defaults>
</compile_context>

<pallas_src>
import jax
import jax.numpy as jnp
from jax.experimental import pallas as pl
from jax.experimental.pallas import tpu as pltpu

_EPS = 1e-5


def _pick_tile(h, cap, even=False):
    """Largest divisor of h that is <= cap (and even if requested)."""
    for d in range(min(h, cap), 0, -1):
        if h % d == 0 and (not even or d % 2 == 0):
            return d
    return h


# ---------------------------------------------------------------------------
# Conv3x3 (SAME) with optional fused input BN+ReLU, emitting per-tile BN stats.
# ---------------------------------------------------------------------------
def _make_conv_kernel(H, W, Cin, Cout, TH, apply_input_act):
    def kernel(x_ref, w_ref, b_ref, s_ref, t_ref, y_ref, st_ref, pad_ref, patch_ref):
        r = pl.program_id(1)

        # Build the zero-padded image for this batch element once (row-tile 0),
        # fusing the previous layer's BatchNorm+ReLU into the load when needed.
        @pl.when(r == 0)
        def _():
            pad_ref[...] = jnp.zeros_like(pad_ref)
            a = x_ref[...]
            if apply_input_act:
                a = jnp.maximum(a * s_ref[0] + t_ref[0], 0.0)
            pad_ref[1:H + 1, 1:W + 1, :] = a

        # im2col: gather the 9 taps once into (TH, W, 9*Cin) scratch, then issue
        # a single MXU matmul with K = 9*Cin (bf16 operands, f32 accumulation).
        base = pl.multiple_of(r * TH, TH)
        for dy in range(3):
            for dx in range(3):
                j = dy * 3 + dx
                patch_ref[:, :, j * Cin:(j + 1) * Cin] = (
                    pad_ref[pl.ds(base + dy, TH), dx:dx + W, :])

        lhs = patch_ref[...].reshape(TH * W, 9 * Cin).astype(jnp.bfloat16)
        acc = jax.lax.dot_general(
            lhs, w_ref[...], (((1,), (0,)), ((), ())),
            preferred_element_type=jnp.float32)
        acc = acc + b_ref[0]

        y_ref[...] = acc.reshape(TH, W, Cout)
        # Single-pass per-tile BatchNorm partials (reduced by tiny glue outside).
        st_ref[0:1, :] = jnp.sum(acc, axis=0, keepdims=True)
        st_ref[1:2, :] = jnp.sum(acc * acc, axis=0, keepdims=True)

    return kernel


def _conv3x3_stats(x, w, bias, in_scale, in_shift, *, apply_input_act, tile_h=8):
    """Conv2d(k=3, padding=1) in NHWC; optionally applies relu(x*s + t) to the
    input first (fused BN+ReLU of the previous layer).  Returns the raw conv
    output and per-(batch, row-tile) channel (sum, sum_sq) partials."""
    N, H, W, Cin = x.shape
    Cout = w.shape[0]
    assert w.shape == (Cout, Cin, 3, 3)
    TH = _pick_tile(H, tile_h)
    R = H // TH

    # PyTorch OIHW -> (dy, dx, ci) x co, bf16 for the MXU.
    w2 = jnp.transpose(w, (2, 3, 1, 0)).reshape(9 * Cin, Cout).astype(jnp.bfloat16)
    b2 = bias.reshape(1, Cout).astype(jnp.float32)
    if in_scale is None:
        in_scale = jnp.ones((1, Cin), jnp.float32)
        in_shift = jnp.zeros((1, Cin), jnp.float32)

    kernel = _make_conv_kernel(H, W, Cin, Cout, TH, apply_input_act)

    y, st = pl.pallas_call(
        kernel,
        grid=(N, R),
        in_specs=[
            # whole (unpadded) image of this batch element; constant over r so it
            # stays resident across row-tiles and is re-fetched only per batch.
            pl.BlockSpec((None, H, W, Cin), lambda n, r: (n, 0, 0, 0)),
            pl.BlockSpec((9 * Cin, Cout), lambda n, r: (0, 0)),
            pl.BlockSpec((1, Cout), lambda n, r: (0, 0)),
            pl.BlockSpec((1, Cin), lambda n, r: (0, 0)),
            pl.BlockSpec((1, Cin), lambda n, r: (0, 0)),
        ],
        out_specs=[
            pl.BlockSpec((None, TH, W, Cout), lambda n, r: (n, r, 0, 0)),
            pl.BlockSpec((None, None, 2, Cout), lambda n, r: (n, r, 0, 0)),
        ],
        out_shape=[
            jax.ShapeDtypeStruct((N, H, W, Cout), jnp.float32),
            jax.ShapeDtypeStruct((N, R, 2, Cout), jnp.float32),
        ],
        scratch_shapes=[
            pltpu.VMEM((H + 2, W + 2, Cin), jnp.float32),   # padded image (per batch)
            pltpu.VMEM((TH, W, 9 * Cin), jnp.float32),      # im2col patch (per tile)
        ],
        # r must stay sequential per batch (pad scratch is built at r == 0);
        # the batch axis is parallel (megacore sharding on v7x).
        compiler_params=pltpu.CompilerParams(
            dimension_semantics=("parallel", "arbitrary")),
    )(x, w2, b2, in_scale, in_shift)
    return y, st


def _bn_affine(stats, gamma, beta, count, eps=_EPS):
    """Reduce per-tile (sum, sum_sq) partials to fused BN scale/shift (tiny glue)."""
    s = jnp.sum(stats[:, :, 0, :], axis=(0, 1))
    ss = jnp.sum(stats[:, :, 1, :], axis=(0, 1))
    mean = s / count
    var = jnp.maximum(ss / count - mean * mean, 0.0)       # biased variance
    scale = gamma * jax.lax.rsqrt(var + eps)
    shift = beta - mean * scale
    C = gamma.shape[0]
    return (scale.reshape(1, C).astype(jnp.float32),
            shift.reshape(1, C).astype(jnp.float32))


# ---------------------------------------------------------------------------
# Fused BN2 + ReLU2 + MaxPool2d(2,2): emits both x (conv_block output) and p.
# ---------------------------------------------------------------------------
def _bn_relu_pool(y, scale, shift, *, tile_h=8):
    N, H, W, C = y.shape
    assert H % 2 == 0 and W % 2 == 0
    TH = _pick_tile(H, tile_h, even=True)
    R = H // TH
    HH, WW = TH // 2, W // 2

    def kernel(y_ref, s_ref, t_ref, x_ref, p_ref, m_ref):
        a = jnp.maximum(y_ref[...] * s_ref[0] + t_ref[0], 0.0)     # (TH, W, C)
        x_ref[...] = a
        # 2x2 max-pool: row pairs via a leading-dim reshape, column pairs via a
        # stride-2 sublane read from a small VMEM scratch.
        a2 = a.reshape(HH, 2, W, C)
        m_ref[...] = jnp.maximum(a2[:, 0], a2[:, 1])               # (HH, W, C)
        p_ref[...] = jnp.maximum(m_ref[:, pl.ds(0, WW, stride=2), :],
                                 m_ref[:, pl.ds(1, WW, stride=2), :])

    return pl.pallas_call(
        kernel,
        grid=(N, R),
        in_specs=[
            pl.BlockSpec((None, TH, W, C), lambda n, r: (n, r, 0, 0)),
            pl.BlockSpec((1, C), lambda n, r: (0, 0)),
            pl.BlockSpec((1, C), lambda n, r: (0, 0)),
        ],
        out_specs=[
            pl.BlockSpec((None, TH, W, C), lambda n, r: (n, r, 0, 0)),
            pl.BlockSpec((None, HH, WW, C), lambda n, r: (n, r, 0, 0)),
        ],
        out_shape=[
            jax.ShapeDtypeStruct((N, H, W, C), jnp.float32),
            jax.ShapeDtypeStruct((N, H // 2, W // 2, C), jnp.float32),
        ],
        scratch_shapes=[pltpu.VMEM((HH, W, C), jnp.float32)],
        compiler_params=pltpu.CompilerParams(
            dimension_semantics=("parallel", "parallel")),
    )(y, scale, shift)


# ---------------------------------------------------------------------------
# Public forward (PyTorch encoder_block.forward): NCHW in, (x, p) NCHW out.
# ---------------------------------------------------------------------------
def encoder_block_forward(params, inputs_nchw):
    x = jnp.transpose(inputs_nchw, (0, 2, 3, 1)).astype(jnp.float32)   # NHWC
    N, H, W, _ = x.shape

    # conv1 (no fused input activation) + streaming BN1 stats
    y1, st1 = _conv3x3_stats(x, params["conv1_w"], params["conv1_b"],
                             None, None, apply_input_act=False)
    s1, t1 = _bn_affine(st1, params["bn1_g"], params["bn1_b"], N * H * W)

    # conv2 with BN1+ReLU1 fused into its input stage + streaming BN2 stats
    y2, st2 = _conv3x3_stats(y1, params["conv2_w"], params["conv2_b"],
                             s1, t1, apply_input_act=True)
    s2, t2 = _bn_affine(st2, params["bn2_g"], params["bn2_b"], N * H * W)

    # BN2 + ReLU2 + MaxPool(2,2), both outputs from one kernel
    x_out, p_out = _bn_relu_pool(y2, s2, t2)

    return (jnp.transpose(x_out, (0, 3, 1, 2)),
            jnp.transpose(p_out, (0, 3, 1, 2)))


def init_params(key, in_c, out_c):
    ks = jax.random.split(key, 4)

    def u(k, shape, fan_in):
        bound = 1.0 / float(fan_in) ** 0.5
        return jax.random.uniform(k, shape, jnp.float32, -bound, bound)

    return {
        "conv1_w": u(ks[0], (out_c, in_c, 3, 3), in_c * 9),
        "conv1_b": u(ks[1], (out_c,), in_c * 9),
        "bn1_g": jnp.ones((out_c,), jnp.float32),
        "bn1_b": jnp.zeros((out_c,), jnp.float32),
        "conv2_w": u(ks[2], (out_c, out_c, 3, 3), out_c * 9),
        "conv2_b": u(ks[3], (out_c,), out_c * 9),
        "bn2_g": jnp.ones((out_c,), jnp.float32),
        "bn2_b": jnp.zeros((out_c,), jnp.float32),
    }


def _reference_forward(params, x_nchw, eps=_EPS):
    """Pure-XLA f32 reference (training-mode BN) for validation."""
    def conv(x, w, b):
        y = jax.lax.conv_general_dilated(
            x, w, (1, 1), ((1, 1), (1, 1)),
            dimension_numbers=("NCHW", "OIHW", "NCHW"),
            precision=jax.lax.Precision.HIGHEST)
        return y + b.reshape(1, -1, 1, 1)

    def bn_relu(y, g, bt):
        mean = jnp.mean(y, axis=(0, 2, 3), keepdims=True)
        var = jnp.mean(jnp.square(y - mean), axis=(0, 2, 3), keepdims=True)
        yh = (y - mean) * jax.lax.rsqrt(var + eps)
        return jnp.maximum(yh * g.reshape(1, -1, 1, 1) + bt.reshape(1, -1, 1, 1), 0.0)

    a = bn_relu(conv(x_nchw, params["conv1_w"], params["conv1_b"]),
                params["bn1_g"], params["bn1_b"])
    a = bn_relu(conv(a, params["conv2_w"], params["conv2_b"]),
                params["bn2_g"], params["bn2_b"])
    N, C, H, W = a.shape
    p = a.reshape(N, C, H // 2, 2, W // 2, 2).max(axis=(3, 5))
    return a, p


if __name__ == "__main__":
    key = jax.random.PRNGKey(0)
    kp, ki = jax.random.split(key)

    N, in_c, out_c, H, W = 2, 4, 8, 16, 16
    params = init_params(kp, in_c, out_c)
    x = jax.random.normal(ki, (N, in_c, H, W), jnp.float32)   # NCHW

    fwd = jax.jit(encoder_block_forward)
    x_out, p_out = jax.block_until_ready(fwd(params, x))

    assert x_out.shape == (N, out_c, H, W), x_out.shape
    assert p_out.shape == (N, out_c, H // 2, W // 2), p_out.shape
    assert x_out.dtype == jnp.float32 and p_out.dtype == jnp.float32

    # Validate against an f32 XLA reference (relaxed tol: kernels use bf16 MXU operands).
    x_ref, p_ref = _reference_forward(params, x)
    err_x = float(jnp.max(jnp.abs(x_out - x_ref)))
    err_p = float(jnp.max(jnp.abs(p_out - p_ref)))
    assert err_x < 0.1 and err_p < 0.1, (err_x, err_p)
    # The pooled output must be (exactly) the 2x2 max of the kernel's own x output.
    pooled = x_out.reshape(N, out_c, H // 2, 2, W // 2, 2).max(axis=(3, 5))
    assert float(jnp.max(jnp.abs(p_out - pooled))) < 1e-6

    print("KERNEL_OK")
</pallas_src>

<mosaic_0001>
module attributes {stable_mosaic.version = 11 : i64} {
  func.func @kernel(%arg0: i32, %arg1: i32, %arg2: memref<1x8x16x8xf32, #tpu.memory_space<vmem>>, %arg3: memref<1x8xf32, #tpu.memory_space<vmem>>, %arg4: memref<1x8xf32, #tpu.memory_space<vmem>>, %arg5: memref<1x8x16x8xf32, #tpu.memory_space<vmem>>, %arg6: memref<1x4x8x8xf32, #tpu.memory_space<vmem>>, %arg7: memref<4x16x8xf32, #tpu.memory_space<vmem>>) attributes {dimension_semantics = [#tpu.dimension_semantics<parallel>, #tpu.dimension_semantics<parallel>], iteration_bounds = array<i64: 2, 2>, scalar_prefetch = 0 : i64, scratch_operands = 1 : i64, tpu.core_type = #tpu.core_type<tc>, window_params = [{transform_indices = @transform_0, window_bounds = array<i64: 1, 8, 16, 8>}, {pipeline_mode = #tpu.pipeline_mode<synchronous>, transform_indices = @transform_1, window_bounds = array<i64: 1, 8>}, {pipeline_mode = #tpu.pipeline_mode<synchronous>, transform_indices = @transform_2, window_bounds = array<i64: 1, 8>}, {transform_indices = @transform_3, window_bounds = array<i64: 1, 8, 16, 8>}, {transform_indices = @transform_4, window_bounds = array<i64: 1, 4, 8, 8>}]} {
    %c0 = arith.constant 0 : index
    %c0_0 = arith.constant 0 : index
    %c0_1 = arith.constant 0 : index
    %c0_2 = arith.constant 0 : index
    %0 = vector.load %arg2[%c0, %c0_0, %c0_1, %c0_2] : memref<1x8x16x8xf32, #tpu.memory_space<vmem>>, vector<1x8x16x8xf32>
    %1 = vector.shape_cast %0 : vector<1x8x16x8xf32> to vector<8x16x8xf32>
    %c0_3 = arith.constant 0 : index
    %c0_4 = arith.constant 0 : index
    %2 = vector.load %arg3[%c0_3, %c0_4] : memref<1x8xf32, #tpu.memory_space<vmem>>, vector<1x8xf32>
    %3 = vector.shape_cast %2 : vector<1x8xf32> to vector<8xf32>
    %4 = vector.shape_cast %3 : vector<8xf32> to vector<1x1x8xf32>
    %5 = vector.broadcast %4 : vector<1x1x8xf32> to vector<8x16x8xf32>
    %6 = arith.mulf %1, %5 : vector<8x16x8xf32>
    %c0_5 = arith.constant 0 : index
    %c0_6 = arith.constant 0 : index
    %7 = vector.load %arg4[%c0_5, %c0_6] : memref<1x8xf32, #tpu.memory_space<vmem>>, vector<1x8xf32>
    %8 = vector.shape_cast %7 : vector<1x8xf32> to vector<8xf32>
    %9 = vector.shape_cast %8 : vector<8xf32> to vector<1x1x8xf32>
    %10 = vector.broadcast %9 : vector<1x1x8xf32> to vector<8x16x8xf32>
    %11 = arith.addf %6, %10 : vector<8x16x8xf32>
    %cst = arith.constant 0.000000e+00 : f32
    %12 = vector.broadcast %cst : f32 to vector<8x16x8xf32>
    %13 = arith.maximumf %11, %12 : vector<8x16x8xf32>
    %c0_7 = arith.constant 0 : index
    %c0_8 = arith.constant 0 : index
    %c0_9 = arith.constant 0 : index
    %c0_10 = arith.constant 0 : index
    %14 = vector.load %arg5[%c0_7, %c0_8, %c0_9, %c0_10] : memref<1x8x16x8xf32, #tpu.memory_space<vmem>>, vector<1x8x16x8xf32>
    %15 = vector.shape_cast %14 : vector<1x8x16x8xf32> to vector<8x16x8xf32>
    %16 = vector.shape_cast %13 : vector<8x16x8xf32> to vector<1x8x16x8xf32>
    tpu.vector_store %arg5[%c0_7, %c0_8, %c0_9, %c0_10], %16 {strides = array<i32>} : memref<1x8x16x8xf32, #tpu.memory_space<vmem>>, vector<1x8x16x8xf32>,
    %17 = vector.shape_cast %13 : vector<8x16x8xf32> to vector<4x2x16x8xf32>
    %18 = vector.extract_strided_slice %17 {offsets = [0, 0, 0, 0], sizes = [4, 1, 16, 8], strides = [1, 1, 1, 1]} : vector<4x2x16x8xf32> to vector<4x1x16x8xf32>
    %19 = vector.shape_cast %18 : vector<4x1x16x8xf32> to vector<4x16x8xf32>
    %20 = vector.extract_strided_slice %17 {offsets = [0, 1, 0, 0], sizes = [4, 1, 16, 8], strides = [1, 1, 1, 1]} : vector<4x2x16x8xf32> to vector<4x1x16x8xf32>
    %21 = vector.shape_cast %20 : vector<4x1x16x8xf32> to vector<4x16x8xf32>
    %22 = arith.maximumf %19, %21 : vector<4x16x8xf32>
    %c0_11 = arith.constant 0 : index
    %c0_12 = arith.constant 0 : index
    %c0_13 = arith.constant 0 : index
    %23 = vector.load %arg7[%c0_11, %c0_12, %c0_13] : memref<4x16x8xf32, #tpu.memory_space<vmem>>, vector<4x16x8xf32>
    tpu.vector_store %arg7[%c0_11, %c0_12, %c0_13], %22 {strides = array<i32>} : memref<4x16x8xf32, #tpu.memory_space<vmem>>, vector<4x16x8xf32>,
    %c0_14 = arith.constant 0 : index
    %c0_15 = arith.constant 0 : index
    %c0_16 = arith.constant 0 : index
    %24 = tpu.strided_load %arg7[%c0_14, %c0_15, %c0_16] {strides = array<i32: 1, 2, 1>} : memref<4x16x8xf32, #tpu.memory_space<vmem>>, vector<4x8x8xf32>
    %c0_17 = arith.constant 0 : index
    %c1 = arith.constant 1 : index
    %c0_18 = arith.constant 0 : index
    %25 = tpu.strided_load %arg7[%c0_17, %c1, %c0_18] {strides = array<i32: 1, 2, 1>} : memref<4x16x8xf32, #tpu.memory_space<vmem>>, vector<4x8x8xf32>
    %26 = arith.maximumf %24, %25 : vector<4x8x8xf32>
    %c0_19 = arith.constant 0 : index
    %c0_20 = arith.constant 0 : index
    %c0_21 = arith.constant 0 : index
    %c0_22 = arith.constant 0 : index
    %27 = vector.load %arg6[%c0_19, %c0_20, %c0_21, %c0_22] : memref<1x4x8x8xf32, #tpu.memory_space<vmem>>, vector<1x4x8x8xf32>
    %28 = vector.shape_cast %27 : vector<1x4x8x8xf32> to vector<4x8x8xf32>
    %29 = vector.shape_cast %26 : vector<4x8x8xf32> to vector<1x4x8x8xf32>
    tpu.vector_store %arg6[%c0_19, %c0_20, %c0_21, %c0_22], %29 {strides = array<i32>} : memref<1x4x8x8xf32, #tpu.memory_space<vmem>>, vector<1x4x8x8xf32>,
    return
  }
  func.func @transform_0(%arg0: i32, %arg1: i32) -> (i32, i32, i32, i32) {
    %c0_i32 = arith.constant 0 : i32
    %c0_i32_0 = arith.constant 0 : i32
    %c0_i32_1 = arith.constant 0 : i32
    return %arg0, %arg1, %c0_i32, %c0_i32_0 : i32, i32, i32, i32
  }
  func.func @transform_1(%arg0: i32, %arg1: i32) -> (i32, i32) {
    %c0_i32 = arith.constant 0 : i32
    %c0_i32_0 = arith.constant 0 : i32
    %c0_i32_1 = arith.constant 0 : i32
    return %c0_i32, %c0_i32_0 : i32, i32
  }
  func.func @transform_2(%arg0: i32, %arg1: i32) -> (i32, i32) {
    %c0_i32 = arith.constant 0 : i32
    %c0_i32_0 = arith.constant 0 : i32
    %c0_i32_1 = arith.constant 0 : i32
    return %c0_i32, %c0_i32_0 : i32, i32
  }
  func.func @transform_3(%arg0: i32, %arg1: i32) -> (i32, i32, i32, i32) {
    %c0_i32 = arith.constant 0 : i32
    %c0_i32_0 = arith.constant 0 : i32
    %c0_i32_1 = arith.constant 0 : i32
    return %arg0, %arg1, %c0_i32, %c0_i32_0 : i32, i32, i32, i32
  }
  func.func @transform_4(%arg0: i32, %arg1: i32) -> (i32, i32, i32, i32) {
    %c0_i32 = arith.constant 0 : i32
    %c0_i32_0 = arith.constant 0 : i32
    %c0_i32_1 = arith.constant 0 : i32
    return %arg0, %arg1, %c0_i32, %c0_i32_0 : i32, i32, i32, i32
  }
}

module attributes {stable_mosaic.version = 11 : i64} {
  func.func @kernel(%arg0: i32, %arg1: i32, %arg2: memref<1x16x16x8xf32, #tpu.memory_space<vmem>>, %arg3: memref<72x8xbf16, #tpu.memory_space<vmem>>, %arg4: memref<1x8xf32, #tpu.memory_space<vmem>>, %arg5: memref<1x8xf32, #tpu.memory_space<vmem>>, %arg6: memref<1x8xf32, #tpu.memory_space<vmem>>, %arg7: memref<1x8x16x8xf32, #tpu.memory_space<vmem>>, %arg8: memref<1x1x2x8xf32, #tpu.memory_space<vmem>>, %arg9: memref<18x18x8xf32, #tpu.memory_space<vmem>>, %arg10: memref<8x16x72xf32, #tpu.memory_space<vmem>>) attributes {dimension_semantics = [#tpu.dimension_semantics<parallel>, #tpu.dimension_semantics<arbitrary>], iteration_bounds = array<i64: 2, 2>, scalar_prefetch = 0 : i64, scratch_operands = 2 : i64, tpu.core_type = #tpu.core_type<tc>, window_params = [{transform_indices = @transform_0, window_bounds = array<i64: 1, 16, 16, 8>}, {pipeline_mode = #tpu.pipeline_mode<synchronous>, transform_indices = @transform_1, window_bounds = array<i64: 72, 8>}, {pipeline_mode = #tpu.pipeline_mode<synchronous>, transform_indices = @transform_2, window_bounds = array<i64: 1, 8>}, {pipeline_mode = #tpu.pipeline_mode<synchronous>, transform_indices = @transform_3, window_bounds = array<i64: 1, 8>}, {pipeline_mode = #tpu.pipeline_mode<synchronous>, transform_indices = @transform_4, window_bounds = array<i64: 1, 8>}, {transform_indices = @transform_5, window_bounds = array<i64: 1, 8, 16, 8>}, {transform_indices = @transform_6, window_bounds = array<i64: 1, 1, 2, 8>}]} {
    %c0_i32 = arith.constant 0 : i32
    %0 = arith.cmpi eq, %arg1, %c0_i32 : i32
    %1 = arith.extui %0 : i1 to i32
    %c0_i32_0 = arith.constant 0 : i32
    %2 = arith.cmpi ne, %1, %c0_i32_0 : i32
    scf.if %2 {
      %cst_63 = arith.constant 0.000000e+00 : f32
      %66 = vector.broadcast %cst_63 : f32 to vector<18x18x8xf32>
      %c0_64 = arith.constant 0 : index
      %c0_65 = arith.constant 0 : index
      %c0_66 = arith.constant 0 : index
      %67 = vector.load %arg9[%c0_64, %c0_65, %c0_66] : memref<18x18x8xf32, #tpu.memory_space<vmem>>, vector<18x18x8xf32>
      tpu.vector_store %arg9[%c0_64, %c0_65, %c0_66], %66 {strides = array<i32>} : memref<18x18x8xf32, #tpu.memory_space<vmem>>, vector<18x18x8xf32>,
      %c0_67 = arith.constant 0 : index
      %c0_68 = arith.constant 0 : index
      %c0_69 = arith.constant 0 : index
      %c0_70 = arith.constant 0 : index
      %68 = vector.load %arg2[%c0_67, %c0_68, %c0_69, %c0_70] : memref<1x16x16x8xf32, #tpu.memory_space<vmem>>, vector<1x16x16x8xf32>
      %69 = vector.shape_cast %68 : vector<1x16x16x8xf32> to vector<16x16x8xf32>
      %c0_71 = arith.constant 0 : index
      %c0_72 = arith.constant 0 : index
      %70 = vector.load %arg5[%c0_71, %c0_72] : memref<1x8xf32, #tpu.memory_space<vmem>>, vector<1x8xf32>
      %71 = vector.shape_cast %70 : vector<1x8xf32> to vector<8xf32>
      %72 = vector.shape_cast %71 : vector<8xf32> to vector<1x1x8xf32>
      %73 = vector.broadcast %72 : vector<1x1x8xf32> to vector<16x16x8xf32>
      %74 = arith.mulf %69, %73 : vector<16x16x8xf32>
      %c0_73 = arith.constant 0 : index
      %c0_74 = arith.constant 0 : index
      %75 = vector.load %arg6[%c0_73, %c0_74] : memref<1x8xf32, #tpu.memory_space<vmem>>, vector<1x8xf32>
      %76 = vector.shape_cast %75 : vector<1x8xf32> to vector<8xf32>
      %77 = vector.shape_cast %76 : vector<8xf32> to vector<1x1x8xf32>
      %78 = vector.broadcast %77 : vector<1x1x8xf32> to vector<16x16x8xf32>
      %79 = arith.addf %74, %78 : vector<16x16x8xf32>
      %cst_75 = arith.constant 0.000000e+00 : f32
      %80 = vector.broadcast %cst_75 : f32 to vector<16x16x8xf32>
      %81 = arith.maximumf %79, %80 : vector<16x16x8xf32>
      %c1_76 = arith.constant 1 : index
      %c1_77 = arith.constant 1 : index
      %c0_78 = arith.constant 0 : index
      %82 = vector.load %arg9[%c1_76, %c1_77, %c0_78] : memref<18x18x8xf32, #tpu.memory_space<vmem>>, vector<16x16x8xf32>
      tpu.vector_store %arg9[%c1_76, %c1_77, %c0_78], %81 {strides = array<i32>} : memref<18x18x8xf32, #tpu.memory_space<vmem>>, vector<16x16x8xf32>,
    } else {
    }
    %c8_i32 = arith.constant 8 : i32
    %3 = arith.muli %arg1, %c8_i32 : i32
    %4 = tpu.assume_multiple %3, 8 : i32
    %c0_i32_1 = arith.constant 0 : i32
    %5 = arith.addi %4, %c0_i32_1 : i32
    %6 = arith.index_cast %5 : i32 to index
    %c0 = arith.constant 0 : index
    %c0_2 = arith.constant 0 : index
    %7 = vector.load %arg9[%6, %c0, %c0_2] : memref<18x18x8xf32, #tpu.memory_space<vmem>>, vector<8x16x8xf32>
    %c0_3 = arith.constant 0 : index
    %c0_4 = arith.constant 0 : index
    %c0_5 = arith.constant 0 : index
    %8 = vector.load %arg10[%c0_3, %c0_4, %c0_5] : memref<8x16x72xf32, #tpu.memory_space<vmem>>, vector<8x16x8xf32>
    tpu.vector_store %arg10[%c0_3, %c0_4, %c0_5], %7 {strides = array<i32>} : memref<8x16x72xf32, #tpu.memory_space<vmem>>, vector<8x16x8xf32>,
    %c0_i32_6 = arith.constant 0 : i32
    %9 = arith.addi %4, %c0_i32_6 : i32
    %10 = arith.index_cast %9 : i32 to index
    %c1 = arith.constant 1 : index
    %c0_7 = arith.constant 0 : index
    %11 = vector.load %arg9[%10, %c1, %c0_7] : memref<18x18x8xf32, #tpu.memory_space<vmem>>, vector<8x16x8xf32>
    %c0_8 = arith.constant 0 : index
    %c0_9 = arith.constant 0 : index
    %c8 = arith.constant 8 : index
    %12 = vector.load %arg10[%c0_8, %c0_9, %c8] : memref<8x16x72xf32, #tpu.memory_space<vmem>>, vector<8x16x8xf32>
    tpu.vector_store %arg10[%c0_8, %c0_9, %c8], %11 {strides = array<i32>} : memref<8x16x72xf32, #tpu.memory_space<vmem>>, vector<8x16x8xf32>,
    %c0_i32_10 = arith.constant 0 : i32
    %13 = arith.addi %4, %c0_i32_10 : i32
    %14 = arith.index_cast %13 : i32 to index
    %c2 = arith.constant 2 : index
    %c0_11 = arith.constant 0 : index
    %15 = vector.load %arg9[%14, %c2, %c0_11] : memref<18x18x8xf32, #tpu.memory_space<vmem>>, vector<8x16x8xf32>
    %c0_12 = arith.constant 0 : index
    %c0_13 = arith.constant 0 : index
    %c16 = arith.constant 16 : index
    %16 = vector.load %arg10[%c0_12, %c0_13, %c16] : memref<8x16x72xf32, #tpu.memory_space<vmem>>, vector<8x16x8xf32>
    tpu.vector_store %arg10[%c0_12, %c0_13, %c16], %15 {strides = array<i32>} : memref<8x16x72xf32, #tpu.memory_space<vmem>>, vector<8x16x8xf32>,
    %c1_i32 = arith.constant 1 : i32
    %17 = arith.addi %4, %c1_i32 : i32
    %18 = arith.index_cast %17 : i32 to index
    %c0_14 = arith.constant 0 : index
    %c0_15 = arith.constant 0 : index
    %19 = vector.load %arg9[%18, %c0_14, %c0_15] : memref<18x18x8xf32, #tpu.memory_space<vmem>>, vector<8x16x8xf32>
    %c0_16 = arith.constant 0 : index
    %c0_17 = arith.constant 0 : index
    %c24 = arith.constant 24 : index
    %20 = vector.load %arg10[%c0_16, %c0_17, %c24] : memref<8x16x72xf32, #tpu.memory_space<vmem>>, vector<8x16x8xf32>
    tpu.vector_store %arg10[%c0_16, %c0_17, %c24], %19 {strides = array<i32>} : memref<8x16x72xf32, #tpu.memory_space<vmem>>, vector<8x16x8xf32>,
    %c1_i32_18 = arith.constant 1 : i32
    %21 = arith.addi %4, %c1_i32_18 : i32
    %22 = arith.index_cast %21 : i32 to index
    %c1_19 = arith.constant 1 : index
    %c0_20 = arith.constant 0 : index
    %23 = vector.load %arg9[%22, %c1_19, %c0_20] : memref<18x18x8xf32, #tpu.memory_space<vmem>>, vector<8x16x8xf32>
    %c0_21 = arith.constant 0 : index
    %c0_22 = arith.constant 0 : index
    %c32 = arith.constant 32 : index
    %24 = vector.load %arg10[%c0_21, %c0_22, %c32] : memref<8x16x72xf32, #tpu.memory_space<vmem>>, vector<8x16x8xf32>
    tpu.vector_store %arg10[%c0_21, %c0_22, %c32], %23 {strides = array<i32>} : memref<8x16x72xf32, #tpu.memory_space<vmem>>, vector<8x16x8xf32>,
    %c1_i32_23 = arith.constant 1 : i32
    %25 = arith.addi %4, %c1_i32_23 : i32
    %26 = arith.index_cast %25 : i32 to index
    %c2_24 = arith.constant 2 : index
    %c0_25 = arith.constant 0 : index
    %27 = vector.load %arg9[%26, %c2_24, %c0_25] : memref<18x18x8xf32, #tpu.memory_space<vmem>>, vector<8x16x8xf32>
    %c0_26 = arith.constant 0 : index
    %c0_27 = arith.constant 0 : index
    %c40 = arith.constant 40 : index
    %28 = vector.load %arg10[%c0_26, %c0_27, %c40] : memref<8x16x72xf32, #tpu.memory_space<vmem>>, vector<8x16x8xf32>
    tpu.vector_store %arg10[%c0_26, %c0_27, %c40], %27 {strides = array<i32>} : memref<8x16x72xf32, #tpu.memory_space<vmem>>, vector<8x16x8xf32>,
    %c2_i32 = arith.constant 2 : i32
    %29 = arith.addi %4, %c2_i32 : i32
    %30 = arith.index_cast %29 : i32 to index
    %c0_28 = arith.constant 0 : index
    %c0_29 = arith.constant 0 : index
    %31 = vector.load %arg9[%30, %c0_28, %c0_29] : memref<18x18x8xf32, #tpu.memory_space<vmem>>, vector<8x16x8xf32>
    %c0_30 = arith.constant 0 : index
    %c0_31 = arith.constant 0 : index
    %c48 = arith.constant 48 : index
    %32 = vector.load %arg10[%c0_30, %c0_31, %c48] : memref<8x16x72xf32, #tpu.memory_space<vmem>>, vector<8x16x8xf32>
    tpu.vector_store %arg10[%c0_30, %c0_31, %c48], %31 {strides = array<i32>} : memref<8x16x72xf32, #tpu.memory_space<vmem>>, vector<8x16x8xf32>,
    %c2_i32_32 = arith.constant 2 : i32
    %33 = arith.addi %4, %c2_i32_32 : i32
    %34 = arith.index_cast %33 : i32 to index
    %c1_33 = arith.constant 1 : index
    %c0_34 = arith.constant 0 : index
    %35 = vector.load %arg9[%34, %c1_33, %c0_34] : memref<18x18x8xf32, #tpu.memory_space<vmem>>, vector<8x16x8xf32>
    %c0_35 = arith.constant 0 : index
    %c0_36 = arith.constant 0 : index
    %c56 = arith.constant 56 : index
    %36 = vector.load %arg10[%c0_35, %c0_36, %c56] : memref<8x16x72xf32, #tpu.memory_space<vmem>>, vector<8x16x8xf32>
    tpu.vector_store %arg10[%c0_35, %c0_36, %c56], %35 {strides = array<i32>} : memref<8x16x72xf32, #tpu.memory_space<vmem>>, vector<8x16x8xf32>,
    %c2_i32_37 = arith.constant 2 : i32
    %37 = arith.addi %4, %c2_i32_37 : i32
    %38 = arith.index_cast %37 : i32 to index
    %c2_38 = arith.constant 2 : index
    %c0_39 = arith.constant 0 : index
    %39 = vector.load %arg9[%38, %c2_38, %c0_39] : memref<18x18x8xf32, #tpu.memory_space<vmem>>, vector<8x16x8xf32>
    %c0_40 = arith.constant 0 : index
    %c0_41 = arith.constant 0 : index
    %c64 = arith.constant 64 : index
    %40 = vector.load %arg10[%c0_40, %c0_41, %c64] : memref<8x16x72xf32, #tpu.memory_space<vmem>>, vector<8x16x8xf32>
    tpu.vector_store %arg10[%c0_40, %c0_41, %c64], %39 {strides = array<i32>} : memref<8x16x72xf32, #tpu.memory_space<vmem>>, vector<8x16x8xf32>,
    %c0_42 = arith.constant 0 : index
    %c0_43 = arith.constant 0 : index
    %c0_44 = arith.constant 0 : index
    %41 = vector.load %arg10[%c0_42, %c0_43, %c0_44] : memref<8x16x72xf32, #tpu.memory_space<vmem>>, vector<8x16x72xf32>
    %42 = vector.shape_cast %41 : vector<8x16x72xf32> to vector<128x72xf32>
    %43 = arith.truncf %42 : vector<128x72xf32> to vector<128x72xbf16>
    %c0_45 = arith.constant 0 : index
    %c0_46 = arith.constant 0 : index
    %44 = vector.load %arg3[%c0_45, %c0_46] : memref<72x8xbf16, #tpu.memory_space<vmem>>, vector<72x8xbf16>
    %cst = arith.constant dense<0.000000e+00> : vector<128x8xf32>
    %45 = tpu.matmul %43, %44, %cst {dimension_numbers = #tpu.dot_dimension_numbers<[1], [0], [0], [1], [0, 0, 1, 1], [], []>} : vector<128x72xbf16>, vector<72x8xbf16>, vector<128x8xf32> -> vector<128x8xf32>
    %c0_47 = arith.constant 0 : index
    %c0_48 = arith.constant 0 : index
    %46 = vector.load %arg4[%c0_47, %c0_48] : memref<1x8xf32, #tpu.memory_space<vmem>>, vector<1x8xf32>
    %47 = vector.shape_cast %46 : vector<1x8xf32> to vector<8xf32>
    %48 = vector.shape_cast %47 : vector<8xf32> to vector<1x8xf32>
    %49 = vector.broadcast %48 : vector<1x8xf32> to vector<128x8xf32>
    %50 = arith.addf %45, %49 : vector<128x8xf32>
    %51 = vector.shape_cast %50 : vector<128x8xf32> to vector<8x16x8xf32>
    %c0_49 = arith.constant 0 : index
    %c0_50 = arith.constant 0 : index
    %c0_51 = arith.constant 0 : index
    %c0_52 = arith.constant 0 : index
    %52 = vector.load %arg7[%c0_49, %c0_50, %c0_51, %c0_52] : memref<1x8x16x8xf32, #tpu.memory_space<vmem>>, vector<1x8x16x8xf32>
    %53 = vector.shape_cast %52 : vector<1x8x16x8xf32> to vector<8x16x8xf32>
    %54 = vector.shape_cast %51 : vector<8x16x8xf32> to vector<1x8x16x8xf32>
    tpu.vector_store %arg7[%c0_49, %c0_50, %c0_51, %c0_52], %54 {strides = array<i32>} : memref<1x8x16x8xf32, #tpu.memory_space<vmem>>, vector<1x8x16x8xf32>,
    %cst_53 = arith.constant dense<0.000000e+00> : vector<8xf32>
    %55 = vector.multi_reduction <add>, %50, %cst_53 [0] : vector<128x8xf32> to vector<8xf32>
    %56 = vector.shape_cast %55 : vector<8xf32> to vector<1x8xf32>
    %c0_54 = arith.constant 0 : index
    %c0_55 = arith.constant 0 : index
    %c0_56 = arith.constant 0 : index
    %c0_57 = arith.constant 0 : index
    %57 = vector.load %arg8[%c0_54, %c0_55, %c0_56, %c0_57] : memref<1x1x2x8xf32, #tpu.memory_space<vmem>>, vector<1x1x1x8xf32>
    %58 = vector.shape_cast %57 : vector<1x1x1x8xf32> to vector<1x8xf32>
    %59 = vector.shape_cast %56 : vector<1x8xf32> to vector<1x1x1x8xf32>
    tpu.vector_store %arg8[%c0_54, %c0_55, %c0_56, %c0_57], %59 {strides = array<i32>} : memref<1x1x2x8xf32, #tpu.memory_space<vmem>>, vector<1x1x1x8xf32>,
    %60 = arith.mulf %50, %50 : vector<128x8xf32>
    %cst_58 = arith.constant dense<0.000000e+00> : vector<8xf32>
    %61 = vector.multi_reduction <add>, %60, %cst_58 [0] : vector<128x8xf32> to vector<8xf32>
    %62 = vector.shape_cast %61 : vector<8xf32> to vector<1x8xf32>
    %c0_59 = arith.constant 0 : index
    %c0_60 = arith.constant 0 : index
    %c1_61 = arith.constant 1 : index
    %c0_62 = arith.constant 0 : index
    %63 = vector.load %arg8[%c0_59, %c0_60, %c1_61, %c0_62] : memref<1x1x2x8xf32, #tpu.memory_space<vmem>>, vector<1x1x1x8xf32>
    %64 = vector.shape_cast %63 : vector<1x1x1x8xf32> to vector<1x8xf32>
    %65 = vector.shape_cast %62 : vector<1x8xf32> to vector<1x1x1x8xf32>
    tpu.vector_store %arg8[%c0_59, %c0_60, %c1_61, %c0_62], %65 {strides = array<i32>} : memref<1x1x2x8xf32, #tpu.memory_space<vmem>>, vector<1x1x1x8xf32>,
    return
  }
  func.func @transform_0(%arg0: i32, %arg1: i32) -> (i32, i32, i32, i32) {
    %c0_i32 = arith.constant 0 : i32
    %c0_i32_0 = arith.constant 0 : i32
    %c0_i32_1 = arith.constant 0 : i32
    %c0_i32_2 = arith.constant 0 : i32
    return %arg0, %c0_i32, %c0_i32_0, %c0_i32_1 : i32, i32, i32, i32
  }
  func.func @transform_1(%arg0: i32, %arg1: i32) -> (i32, i32) {
    %c0_i32 = arith.constant 0 : i32
    %c0_i32_0 = arith.constant 0 : i32
    %c0_i32_1 = arith.constant 0 : i32
    return %c0_i32, %c0_i32_0 : i32, i32
  }
  func.func @transform_2(%arg0: i32, %arg1: i32) -> (i32, i32) {
    %c0_i32 = arith.constant 0 : i32
    %c0_i32_0 = arith.constant 0 : i32
    %c0_i32_1 = arith.constant 0 : i32
    return %c0_i32, %c0_i32_0 : i32, i32
  }
  func.func @transform_3(%arg0: i32, %arg1: i32) -> (i32, i32) {
    %c0_i32 = arith.constant 0 : i32
    %c0_i32_0 = arith.constant 0 : i32
    %c0_i32_1 = arith.constant 0 : i32
    return %c0_i32, %c0_i32_0 : i32, i32
  }
  func.func @transform_4(%arg0: i32, %arg1: i32) -> (i32, i32) {
    %c0_i32 = arith.constant 0 : i32
    %c0_i32_0 = arith.constant 0 : i32
    %c0_i32_1 = arith.constant 0 : i32
    return %c0_i32, %c0_i32_0 : i32, i32
  }
  func.func @transform_5(%arg0: i32, %arg1: i32) -> (i32, i32, i32, i32) {
    %c0_i32 = arith.constant 0 : i32
    %c0_i32_0 = arith.constant 0 : i32
    %c0_i32_1 = arith.constant 0 : i32
    return %arg0, %arg1, %c0_i32, %c0_i32_0 : i32, i32, i32, i32
  }
  func.func @transform_6(%arg0: i32, %arg1: i32) -> (i32, i32, i32, i32) {
    %c0_i32 = arith.constant 0 : i32
    %c0_i32_0 = arith.constant 0 : i32
    %c0_i32_1 = arith.constant 0 : i32
    return %arg0, %arg1, %c0_i32, %c0_i32_0 : i32, i32, i32, i32
  }
}

module attributes {stable_mosaic.version = 11 : i64} {
  func.func @kernel(%arg0: i32, %arg1: i32, %arg2: memref<1x16x16x4xf32, #tpu.memory_space<vmem>>, %arg3: memref<36x8xbf16, #tpu.memory_space<vmem>>, %arg4: memref<1x8xf32, #tpu.memory_space<vmem>>, %arg5: memref<1x4xf32, #tpu.memory_space<vmem>>, %arg6: memref<1x4xf32, #tpu.memory_space<vmem>>, %arg7: memref<1x8x16x8xf32, #tpu.memory_space<vmem>>, %arg8: memref<1x1x2x8xf32, #tpu.memory_space<vmem>>, %arg9: memref<18x18x4xf32, #tpu.memory_space<vmem>>, %arg10: memref<8x16x36xf32, #tpu.memory_space<vmem>>) attributes {dimension_semantics = [#tpu.dimension_semantics<parallel>, #tpu.dimension_semantics<arbitrary>], iteration_bounds = array<i64: 2, 2>, scalar_prefetch = 0 : i64, scratch_operands = 2 : i64, tpu.core_type = #tpu.core_type<tc>, window_params = [{transform_indices = @transform_0, window_bounds = array<i64: 1, 16, 16, 4>}, {pipeline_mode = #tpu.pipeline_mode<synchronous>, transform_indices = @transform_1, window_bounds = array<i64: 36, 8>}, {pipeline_mode = #tpu.pipeline_mode<synchronous>, transform_indices = @transform_2, window_bounds = array<i64: 1, 8>}, {pipeline_mode = #tpu.pipeline_mode<synchronous>, transform_indices = @transform_3, window_bounds = array<i64: 1, 4>}, {pipeline_mode = #tpu.pipeline_mode<synchronous>, transform_indices = @transform_4, window_bounds = array<i64: 1, 4>}, {transform_indices = @transform_5, window_bounds = array<i64: 1, 8, 16, 8>}, {transform_indices = @transform_6, window_bounds = array<i64: 1, 1, 2, 8>}]} {
    %c0_i32 = arith.constant 0 : i32
    %0 = arith.cmpi eq, %arg1, %c0_i32 : i32
    %1 = arith.extui %0 : i1 to i32
    %c0_i32_0 = arith.constant 0 : i32
    %2 = arith.cmpi ne, %1, %c0_i32_0 : i32
    scf.if %2 {
      %cst_63 = arith.constant 0.000000e+00 : f32
      %66 = vector.broadcast %cst_63 : f32 to vector<18x18x4xf32>
      %c0_64 = arith.constant 0 : index
      %c0_65 = arith.constant 0 : index
      %c0_66 = arith.constant 0 : index
      %67 = vector.load %arg9[%c0_64, %c0_65, %c0_66] : memref<18x18x4xf32, #tpu.memory_space<vmem>>, vector<18x18x4xf32>
      tpu.vector_store %arg9[%c0_64, %c0_65, %c0_66], %66 {strides = array<i32>} : memref<18x18x4xf32, #tpu.memory_space<vmem>>, vector<18x18x4xf32>,
      %c0_67 = arith.constant 0 : index
      %c0_68 = arith.constant 0 : index
      %c0_69 = arith.constant 0 : index
      %c0_70 = arith.constant 0 : index
      %68 = vector.load %arg2[%c0_67, %c0_68, %c0_69, %c0_70] : memref<1x16x16x4xf32, #tpu.memory_space<vmem>>, vector<1x16x16x4xf32>
      %69 = vector.shape_cast %68 : vector<1x16x16x4xf32> to vector<16x16x4xf32>
      %c1_71 = arith.constant 1 : index
      %c1_72 = arith.constant 1 : index
      %c0_73 = arith.constant 0 : index
      %70 = vector.load %arg9[%c1_71, %c1_72, %c0_73] : memref<18x18x4xf32, #tpu.memory_space<vmem>>, vector<16x16x4xf32>
      tpu.vector_store %arg9[%c1_71, %c1_72, %c0_73], %69 {strides = array<i32>} : memref<18x18x4xf32, #tpu.memory_space<vmem>>, vector<16x16x4xf32>,
    } else {
    }
    %c8_i32 = arith.constant 8 : i32
    %3 = arith.muli %arg1, %c8_i32 : i32
    %4 = tpu.assume_multiple %3, 8 : i32
    %c0_i32_1 = arith.constant 0 : i32
    %5 = arith.addi %4, %c0_i32_1 : i32
    %6 = arith.index_cast %5 : i32 to index
    %c0 = arith.constant 0 : index
    %c0_2 = arith.constant 0 : index
    %7 = vector.load %arg9[%6, %c0, %c0_2] : memref<18x18x4xf32, #tpu.memory_space<vmem>>, vector<8x16x4xf32>
    %c0_3 = arith.constant 0 : index
    %c0_4 = arith.constant 0 : index
    %c0_5 = arith.constant 0 : index
    %8 = vector.load %arg10[%c0_3, %c0_4, %c0_5] : memref<8x16x36xf32, #tpu.memory_space<vmem>>, vector<8x16x4xf32>
    tpu.vector_store %arg10[%c0_3, %c0_4, %c0_5], %7 {strides = array<i32>} : memref<8x16x36xf32, #tpu.memory_space<vmem>>, vector<8x16x4xf32>,
    %c0_i32_6 = arith.constant 0 : i32
    %9 = arith.addi %4, %c0_i32_6 : i32
    %10 = arith.index_cast %9 : i32 to index
    %c1 = arith.constant 1 : index
    %c0_7 = arith.constant 0 : index
    %11 = vector.load %arg9[%10, %c1, %c0_7] : memref<18x18x4xf32, #tpu.memory_space<vmem>>, vector<8x16x4xf32>
    %c0_8 = arith.constant 0 : index
    %c0_9 = arith.constant 0 : index
    %c4 = arith.constant 4 : index
    %12 = vector.load %arg10[%c0_8, %c0_9, %c4] : memref<8x16x36xf32, #tpu.memory_space<vmem>>, vector<8x16x4xf32>
    tpu.vector_store %arg10[%c0_8, %c0_9, %c4], %11 {strides = array<i32>} : memref<8x16x36xf32, #tpu.memory_space<vmem>>, vector<8x16x4xf32>,
    %c0_i32_10 = arith.constant 0 : i32
    %13 = arith.addi %4, %c0_i32_10 : i32
    %14 = arith.index_cast %13 : i32 to index
    %c2 = arith.constant 2 : index
    %c0_11 = arith.constant 0 : index
    %15 = vector.load %arg9[%14, %c2, %c0_11] : memref<18x18x4xf32, #tpu.memory_space<vmem>>, vector<8x16x4xf32>
    %c0_12 = arith.constant 0 : index
    %c0_13 = arith.constant 0 : index
    %c8 = arith.constant 8 : index
    %16 = vector.load %arg10[%c0_12, %c0_13, %c8] : memref<8x16x36xf32, #tpu.memory_space<vmem>>, vector<8x16x4xf32>
    tpu.vector_store %arg10[%c0_12, %c0_13, %c8], %15 {strides = array<i32>} : memref<8x16x36xf32, #tpu.memory_space<vmem>>, vector<8x16x4xf32>,
    %c1_i32 = arith.constant 1 : i32
    %17 = arith.addi %4, %c1_i32 : i32
    %18 = arith.index_cast %17 : i32 to index
    %c0_14 = arith.constant 0 : index
    %c0_15 = arith.constant 0 : index
    %19 = vector.load %arg9[%18, %c0_14, %c0_15] : memref<18x18x4xf32, #tpu.memory_space<vmem>>, vector<8x16x4xf32>
    %c0_16 = arith.constant 0 : index
    %c0_17 = arith.constant 0 : index
    %c12 = arith.constant 12 : index
    %20 = vector.load %arg10[%c0_16, %c0_17, %c12] : memref<8x16x36xf32, #tpu.memory_space<vmem>>, vector<8x16x4xf32>
    tpu.vector_store %arg10[%c0_16, %c0_17, %c12], %19 {strides = array<i32>} : memref<8x16x36xf32, #tpu.memory_space<vmem>>, vector<8x16x4xf32>,
    %c1_i32_18 = arith.constant 1 : i32
    %21 = arith.addi %4, %c1_i32_18 : i32
    %22 = arith.index_cast %21 : i32 to index
    %c1_19 = arith.constant 1 : index
    %c0_20 = arith.constant 0 : index
    %23 = vector.load %arg9[%22, %c1_19, %c0_20] : memref<18x18x4xf32, #tpu.memory_space<vmem>>, vector<8x16x4xf32>
    %c0_21 = arith.constant 0 : index
    %c0_22 = arith.constant 0 : index
    %c16 = arith.constant 16 : index
    %24 = vector.load %arg10[%c0_21, %c0_22, %c16] : memref<8x16x36xf32, #tpu.memory_space<vmem>>, vector<8x16x4xf32>
    tpu.vector_store %arg10[%c0_21, %c0_22, %c16], %23 {strides = array<i32>} : memref<8x16x36xf32, #tpu.memory_space<vmem>>, vector<8x16x4xf32>,
    %c1_i32_23 = arith.constant 1 : i32
    %25 = arith.addi %4, %c1_i32_23 : i32
    %26 = arith.index_cast %25 : i32 to index
    %c2_24 = arith.constant 2 : index
    %c0_25 = arith.constant 0 : index
    %27 = vector.load %arg9[%26, %c2_24, %c0_25] : memref<18x18x4xf32, #tpu.memory_space<vmem>>, vector<8x16x4xf32>
    %c0_26 = arith.constant 0 : index
    %c0_27 = arith.constant 0 : index
    %c20 = arith.constant 20 : index
    %28 = vector.load %arg10[%c0_26, %c0_27, %c20] : memref<8x16x36xf32, #tpu.memory_space<vmem>>, vector<8x16x4xf32>
    tpu.vector_store %arg10[%c0_26, %c0_27, %c20], %27 {strides = array<i32>} : memref<8x16x36xf32, #tpu.memory_space<vmem>>, vector<8x16x4xf32>,
    %c2_i32 = arith.constant 2 : i32
    %29 = arith.addi %4, %c2_i32 : i32
    %30 = arith.index_cast %29 : i32 to index
    %c0_28 = arith.constant 0 : index
    %c0_29 = arith.constant 0 : index
    %31 = vector.load %arg9[%30, %c0_28, %c0_29] : memref<18x18x4xf32, #tpu.memory_space<vmem>>, vector<8x16x4xf32>
    %c0_30 = arith.constant 0 : index
    %c0_31 = arith.constant 0 : index
    %c24 = arith.constant 24 : index
    %32 = vector.load %arg10[%c0_30, %c0_31, %c24] : memref<8x16x36xf32, #tpu.memory_space<vmem>>, vector<8x16x4xf32>
    tpu.vector_store %arg10[%c0_30, %c0_31, %c24], %31 {strides = array<i32>} : memref<8x16x36xf32, #tpu.memory_space<vmem>>, vector<8x16x4xf32>,
    %c2_i32_32 = arith.constant 2 : i32
    %33 = arith.addi %4, %c2_i32_32 : i32
    %34 = arith.index_cast %33 : i32 to index
    %c1_33 = arith.constant 1 : index
    %c0_34 = arith.constant 0 : index
    %35 = vector.load %arg9[%34, %c1_33, %c0_34] : memref<18x18x4xf32, #tpu.memory_space<vmem>>, vector<8x16x4xf32>
    %c0_35 = arith.constant 0 : index
    %c0_36 = arith.constant 0 : index
    %c28 = arith.constant 28 : index
    %36 = vector.load %arg10[%c0_35, %c0_36, %c28] : memref<8x16x36xf32, #tpu.memory_space<vmem>>, vector<8x16x4xf32>
    tpu.vector_store %arg10[%c0_35, %c0_36, %c28], %35 {strides = array<i32>} : memref<8x16x36xf32, #tpu.memory_space<vmem>>, vector<8x16x4xf32>,
    %c2_i32_37 = arith.constant 2 : i32
    %37 = arith.addi %4, %c2_i32_37 : i32
    %38 = arith.index_cast %37 : i32 to index
    %c2_38 = arith.constant 2 : index
    %c0_39 = arith.constant 0 : index
    %39 = vector.load %arg9[%38, %c2_38, %c0_39] : memref<18x18x4xf32, #tpu.memory_space<vmem>>, vector<8x16x4xf32>
    %c0_40 = arith.constant 0 : index
    %c0_41 = arith.constant 0 : index
    %c32 = arith.constant 32 : index
    %40 = vector.load %arg10[%c0_40, %c0_41, %c32] : memref<8x16x36xf32, #tpu.memory_space<vmem>>, vector<8x16x4xf32>
    tpu.vector_store %arg10[%c0_40, %c0_41, %c32], %39 {strides = array<i32>} : memref<8x16x36xf32, #tpu.memory_space<vmem>>, vector<8x16x4xf32>,
    %c0_42 = arith.constant 0 : index
    %c0_43 = arith.constant 0 : index
    %c0_44 = arith.constant 0 : index
    %41 = vector.load %arg10[%c0_42, %c0_43, %c0_44] : memref<8x16x36xf32, #tpu.memory_space<vmem>>, vector<8x16x36xf32>
    %42 = vector.shape_cast %41 : vector<8x16x36xf32> to vector<128x36xf32>
    %43 = arith.truncf %42 : vector<128x36xf32> to vector<128x36xbf16>
    %c0_45 = arith.constant 0 : index
    %c0_46 = arith.constant 0 : index
    %44 = vector.load %arg3[%c0_45, %c0_46] : memref<36x8xbf16, #tpu.memory_space<vmem>>, vector<36x8xbf16>
    %cst = arith.constant dense<0.000000e+00> : vector<128x8xf32>
    %45 = tpu.matmul %43, %44, %cst {dimension_numbers = #tpu.dot_dimension_numbers<[1], [0], [0], [1], [0, 0, 1, 1], [], []>} : vector<128x36xbf16>, vector<36x8xbf16>, vector<128x8xf32> -> vector<128x8xf32>
    %c0_47 = arith.constant 0 : index
    %c0_48 = arith.constant 0 : index
    %46 = vector.load %arg4[%c0_47, %c0_48] : memref<1x8xf32, #tpu.memory_space<vmem>>, vector<1x8xf32>
    %47 = vector.shape_cast %46 : vector<1x8xf32> to vector<8xf32>
    %48 = vector.shape_cast %47 : vector<8xf32> to vector<1x8xf32>
    %49 = vector.broadcast %48 : vector<1x8xf32> to vector<128x8xf32>
    %50 = arith.addf %45, %49 : vector<128x8xf32>
    %51 = vector.shape_cast %50 : vector<128x8xf32> to vector<8x16x8xf32>
    %c0_49 = arith.constant 0 : index
    %c0_50 = arith.constant 0 : index
    %c0_51 = arith.constant 0 : index
    %c0_52 = arith.constant 0 : index
    %52 = vector.load %arg7[%c0_49, %c0_50, %c0_51, %c0_52] : memref<1x8x16x8xf32, #tpu.memory_space<vmem>>, vector<1x8x16x8xf32>
    %53 = vector.shape_cast %52 : vector<1x8x16x8xf32> to vector<8x16x8xf32>
    %54 = vector.shape_cast %51 : vector<8x16x8xf32> to vector<1x8x16x8xf32>
    tpu.vector_store %arg7[%c0_49, %c0_50, %c0_51, %c0_52], %54 {strides = array<i32>} : memref<1x8x16x8xf32, #tpu.memory_space<vmem>>, vector<1x8x16x8xf32>,
    %cst_53 = arith.constant dense<0.000000e+00> : vector<8xf32>
    %55 = vector.multi_reduction <add>, %50, %cst_53 [0] : vector<128x8xf32> to vector<8xf32>
    %56 = vector.shape_cast %55 : vector<8xf32> to vector<1x8xf32>
    %c0_54 = arith.constant 0 : index
    %c0_55 = arith.constant 0 : index
    %c0_56 = arith.constant 0 : index
    %c0_57 = arith.constant 0 : index
    %57 = vector.load %arg8[%c0_54, %c0_55, %c0_56, %c0_57] : memref<1x1x2x8xf32, #tpu.memory_space<vmem>>, vector<1x1x1x8xf32>
    %58 = vector.shape_cast %57 : vector<1x1x1x8xf32> to vector<1x8xf32>
    %59 = vector.shape_cast %56 : vector<1x8xf32> to vector<1x1x1x8xf32>
    tpu.vector_store %arg8[%c0_54, %c0_55, %c0_56, %c0_57], %59 {strides = array<i32>} : memref<1x1x2x8xf32, #tpu.memory_space<vmem>>, vector<1x1x1x8xf32>,
    %60 = arith.mulf %50, %50 : vector<128x8xf32>
    %cst_58 = arith.constant dense<0.000000e+00> : vector<8xf32>
    %61 = vector.multi_reduction <add>, %60, %cst_58 [0] : vector<128x8xf32> to vector<8xf32>
    %62 = vector.shape_cast %61 : vector<8xf32> to vector<1x8xf32>
    %c0_59 = arith.constant 0 : index
    %c0_60 = arith.constant 0 : index
    %c1_61 = arith.constant 1 : index
    %c0_62 = arith.constant 0 : index
    %63 = vector.load %arg8[%c0_59, %c0_60, %c1_61, %c0_62] : memref<1x1x2x8xf32, #tpu.memory_space<vmem>>, vector<1x1x1x8xf32>
    %64 = vector.shape_cast %63 : vector<1x1x1x8xf32> to vector<1x8xf32>
    %65 = vector.shape_cast %62 : vector<1x8xf32> to vector<1x1x1x8xf32>
    tpu.vector_store %arg8[%c0_59, %c0_60, %c1_61, %c0_62], %65 {strides = array<i32>} : memref<1x1x2x8xf32, #tpu.memory_space<vmem>>, vector<1x1x1x8xf32>,
    return
  }
  func.func @transform_0(%arg0: i32, %arg1: i32) -> (i32, i32, i32, i32) {
    %c0_i32 = arith.constant 0 : i32
    %c0_i32_0 = arith.constant 0 : i32
    %c0_i32_1 = arith.constant 0 : i32
    %c0_i32_2 = arith.constant 0 : i32
    return %arg0, %c0_i32, %c0_i32_0, %c0_i32_1 : i32, i32, i32, i32
  }
  func.func @transform_1(%arg0: i32, %arg1: i32) -> (i32, i32) {
    %c0_i32 = arith.constant 0 : i32
    %c0_i32_0 = arith.constant 0 : i32
    %c0_i32_1 = arith.constant 0 : i32
    return %c0_i32, %c0_i32_0 : i32, i32
  }
  func.func @transform_2(%arg0: i32, %arg1: i32) -> (i32, i32) {
    %c0_i32 = arith.constant 0 : i32
    %c0_i32_0 = arith.constant 0 : i32
    %c0_i32_1 = arith.constant 0 : i32
    return %c0_i32, %c0_i32_0 : i32, i32
  }
  func.func @transform_3(%arg0: i32, %arg1: i32) -> (i32, i32) {
    %c0_i32 = arith.constant 0 : i32
    %c0_i32_0 = arith.constant 0 : i32
    %c0_i32_1 = arith.constant 0 : i32
    return %c0_i32, %c0_i32_0 : i32, i32
  }
  func.func @transform_4(%arg0: i32, %arg1: i32) -> (i32, i32) {
    %c0_i32 = arith.constant 0 : i32
    %c0_i32_0 = arith.constant 0 : i32
    %c0_i32_1 = arith.constant 0 : i32
    return %c0_i32, %c0_i32_0 : i32, i32
  }
  func.func @transform_5(%arg0: i32, %arg1: i32) -> (i32, i32, i32, i32) {
    %c0_i32 = arith.constant 0 : i32
    %c0_i32_0 = arith.constant 0 : i32
    %c0_i32_1 = arith.constant 0 : i32
    return %arg0, %arg1, %c0_i32, %c0_i32_0 : i32, i32, i32, i32
  }
  func.func @transform_6(%arg0: i32, %arg1: i32) -> (i32, i32, i32, i32) {
    %c0_i32 = arith.constant 0 : i32
    %c0_i32_0 = arith.constant 0 : i32
    %c0_i32_1 = arith.constant 0 : i32
    return %arg0, %arg1, %c0_i32, %c0_i32_0 : i32, i32, i32, i32
  }
}

</mosaic_0001>

<llo_original>
// kernel: encoder_block_forward.5
$region0: #{encoder_block_forward.5}
  #allocation0 [shape = 'u32[]', space=smem, size = 0x4, offset = 0x4, fixed_abs, tag = 'smem constant byte address 0x4 - core index']
  #allocation1 [shape = 'u32[144,128]{1,0:T(1,128)}', space=vmem, size = 0x12000, scoped, tag = 'internal scratch']
  #allocation2 [shape = 'f32[4,16,8]{2,1,0:T(8,128)}', space=vmem, size = 0x8000, scoped, tag = 'scratch operand']
  %s0 = inlined_call_operand.vmem [shape: f32[2,16,16,8], index: 0, kind: input, shape index: {}]
  %s1 = inlined_call_operand.vmem [shape: f32[1,8], index: 1, kind: input, shape index: {}]
  %s2 = inlined_call_operand.vmem [shape: f32[1,8], index: 2, kind: input, shape index: {}]
  %s3 = inlined_call_operand.vmem [shape: f32[2,16,16,8], index: 3, kind: output, shape index: {0}]
  %s4 = inlined_call_operand.vmem [shape: f32[2,8,8,8], index: 4, kind: output, shape index: {1}]
  %5 = xla_tuple %s3, %s4
  %s6 = sld [smem:[#allocation0]]
  $region53: #{encoder_block_forward.5} parent=0
    _
  %s8 = ssub.s32 1, %s6
  %s9 = scalar_select 0, %s8, %s6
  loop: start=0, step=1, limit=6
  $region2: #{encoder_block_forward.5} parent=0 // loop_pre_header
    _
  $region3: #{encoder_block_forward.5} parent=0 // loop_header
    %s11 = sphi 0, %s15
    %p12 = scmp.ge.s32.totalorder %s11, 6
    %s18 = sphi 0, %s30
    %s19 = sphi 0, %s26
    %s20 = sphi 0, %s18
    %s21 = sphi 0, %s19
    %s22 = sphi 0, %s20
    %s23 = sphi 0, %s21
    %s35 = sphi 0, %s37
    %s38 = sphi 0, %s35
    %s39 = sphi 0, %s38
    %s55 = sphi 0, %s39
    %s59 = sphi 0, %s59
    %s61 = sphi 0, %s59
    %s62 = sphi 0, %s61
    %s76 = sphi 0, %s62
    %s80 = sphi 0, %s80
    %s82 = sphi 0, %s80
    %s83 = sphi 0, %s82
    %s97 = sphi 0, %s83
    %s105 = sphi 0, %s107
    %s108 = sphi 0, %s105
    %s109 = sphi 0, %s108
    %s125 = sphi 0, %s109
    %s133 = sphi 0, %s135
    %s136 = sphi 0, %s133
    %s137 = sphi 0, %s136
    %s153 = sphi 0, %s137
  $region4: #{encoder_block_forward.5} parent=0 // loop_header_branch
    %14 = sbr.rel (%p12) target = $region8
  $region5: #{encoder_block_forward.5} parent=0 // loop_body
    %s16 = ssub.s32 %s11, 1
    %s17 = ssub.s32 %s11, 2
    %s24 = sadd.s32 1, %s19
    %p25 = scmp.ge.s32.totalorder %s24, 2
    %s26 = scalar_select %p25, 0, %s24
    %s27 = sadd.s32 1, %s18
    %s28 = scalar_select %p25, %s27, %s18
    %p29 = scmp.ge.s32.totalorder %s28, 2
    %s30 = scalar_select %p29, 0, %s28
    %s31 = ssub.s32 %s18, %s30
    %s32 = ssub.s32 %s19, %s26
    %s33 = sor.u32 %s31, %s32
    %p34 = scmp.eq.s32.totalorder %s33, 0
    %s36 = sadd.s32 %s35, 1
    %s37 = scalar_select %p34, %s35, %s36
    %p40 = pneg %p34
    %p41 = scmp.eq.s32.totalorder %s11, 3
    %p42 = por %p40, %p41
    %p43 = scmp.ne.s32.totalorder %s35, %s38
    %p44 = scmp.eq.s32.totalorder %s11, 0
    %p45 = por %p43, %p44
    %p46 = scmp.ne.s32.totalorder %s35, %s38
    %p47 = scmp.eq.s32.totalorder %s16, 3
    %p48 = por %p46, %p47
    %p49 = scmp.ne.s32.totalorder %s38, %s39
    %p50 = scmp.eq.s32.totalorder %s16, 0
    %p51 = por %p49, %p50
    %p52 = scmp.ne.s32.totalorder %s38, %s39
    %p53 = scmp.eq.s32.totalorder %s17, 3
    %p54 = por %p52, %p53
    %p56 = scmp.ne.s32.totalorder %s39, %s55
    %p57 = scmp.eq.s32.totalorder %s17, 0
    %p58 = por %p56, %p57
    %s60 = sadd.s32 %s59, 1
    %p63 = scmp.eq.s32.totalorder %s11, 3
    %p64 = scmp.ne.s32.totalorder %s59, %s61
    %p65 = scmp.eq.s32.totalorder %s11, 0
    %p66 = por %p64, %p65
    %p67 = scmp.ne.s32.totalorder %s59, %s61
    %p68 = scmp.eq.s32.totalorder %s16, 3
    %p69 = por %p67, %p68
    %p70 = scmp.ne.s32.totalorder %s61, %s62
    %p71 = scmp.eq.s32.totalorder %s16, 0
    %p72 = por %p70, %p71
    %p73 = scmp.ne.s32.totalorder %s61, %s62
    %p74 = scmp.eq.s32.totalorder %s17, 3
    %p75 = por %p73, %p74
    %p77 = scmp.ne.s32.totalorder %s62, %s76
    %p78 = scmp.eq.s32.totalorder %s17, 0
    %p79 = por %p77, %p78
    %s81 = sadd.s32 %s80, 1
    %p84 = scmp.eq.s32.totalorder %s11, 3
    %p85 = scmp.ne.s32.totalorder %s80, %s82
    %p86 = scmp.eq.s32.totalorder %s11, 0
    %p87 = por %p85, %p86
    %p88 = scmp.ne.s32.totalorder %s80, %s82
    %p89 = scmp.eq.s32.totalorder %s16, 3
    %p90 = por %p88, %p89
    %p91 = scmp.ne.s32.totalorder %s82, %s83
    %p92 = scmp.eq.s32.totalorder %s16, 0
    %p93 = por %p91, %p92
    %p94 = scmp.ne.s32.totalorder %s82, %s83
    %p95 = scmp.eq.s32.totalorder %s17, 3
    %p96 = por %p94, %p95
    %p98 = scmp.ne.s32.totalorder %s83, %s97
    %p99 = scmp.eq.s32.totalorder %s17, 0
    %p100 = por %p98, %p99
    %s101 = ssub.s32 %s18, %s30
    %s102 = ssub.s32 %s19, %s26
    %s103 = sor.u32 %s101, %s102
    %p104 = scmp.eq.s32.totalorder %s103, 0
    %s106 = sadd.s32 %s105, 1
    %s107 = scalar_select %p104, %s105, %s106
    %p110 = pneg %p104
    %p111 = scmp.eq.s32.totalorder %s11, 3
    %p112 = por %p110, %p111
    %p113 = scmp.ne.s32.totalorder %s105, %s108
    %p114 = scmp.eq.s32.totalorder %s11, 0
    %p115 = por %p113, %p114
    %p116 = scmp.ne.s32.totalorder %s105, %s108
    %p117 = scmp.eq.s32.totalorder %s16, 3
    %p118 = por %p116, %p117
    %p119 = scmp.ne.s32.totalorder %s108, %s109
    %p120 = scmp.eq.s32.totalorder %s16, 0
    %p121 = por %p119, %p120
    %p122 = scmp.ne.s32.totalorder %s108, %s109
    %p123 = scmp.eq.s32.totalorder %s17, 3
    %p124 = por %p122, %p123
    %p126 = scmp.ne.s32.totalorder %s109, %s125
    %p127 = scmp.eq.s32.totalorder %s17, 0
    %p128 = por %p126, %p127
    %s129 = ssub.s32 %s18, %s30
    %s130 = ssub.s32 %s19, %s26
    %s131 = sor.u32 %s129, %s130
    %p132 = scmp.eq.s32.totalorder %s131, 0
    %s134 = sadd.s32 %s133, 1
    %s135 = scalar_select %p132, %s133, %s134
    %p138 = pneg %p132
    %p139 = scmp.eq.s32.totalorder %s11, 3
    %p140 = por %p138, %p139
    %p141 = scmp.ne.s32.totalorder %s133, %s136
    %p142 = scmp.eq.s32.totalorder %s11, 0
    %p143 = por %p141, %p142
    %p144 = scmp.ne.s32.totalorder %s133, %s136
    %p145 = scmp.eq.s32.totalorder %s16, 3
    %p146 = por %p144, %p145
    %p147 = scmp.ne.s32.totalorder %s136, %s137
    %p148 = scmp.eq.s32.totalorder %s16, 0
    %p149 = por %p147, %p148
    %p150 = scmp.ne.s32.totalorder %s136, %s137
    %p151 = scmp.eq.s32.totalorder %s17, 3
    %p152 = por %p150, %p151
    %p154 = scmp.ne.s32.totalorder %s137, %s153
    %p155 = scmp.eq.s32.totalorder %s17, 0
    %p156 = por %p154, %p155
    %p157 = scmp.le.s32.totalorder 1, %s11
    %p158 = scmp.lt.s32.totalorder %s11, 5
    %p159 = pnand %p157, %p158
    %p160 = pneg %p159
    // Predicated region
    $region9: #{encoder_block_forward.5} parent=5 // pred_check
      _
    $region10: #{encoder_block_forward.5} parent=5 // pred_check_branch
      %162 = sbr.rel (%p159) target = $region12
    $region11: #{encoder_block_forward.5} parent=5 // pred_region
      %s163 = ssub.s32 %s11, 1
      // Predicated region
      $region13: #{encoder_block_forward.5} parent=11 // pred_check
        %p164 = pneg %p72
      $region14: #{encoder_block_forward.5} parent=11 // pred_check_branch
        %166 = sbr.rel (%p164) target = $region16
      $region15: #{encoder_block_forward.5} parent=11 // pred_region
        _
      $region16: #{encoder_block_forward.5} parent=11 // pred_fallthru
        _
      // Predicated region
      $region17: #{encoder_block_forward.5} parent=11 // pred_check
        %p167 = pneg %p93
      $region18: #{encoder_block_forward.5} parent=11 // pred_check_branch
        %169 = sbr.rel (%p167) target = $region20
      $region19: #{encoder_block_forward.5} parent=11 // pred_region
        _
      $region20: #{encoder_block_forward.5} parent=11 // pred_fallthru
        _
    $region12: #{encoder_block_forward.5} parent=5 // pred_fallthru
      _
    %p170 = scmp.lt.s32.totalorder %s11, 4
    // Predicated region
    $region21: #{encoder_block_forward.5} parent=5 // pred_check
      %p171 = pneg %p170
    $region22: #{encoder_block_forward.5} parent=5 // pred_check_branch
      %173 = sbr.rel (%p171) target = $region24
    $region23: #{encoder_block_forward.5} parent=5 // pred_region
      // Predicated region
      $region25: #{encoder_block_forward.5} parent=23 // pred_check
        %p174 = pneg %p45
      $region26: #{encoder_block_forward.5} parent=23 // pred_check_branch
        %176 = sbr.rel (%p174) target = $region28
      $region27: #{encoder_block_forward.5} parent=23 // pred_region
        %s177 = smul.u32 8, %s19
        %p178 = scmp.lt.s32.totalorder %s18, 1
        %s179 = scalar_select %p178, %s18, 1
        %p180 = scmp.lt.s32.totalorder %s177, 15
        %s181 = scalar_select %p180, %s177, 15
        %s182 = smul.addr %s181, 2
        %s183 = smul.addr %s179, 32
        %s184 = sadd.s32 %s182, %s183
        %s185 = smul.addr %s184, 8
        %s186 = scalar_lea.vmem %s0, %s185
        %s187 = smul.u32 8, %s19
      $region28: #{encoder_block_forward.5} parent=23 // pred_fallthru
        _
    $region24: #{encoder_block_forward.5} parent=5 // pred_fallthru
      _
    %p188 = scmp.le.s32.totalorder 1, %s11
    %p189 = scmp.lt.s32.totalorder %s11, 5
    %p190 = pnand %p188, %p189
    %p191 = pneg %p190
    // Predicated region
    $region29: #{encoder_block_forward.5} parent=5 // pred_check
      _
    $region30: #{encoder_block_forward.5} parent=5 // pred_check_branch
      %193 = sbr.rel (%p190) target = $region32
    $region31: #{encoder_block_forward.5} parent=5 // pred_region
      %s194 = ssub.s32 %s11, 1
      %s195 = smul.u32 8, %s21
      %p196 = scmp.lt.s32.totalorder %s20, 1
      %s197 = scalar_select %p196, %s20, 1
      %p198 = scmp.lt.s32.totalorder %s195, 15
      %s199 = scalar_select %p198, %s195, 15
      %s200 = smul.addr %s199, 2
      %s201 = smul.addr %s197, 32
      %s202 = sadd.s32 %s200, %s201
      %s203 = smul.addr %s202, 8
      %s204 = scalar_lea.vmem %s0, %s203
      %p205 = pneg %p51
      %p206 = pneg %p48
      %p207 = pneg %p72
      %p208 = pneg %p69
      %p209 = pneg %p93
      %p210 = pneg %p90
      %p211 = pneg %p121
      %p212 = pneg %p118
      %s213 = smul.u32 8, %s21
      %p214 = scmp.lt.s32.totalorder %s20, 1
      %s215 = scalar_select %p214, %s20, 1
      %p216 = scmp.lt.s32.totalorder %s213, 15
      %s217 = scalar_select %p216, %s213, 15
      %s218 = smul.addr %s217, 2
      %s219 = smul.addr %s215, 32
      %s220 = sadd.s32 %s218, %s219
      %s221 = smul.addr %s220, 8
      %s222 = scalar_lea.vmem %s3, %s221
      %p223 = pneg %p149
      %p224 = pneg %p146
      %s225 = smul.u32 4, %s21
      %p226 = scmp.lt.s32.totalorder %s20, 1
      %s227 = scalar_select %p226, %s20, 1
      %p228 = scmp.lt.s32.totalorder %s225, 7
      %s229 = scalar_select %p228, %s225, 7
      %s230 = smul.addr %s227, 8
      %s231 = sadd.s32 %s229, %s230
      %s232 = smul.addr %s231, 8
      %s233 = scalar_lea.vmem %s4, %s232
      %s234 = smul.u32 8, %s21
      %p235 = scmp.lt.s32.totalorder %s20, 1
      %s236 = scalar_select %p235, %s20, 1
      %p237 = scmp.lt.s32.totalorder %s234, 15
      %s238 = scalar_select %p237, %s234, 15
      %s239 = smul.addr %s238, 2
      %s240 = smul.addr %s236, 32
      %s241 = sadd.s32 %s239, %s240
      %s242 = smul.addr %s241, 8
      %s243 = scalar_lea.vmem %s0, %s242
      %s244 = smul.u32 8, %s21
      %s245 = smul.u32 8, %s21
      %p246 = scmp.lt.s32.totalorder %s20, 1
      %s247 = scalar_select %p246, %s20, 1
      %p248 = scmp.lt.s32.totalorder %s245, 15
      %s249 = scalar_select %p248, %s245, 15
      %s250 = smul.addr %s249, 2
      %s251 = smul.addr %s247, 32
      %s252 = sadd.s32 %s250, %s251
      %s253 = smul.addr %s252, 8
      %s254 = scalar_lea.vmem %s3, %s253
      %s255 = smul.u32 8, %s21
      %s256 = smul.u32 4, %s21
      %p257 = scmp.lt.s32.totalorder %s20, 1
      %s258 = scalar_select %p257, %s20, 1
      %p259 = scmp.lt.s32.totalorder %s256, 7
      %s260 = scalar_select %p259, %s256, 7
      %s261 = smul.addr %s258, 8
      %s262 = sadd.s32 %s260, %s261
      %s263 = smul.addr %s262, 8
      %s264 = scalar_lea.vmem %s4, %s263
      %s265 = smul.u32 4, %s21
      %v266 = vld [vmem:[%s243] sm:$0xff]
      %v267 = vld [vmem:[%s243 + $0x8] sm:$0xff]
      %v268 = vld [vmem:[%s243 + $0x10] sm:$0xff]
      %v269 = vld [vmem:[%s243 + $0x18] sm:$0xff]
      %v270 = vld [vmem:[%s243 + $0x20] sm:$0xff]
      %v271 = vld [vmem:[%s243 + $0x28] sm:$0xff]
      %v272 = vld [vmem:[%s243 + $0x30] sm:$0xff]
      %v273 = vld [vmem:[%s243 + $0x38] sm:$0xff]
      %v274 = vld [vmem:[%s243 + $0x40] sm:$0xff]
      %v275 = vld [vmem:[%s243 + $0x48] sm:$0xff]
      %v276 = vld [vmem:[%s243 + $0x50] sm:$0xff]
      %v277 = vld [vmem:[%s243 + $0x58] sm:$0xff]
      %v278 = vld [vmem:[%s243 + $0x60] sm:$0xff]
      %v279 = vld [vmem:[%s243 + $0x68] sm:$0xff]
      %v280 = vld [vmem:[%s243 + $0x70] sm:$0xff]
      %v281 = vld [vmem:[%s243 + $0x78] sm:$0xff]
      %v282 = vld [vmem:[%s1] sm:$0x1]
      %v284 = vlaneseq
      %v285 = vshrl.u32 %v284, 7
      %v286 = vsub.s32 0, %v285
      %v287 = vrot.slane %v282, %v286
      %v289 = vmul.f32 %v266, %v287
      %v290 = vmul.f32 %v267, %v287
      %v291 = vmul.f32 %v268, %v287
      %v292 = vmul.f32 %v269, %v287
      %v293 = vmul.f32 %v270, %v287
      %v294 = vmul.f32 %v271, %v287
      %v295 = vmul.f32 %v272, %v287
      %v296 = vmul.f32 %v273, %v287
      %v297 = vmul.f32 %v274, %v287
      %v298 = vmul.f32 %v275, %v287
      %v299 = vmul.f32 %v276, %v287
      %v300 = vmul.f32 %v277, %v287
      %v301 = vmul.f32 %v278, %v287
      %v302 = vmul.f32 %v279, %v287
      %v303 = vmul.f32 %v280, %v287
      %v304 = vmul.f32 %v281, %v287
      %v305 = vld [vmem:[%s2] sm:$0x1]
      %v307 = vlaneseq
      %v308 = vshrl.u32 %v307, 7
      %v309 = vsub.s32 0, %v308
      %v310 = vrot.slane %v305, %v309
      %v312 = vadd.f32 %v289, %v310
      %v313 = vadd.f32 %v290, %v310
      %v314 = vadd.f32 %v291, %v310
      %v315 = vadd.f32 %v292, %v310
      %v316 = vadd.f32 %v293, %v310
      %v317 = vadd.f32 %v294, %v310
      %v318 = vadd.f32 %v295, %v310
      %v319 = vadd.f32 %v296, %v310
      %v320 = vadd.f32 %v297, %v310
      %v321 = vadd.f32 %v298, %v310
      %v322 = vadd.f32 %v299, %v310
      %v323 = vadd.f32 %v300, %v310
      %v324 = vadd.f32 %v301, %v310
      %v325 = vadd.f32 %v302, %v310
      %v326 = vadd.f32 %v303, %v310
      %v327 = vadd.f32 %v304, %v310
      %v328 = vmax.f32 %v312, 0.0
      %v329 = vmax.f32 %v313, 0.0
      %v330 = vmax.f32 %v314, 0.0
      %v331 = vmax.f32 %v315, 0.0
      %v332 = vmax.f32 %v316, 0.0
      %v333 = vmax.f32 %v317, 0.0
      %v334 = vmax.f32 %v318, 0.0
      %v335 = vmax.f32 %v319, 0.0
      %v336 = vmax.f32 %v320, 0.0
      %v337 = vmax.f32 %v321, 0.0
      %v338 = vmax.f32 %v322, 0.0
      %v339 = vmax.f32 %v323, 0.0
      %v340 = vmax.f32 %v324, 0.0
      %v341 = vmax.f32 %v325, 0.0
      %v342 = vmax.f32 %v326, 0.0
      %v343 = vmax.f32 %v327, 0.0
      %vm344 = vcmask 64512
      %345 = vst.msk [vmem:[%s254] sm:$0xff] %vm344, %v328
      %346 = vst.msk [vmem:[%s254 + $0x8] sm:$0xff] %vm344, %v329
      %347 = vst.msk [vmem:[%s254 + $0x10] sm:$0xff] %vm344, %v330
      %348 = vst.msk [vmem:[%s254 + $0x18] sm:$0xff] %vm344, %v331
      %349 = vst.msk [vmem:[%s254 + $0x20] sm:$0xff] %vm344, %v332
      %350 = vst.msk [vmem:[%s254 + $0x28] sm:$0xff] %vm344, %v333
      %351 = vst.msk [vmem:[%s254 + $0x30] sm:$0xff] %vm344, %v334
      %352 = vst.msk [vmem:[%s254 + $0x38] sm:$0xff] %vm344, %v335
      %353 = vst.msk [vmem:[%s254 + $0x40] sm:$0xff] %vm344, %v336
      %354 = vst.msk [vmem:[%s254 + $0x48] sm:$0xff] %vm344, %v337
      %355 = vst.msk [vmem:[%s254 + $0x50] sm:$0xff] %vm344, %v338
      %356 = vst.msk [vmem:[%s254 + $0x58] sm:$0xff] %vm344, %v339
      %357 = vst.msk [vmem:[%s254 + $0x60] sm:$0xff] %vm344, %v340
      %358 = vst.msk [vmem:[%s254 + $0x68] sm:$0xff] %vm344, %v341
      %359 = vst.msk [vmem:[%s254 + $0x70] sm:$0xff] %vm344, %v342
      %360 = vst.msk [vmem:[%s254 + $0x78] sm:$0xff] %vm344, %v343
      %v361 = vmax.f32 %v328, %v330
      %v362 = vmax.f32 %v329, %v331
      %v363 = vmax.f32 %v332, %v334
      %v364 = vmax.f32 %v333, %v335
      %v365 = vmax.f32 %v336, %v338
      %v366 = vmax.f32 %v337, %v339
      %v367 = vmax.f32 %v340, %v342
      %v368 = vmax.f32 %v341, %v343
      %369 = vst.msk [vmem:[#allocation2] sm:$0xff] %vm344, %v361
      %370 = vst.msk [vmem:[#allocation2 + $0x8] sm:$0xff] %vm344, %v362
      %371 = vst.msk [vmem:[#allocation2 + $0x10] sm:$0xff] %vm344, %v363
      %372 = vst.msk [vmem:[#allocation2 + $0x18] sm:$0xff] %vm344, %v364
      %373 = vst.msk [vmem:[#allocation2 + $0x20] sm:$0xff] %vm344, %v365
      %374 = vst.msk [vmem:[#allocation2 + $0x28] sm:$0xff] %vm344, %v366
      %375 = vst.msk [vmem:[#allocation2 + $0x30] sm:$0xff] %vm344, %v367
      %376 = vst.msk [vmem:[#allocation2 + $0x38] sm:$0xff] %vm344, %v368
      %v377 = vld [vmem:[#allocation2] ss:$2 sm:$0xff]
      %s378 = scalar_lea.vmem [#allocation2], 16
      %v379 = vld [vmem:[%s378] ss:$2 sm:$0xff]
      %s380 = scalar_lea.vmem [#allocation2], 32
      %v381 = vld [vmem:[%s380] ss:$2 sm:$0xff]
      %s382 = scalar_lea.vmem [#allocation2], 48
      %v383 = vld [vmem:[%s382] ss:$2 sm:$0xff]
      %s384 = scalar_lea.vmem [#allocation2], 1
      %v385 = vld [vmem:[%s384] ss:$2 sm:$0xff]
      %s386 = scalar_lea.vmem [#allocation2], 17
      %v387 = vld [vmem:[%s386] ss:$2 sm:$0xff]
      %s388 = scalar_lea.vmem [#allocation2], 33
      %v389 = vld [vmem:[%s388] ss:$2 sm:$0xff]
      %s390 = scalar_lea.vmem [#allocation2], 49
      %v391 = vld [vmem:[%s390] ss:$2 sm:$0xff]
      %v392 = vmax.f32 %v377, %v385
      %v393 = vmax.f32 %v379, %v387
      %v394 = vmax.f32 %v381, %v389
      %v395 = vmax.f32 %v383, %v391
      %396 = vst.msk [vmem:[%s264] sm:$0xff] %vm344, %v392
      %397 = vst.msk [vmem:[%s264 + $0x8] sm:$0xff] %vm344, %v393
      %398 = vst.msk [vmem:[%s264 + $0x10] sm:$0xff] %vm344, %v394
      %399 = vst.msk [vmem:[%s264 + $0x18] sm:$0xff] %vm344, %v395
      %s400 = smul.u32 8, %s21
      %p401 = scmp.lt.s32.totalorder %s20, 1
      %s402 = scalar_select %p401, %s20, 1
      %p403 = scmp.lt.s32.totalorder %s400, 15
      %s404 = scalar_select %p403, %s400, 15
      %s405 = smul.addr %s404, 2
      %s406 = smul.addr %s402, 32
      %s407 = sadd.s32 %s405, %s406
      %s408 = smul.addr %s407, 8
      %s409 = scalar_lea.vmem %s3, %s408
      %s410 = smul.u32 4, %s21
      %p411 = scmp.lt.s32.totalorder %s20, 1
      %s412 = scalar_select %p411, %s20, 1
      %p413 = scmp.lt.s32.totalorder %s410, 7
      %s414 = scalar_select %p413, %s410, 7
      %s415 = smul.addr %s412, 8
      %s416 = sadd.s32 %s414, %s415
      %s417 = smul.addr %s416, 8
      %s418 = scalar_lea.vmem %s4, %s417
      // Predicated region
      $region33: #{encoder_block_forward.5} parent=31 // pred_check
        %p419 = pneg %p118
      $region34: #{encoder_block_forward.5} parent=31 // pred_check_branch
        %421 = sbr.rel (%p419) target = $region36
      $region35: #{encoder_block_forward.5} parent=31 // pred_region
        %s422 = smul.u32 8, %s21
      $region36: #{encoder_block_forward.5} parent=31 // pred_fallthru
        _
      // Predicated region
      $region37: #{encoder_block_forward.5} parent=31 // pred_check
        %p423 = pneg %p146
      $region38: #{encoder_block_forward.5} parent=31 // pred_check_branch
        %425 = sbr.rel (%p423) target = $region40
      $region39: #{encoder_block_forward.5} parent=31 // pred_region
        %s426 = smul.u32 4, %s21
      $region40: #{encoder_block_forward.5} parent=31 // pred_fallthru
        _
    $region32: #{encoder_block_forward.5} parent=5 // pred_fallthru
      _
    %p427 = scmp.le.s32.totalorder 2, %s11
    // Predicated region
    $region41: #{encoder_block_forward.5} parent=5 // pred_check
      %p428 = pneg %p427
    $region42: #{encoder_block_forward.5} parent=5 // pred_check_branch
      %430 = sbr.rel (%p428) target = $region44
    $region43: #{encoder_block_forward.5} parent=5 // pred_region
      %s431 = ssub.s32 %s11, 2
      // Predicated region
      $region45: #{encoder_block_forward.5} parent=43 // pred_check
        %p432 = pneg %p124
      $region46: #{encoder_block_forward.5} parent=43 // pred_check_branch
        %434 = sbr.rel (%p432) target = $region48
      $region47: #{encoder_block_forward.5} parent=43 // pred_region
        %s435 = smul.u32 8, %s23
        %p436 = scmp.lt.s32.totalorder %s22, 1
        %s437 = scalar_select %p436, %s22, 1
        %p438 = scmp.lt.s32.totalorder %s435, 15
        %s439 = scalar_select %p438, %s435, 15
        %s440 = smul.addr %s439, 2
        %s441 = smul.addr %s437, 32
        %s442 = sadd.s32 %s440, %s441
        %s443 = smul.addr %s442, 8
        %s444 = scalar_lea.vmem %s3, %s443
      $region48: #{encoder_block_forward.5} parent=43 // pred_fallthru
        _
      // Predicated region
      $region49: #{encoder_block_forward.5} parent=43 // pred_check
        %p445 = pneg %p152
      $region50: #{encoder_block_forward.5} parent=43 // pred_check_branch
        %447 = sbr.rel (%p445) target = $region52
      $region51: #{encoder_block_forward.5} parent=43 // pred_region
        %s448 = smul.u32 4, %s23
        %p449 = scmp.lt.s32.totalorder %s22, 1
        %s450 = scalar_select %p449, %s22, 1
        %p451 = scmp.lt.s32.totalorder %s448, 7
        %s452 = scalar_select %p451, %s448, 7
        %s453 = smul.addr %s450, 8
        %s454 = sadd.s32 %s452, %s453
        %s455 = smul.addr %s454, 8
        %s456 = scalar_lea.vmem %s4, %s455
      $region52: #{encoder_block_forward.5} parent=43 // pred_fallthru
        _
    $region44: #{encoder_block_forward.5} parent=5 // pred_fallthru
      _
  $region6: #{encoder_block_forward.5} parent=0 // loop_footer
    %s15 = sadd.s32 1, %s11
  $region7: #{encoder_block_forward.5} parent=0 // loop_footer_branch
    %10 = sbr.rel target = $region3
  $region8: #{encoder_block_forward.5} parent=0 // loop_exit
    _

// kernel: encoder_block_forward.3
$region0: #{encoder_block_forward.3}
  #allocation0 [shape = 'u32[]', space=smem, size = 0x4, offset = 0x4, fixed_abs, tag = 'smem constant byte address 0x4 - core index']
  #allocation1 [shape = 'u32[144,128]{1,0:T(1,128)}', space=vmem, size = 0x12000, scoped, tag = 'internal scratch']
  #allocation2 [shape = 'f32[18,18,4]{2,1,0:T(8,128)}', space=vmem, size = 0x36000, scoped, tag = 'scratch operand']
  #allocation3 [shape = 'f32[8,16,36]{2,1,0:T(8,128)}', space=vmem, size = 0x10000, scoped, tag = 'scratch operand']
  %s0 = inlined_call_operand.vmem [shape: f32[2,16,16,4], index: 0, kind: input, shape index: {}]
  %s1 = inlined_call_operand.vmem [shape: bf16[36,8], index: 1, kind: input, shape index: {}]
  %s2 = inlined_call_operand.vmem [shape: f32[1,8], index: 2, kind: input, shape index: {}]
  %s3 = inlined_call_operand.vmem [shape: f32[1,4], index: 3, kind: input, shape index: {}]
  %s4 = inlined_call_operand.vmem [shape: f32[1,4], index: 4, kind: input, shape index: {}]
  %s5 = inlined_call_operand.vmem [shape: f32[2,16,16,8], index: 5, kind: output, shape index: {0}]
  %s6 = inlined_call_operand.vmem [shape: f32[2,2,2,8], index: 6, kind: output, shape index: {1}]
  %7 = xla_tuple %s5, %s6
  %s8 = sld [smem:[#allocation0]]
  $region65: #{encoder_block_forward.3} parent=0
    _
  %s10 = ssub.s32 1, %s8
  %s11 = scalar_select 0, %s10, %s8
  loop: start=0, step=1, limit=6
  $region2: #{encoder_block_forward.3} parent=0 // loop_pre_header
    _
  $region3: #{encoder_block_forward.3} parent=0 // loop_header
    %s13 = sphi 0, %s17
    %p14 = scmp.ge.s32.totalorder %s13, 6
    %s20 = sphi 0, %s32
    %s21 = sphi 0, %s28
    %s22 = sphi 0, %s20
    %s23 = sphi 0, %s21
    %s24 = sphi 0, %s22
    %s25 = sphi 0, %s23
    %s35 = sphi 0, %s37
    %s38 = sphi 0, %s35
    %s39 = sphi 0, %s38
    %s55 = sphi 0, %s39
    %s59 = sphi 0, %s59
    %s61 = sphi 0, %s59
    %s62 = sphi 0, %s61
    %s76 = sphi 0, %s62
    %s80 = sphi 0, %s80
    %s82 = sphi 0, %s80
    %s83 = sphi 0, %s82
    %s97 = sphi 0, %s83
    %s101 = sphi 0, %s101
    %s103 = sphi 0, %s101
    %s104 = sphi 0, %s103
    %s118 = sphi 0, %s104
    %s122 = sphi 0, %s122
    %s124 = sphi 0, %s122
    %s125 = sphi 0, %s124
    %s139 = sphi 0, %s125
    %s147 = sphi 0, %s149
    %s150 = sphi 0, %s147
    %s151 = sphi 0, %s150
    %s167 = sphi 0, %s151
    %s175 = sphi 0, %s177
    %s178 = sphi 0, %s175
    %s179 = sphi 0, %s178
    %s195 = sphi 0, %s179
  $region4: #{encoder_block_forward.3} parent=0 // loop_header_branch
    %16 = sbr.rel (%p14) target = $region8
  $region5: #{encoder_block_forward.3} parent=0 // loop_body
    %s18 = ssub.s32 %s13, 1
    %s19 = ssub.s32 %s13, 2
    %s26 = sadd.s32 1, %s21
    %p27 = scmp.ge.s32.totalorder %s26, 2
    %s28 = scalar_select %p27, 0, %s26
    %s29 = sadd.s32 1, %s20
    %s30 = scalar_select %p27, %s29, %s20
    %p31 = scmp.ge.s32.totalorder %s30, 2
    %s32 = scalar_select %p31, 0, %s30
    %s33 = ssub.s32 %s20, %s32
    %p34 = scmp.eq.s32.totalorder %s33, 0
    %s36 = sadd.s32 %s35, 1
    %s37 = scalar_select %p34, %s35, %s36
    %p40 = pneg %p34
    %p41 = scmp.eq.s32.totalorder %s13, 3
    %p42 = por %p40, %p41
    %p43 = scmp.ne.s32.totalorder %s35, %s38
    %p44 = scmp.eq.s32.totalorder %s13, 0
    %p45 = por %p43, %p44
    %p46 = scmp.ne.s32.totalorder %s35, %s38
    %p47 = scmp.eq.s32.totalorder %s18, 3
    %p48 = por %p46, %p47
    %p49 = scmp.ne.s32.totalorder %s38, %s39
    %p50 = scmp.eq.s32.totalorder %s18, 0
    %p51 = por %p49, %p50
    %p52 = scmp.ne.s32.totalorder %s38, %s39
    %p53 = scmp.eq.s32.totalorder %s19, 3
    %p54 = por %p52, %p53
    %p56 = scmp.ne.s32.totalorder %s39, %s55
    %p57 = scmp.eq.s32.totalorder %s19, 0
    %p58 = por %p56, %p57
    %s60 = sadd.s32 %s59, 1
    %p63 = scmp.eq.s32.totalorder %s13, 3
    %p64 = scmp.ne.s32.totalorder %s59, %s61
    %p65 = scmp.eq.s32.totalorder %s13, 0
    %p66 = por %p64, %p65
    %p67 = scmp.ne.s32.totalorder %s59, %s61
    %p68 = scmp.eq.s32.totalorder %s18, 3
    %p69 = por %p67, %p68
    %p70 = scmp.ne.s32.totalorder %s61, %s62
    %p71 = scmp.eq.s32.totalorder %s18, 0
    %p72 = por %p70, %p71
    %p73 = scmp.ne.s32.totalorder %s61, %s62
    %p74 = scmp.eq.s32.totalorder %s19, 3
    %p75 = por %p73, %p74
    %p77 = scmp.ne.s32.totalorder %s62, %s76
    %p78 = scmp.eq.s32.totalorder %s19, 0
    %p79 = por %p77, %p78
    %s81 = sadd.s32 %s80, 1
    %p84 = scmp.eq.s32.totalorder %s13, 3
    %p85 = scmp.ne.s32.totalorder %s80, %s82
    %p86 = scmp.eq.s32.totalorder %s13, 0
    %p87 = por %p85, %p86
    %p88 = scmp.ne.s32.totalorder %s80, %s82
    %p89 = scmp.eq.s32.totalorder %s18, 3
    %p90 = por %p88, %p89
    %p91 = scmp.ne.s32.totalorder %s82, %s83
    %p92 = scmp.eq.s32.totalorder %s18, 0
    %p93 = por %p91, %p92
    %p94 = scmp.ne.s32.totalorder %s82, %s83
    %p95 = scmp.eq.s32.totalorder %s19, 3
    %p96 = por %p94, %p95
    %p98 = scmp.ne.s32.totalorder %s83, %s97
    %p99 = scmp.eq.s32.totalorder %s19, 0
    %p100 = por %p98, %p99
    %s102 = sadd.s32 %s101, 1
    %p105 = scmp.eq.s32.totalorder %s13, 3
    %p106 = scmp.ne.s32.totalorder %s101, %s103
    %p107 = scmp.eq.s32.totalorder %s13, 0
    %p108 = por %p106, %p107
    %p109 = scmp.ne.s32.totalorder %s101, %s103
    %p110 = scmp.eq.s32.totalorder %s18, 3
    %p111 = por %p109, %p110
    %p112 = scmp.ne.s32.totalorder %s103, %s104
    %p113 = scmp.eq.s32.totalorder %s18, 0
    %p114 = por %p112, %p113
    %p115 = scmp.ne.s32.totalorder %s103, %s104
    %p116 = scmp.eq.s32.totalorder %s19, 3
    %p117 = por %p115, %p116
    %p119 = scmp.ne.s32.totalorder %s104, %s118
    %p120 = scmp.eq.s32.totalorder %s19, 0
    %p121 = por %p119, %p120
    %s123 = sadd.s32 %s122, 1
    %p126 = scmp.eq.s32.totalorder %s13, 3
    %p127 = scmp.ne.s32.totalorder %s122, %s124
    %p128 = scmp.eq.s32.totalorder %s13, 0
    %p129 = por %p127, %p128
    %p130 = scmp.ne.s32.totalorder %s122, %s124
    %p131 = scmp.eq.s32.totalorder %s18, 3
    %p132 = por %p130, %p131
    %p133 = scmp.ne.s32.totalorder %s124, %s125
    %p134 = scmp.eq.s32.totalorder %s18, 0
    %p135 = por %p133, %p134
    %p136 = scmp.ne.s32.totalorder %s124, %s125
    %p137 = scmp.eq.s32.totalorder %s19, 3
    %p138 = por %p136, %p137
    %p140 = scmp.ne.s32.totalorder %s125, %s139
    %p141 = scmp.eq.s32.totalorder %s19, 0
    %p142 = por %p140, %p141
    %s143 = ssub.s32 %s20, %s32
    %s144 = ssub.s32 %s21, %s28
    %s145 = sor.u32 %s143, %s144
    %p146 = scmp.eq.s32.totalorder %s145, 0
    %s148 = sadd.s32 %s147, 1
    %s149 = scalar_select %p146, %s147, %s148
    %p152 = pneg %p146
    %p153 = scmp.eq.s32.totalorder %s13, 3
    %p154 = por %p152, %p153
    %p155 = scmp.ne.s32.totalorder %s147, %s150
    %p156 = scmp.eq.s32.totalorder %s13, 0
    %p157 = por %p155, %p156
    %p158 = scmp.ne.s32.totalorder %s147, %s150
    %p159 = scmp.eq.s32.totalorder %s18, 3
    %p160 = por %p158, %p159
    %p161 = scmp.ne.s32.totalorder %s150, %s151
    %p162 = scmp.eq.s32.totalorder %s18, 0
    %p163 = por %p161, %p162
    %p164 = scmp.ne.s32.totalorder %s150, %s151
    %p165 = scmp.eq.s32.totalorder %s19, 3
    %p166 = por %p164, %p165
    %p168 = scmp.ne.s32.totalorder %s151, %s167
    %p169 = scmp.eq.s32.totalorder %s19, 0
    %p170 = por %p168, %p169
    %s171 = ssub.s32 %s20, %s32
    %s172 = ssub.s32 %s21, %s28
    %s173 = sor.u32 %s171, %s172
    %p174 = scmp.eq.s32.totalorder %s173, 0
    %s176 = sadd.s32 %s175, 1
    %s177 = scalar_select %p174, %s175, %s176
    %p180 = pneg %p174
    %p181 = scmp.eq.s32.totalorder %s13, 3
    %p182 = por %p180, %p181
    %p183 = scmp.ne.s32.totalorder %s175, %s178
    %p184 = scmp.eq.s32.totalorder %s13, 0
    %p185 = por %p183, %p184
    %p186 = scmp.ne.s32.totalorder %s175, %s178
    %p187 = scmp.eq.s32.totalorder %s18, 3
    %p188 = por %p186, %p187
    %p189 = scmp.ne.s32.totalorder %s178, %s179
    %p190 = scmp.eq.s32.totalorder %s18, 0
    %p191 = por %p189, %p190
    %p192 = scmp.ne.s32.totalorder %s178, %s179
    %p193 = scmp.eq.s32.totalorder %s19, 3
    %p194 = por %p192, %p193
    %p196 = scmp.ne.s32.totalorder %s179, %s195
    %p197 = scmp.eq.s32.totalorder %s19, 0
    %p198 = por %p196, %p197
    %p199 = scmp.le.s32.totalorder 1, %s13
    %p200 = scmp.lt.s32.totalorder %s13, 5
    %p201 = pnand %p199, %p200
    %p202 = pneg %p201
    // Predicated region
    $region9: #{encoder_block_forward.3} parent=5 // pred_check
      _
    $region10: #{encoder_block_forward.3} parent=5 // pred_check_branch
      %204 = sbr.rel (%p201) target = $region12
    $region11: #{encoder_block_forward.3} parent=5 // pred_region
      %s205 = ssub.s32 %s13, 1
      // Predicated region
      $region13: #{encoder_block_forward.3} parent=11 // pred_check
        %p206 = pneg %p72
      $region14: #{encoder_block_forward.3} parent=11 // pred_check_branch
        %208 = sbr.rel (%p206) target = $region16
      $region15: #{encoder_block_forward.3} parent=11 // pred_region
        _
      $region16: #{encoder_block_forward.3} parent=11 // pred_fallthru
        _
      // Predicated region
      $region17: #{encoder_block_forward.3} parent=11 // pred_check
        %p209 = pneg %p93
      $region18: #{encoder_block_forward.3} parent=11 // pred_check_branch
        %211 = sbr.rel (%p209) target = $region20
      $region19: #{encoder_block_forward.3} parent=11 // pred_region
        _
      $region20: #{encoder_block_forward.3} parent=11 // pred_fallthru
        _
      // Predicated region
      $region21: #{encoder_block_forward.3} parent=11 // pred_check
        %p212 = pneg %p114
      $region22: #{encoder_block_forward.3} parent=11 // pred_check_branch
        %214 = sbr.rel (%p212) target = $region24
      $region23: #{encoder_block_forward.3} parent=11 // pred_region
        _
      $region24: #{encoder_block_forward.3} parent=11 // pred_fallthru
        _
      // Predicated region
      $region25: #{encoder_block_forward.3} parent=11 // pred_check
        %p215 = pneg %p135
      $region26: #{encoder_block_forward.3} parent=11 // pred_check_branch
        %217 = sbr.rel (%p215) target = $region28
      $region27: #{encoder_block_forward.3} parent=11 // pred_region
        _
      $region28: #{encoder_block_forward.3} parent=11 // pred_fallthru
        _
    $region12: #{encoder_block_forward.3} parent=5 // pred_fallthru
      _
    %p218 = scmp.lt.s32.totalorder %s13, 4
    // Predicated region
    $region29: #{encoder_block_forward.3} parent=5 // pred_check
      %p219 = pneg %p218
    $region30: #{encoder_block_forward.3} parent=5 // pred_check_branch
      %221 = sbr.rel (%p219) target = $region32
    $region31: #{encoder_block_forward.3} parent=5 // pred_region
      // Predicated region
      $region33: #{encoder_block_forward.3} parent=31 // pred_check
        %p222 = pneg %p45
      $region34: #{encoder_block_forward.3} parent=31 // pred_check_branch
        %224 = sbr.rel (%p222) target = $region36
      $region35: #{encoder_block_forward.3} parent=31 // pred_region
        %p225 = scmp.lt.s32.totalorder %s20, 1
        %s226 = scalar_select %p225, %s20, 1
        %s227 = smul.addr %s226, 32
        %s228 = smul.addr %s227, 8
        %s229 = scalar_lea.vmem %s0, %s228
      $region36: #{encoder_block_forward.3} parent=31 // pred_fallthru
        _
    $region32: #{encoder_block_forward.3} parent=5 // pred_fallthru
      _
    %p230 = scmp.le.s32.totalorder 1, %s13
    %p231 = scmp.lt.s32.totalorder %s13, 5
    %p232 = pnand %p230, %p231
    %p233 = pneg %p232
    // Predicated region
    $region37: #{encoder_block_forward.3} parent=5 // pred_check
      _
    $region38: #{encoder_block_forward.3} parent=5 // pred_check_branch
      %235 = sbr.rel (%p232) target = $region40
    $region39: #{encoder_block_forward.3} parent=5 // pred_region
      %s236 = ssub.s32 %s13, 1
      %p237 = scmp.lt.s32.totalorder %s22, 1
      %s238 = scalar_select %p237, %s22, 1
      %s239 = smul.addr %s238, 32
      %s240 = smul.addr %s239, 8
      %s241 = scalar_lea.vmem %s0, %s240
      %p242 = pneg %p51
      %p243 = pneg %p48
      %p244 = pneg %p72
      %p245 = pneg %p69
      %p246 = pneg %p93
      %p247 = pneg %p90
      %p248 = pneg %p114
      %p249 = pneg %p111
      %p250 = pneg %p135
      %p251 = pneg %p132
      %p252 = pneg %p163
      %p253 = pneg %p160
      %s254 = smul.u32 8, %s23
      %p255 = scmp.lt.s32.totalorder %s22, 1
      %s256 = scalar_select %p255, %s22, 1
      %p257 = scmp.lt.s32.totalorder %s254, 15
      %s258 = scalar_select %p257, %s254, 15
      %s259 = smul.addr %s258, 2
      %s260 = smul.addr %s256, 32
      %s261 = sadd.s32 %s259, %s260
      %s262 = smul.addr %s261, 8
      %s263 = scalar_lea.vmem %s5, %s262
      %p264 = pneg %p191
      %p265 = pneg %p188
      %p266 = scmp.lt.s32.totalorder %s22, 1
      %s267 = scalar_select %p266, %s22, 1
      %p268 = scmp.lt.s32.totalorder %s23, 1
      %s269 = scalar_select %p268, %s23, 1
      %s270 = smul.addr %s267, 2
      %s271 = sadd.s32 %s269, %s270
      %s272 = smul.addr %s271, 2
      %s273 = scalar_lea.vmem %s6, %s272
      %p274 = scmp.lt.s32.totalorder %s22, 1
      %s275 = scalar_select %p274, %s22, 1
      %s276 = smul.addr %s275, 32
      %s277 = smul.addr %s276, 8
      %s278 = scalar_lea.vmem %s0, %s277
      %s279 = smul.u32 8, %s23
      %p280 = scmp.lt.s32.totalorder %s22, 1
      %s281 = scalar_select %p280, %s22, 1
      %p282 = scmp.lt.s32.totalorder %s279, 15
      %s283 = scalar_select %p282, %s279, 15
      %s284 = smul.addr %s283, 2
      %s285 = smul.addr %s281, 32
      %s286 = sadd.s32 %s284, %s285
      %s287 = smul.addr %s286, 8
      %s288 = scalar_lea.vmem %s5, %s287
      %s289 = smul.u32 8, %s23
      %p290 = scmp.lt.s32.totalorder %s22, 1
      %s291 = scalar_select %p290, %s22, 1
      %p292 = scmp.lt.s32.totalorder %s23, 1
      %s293 = scalar_select %p292, %s23, 1
      %s294 = smul.addr %s291, 2
      %s295 = sadd.s32 %s293, %s294
      %s296 = smul.addr %s295, 2
      %s297 = scalar_lea.vmem %s6, %s296
      %p299 = scmp.eq.s32.totalorder %s23, 0
      // Predicated region
      $region41: #{encoder_block_forward.3} parent=39 // pred_check
        %p300 = pneg %p299
      $region42: #{encoder_block_forward.3} parent=39 // pred_check_branch
        %302 = sbr.rel (%p300) target = $region44
      $region43: #{encoder_block_forward.3} parent=39 // pred_region
        %vm303 = vcmask 31744
        %304 = vst.msk [vmem:[#allocation2] sm:$0xff] %vm303, 0.0
        %305 = vst.msk [vmem:[#allocation2 + $0x8] sm:$0xff] %vm303, 0.0
        %vm306 = vcmask 25600
        %307 = vst.msk [vmem:[#allocation2 + $0x10] sm:$0x3] %vm306, 0.0
        %308 = vst.msk [vmem:[#allocation2 + $0x18] sm:$0xff] %vm303, 0.0
        %309 = vst.msk [vmem:[#allocation2 + $0x20] sm:$0xff] %vm303, 0.0
        %310 = vst.msk [vmem:[#allocation2 + $0x28] sm:$0x3] %vm306, 0.0
        %311 = vst.msk [vmem:[#allocation2 + $0x30] sm:$0xff] %vm303, 0.0
        %312 = vst.msk [vmem:[#allocation2 + $0x38] sm:$0xff] %vm303, 0.0
        %313 = vst.msk [vmem:[#allocation2 + $0x40] sm:$0x3] %vm306, 0.0
        %314 = vst.msk [vmem:[#allocation2 + $0x48] sm:$0xff] %vm303, 0.0
        %315 = vst.msk [vmem:[#allocation2 + $0x50] sm:$0xff] %vm303, 0.0
        %316 = vst.msk [vmem:[#allocation2 + $0x58] sm:$0x3] %vm306, 0.0
        %317 = vst.msk [vmem:[#allocation2 + $0x60] sm:$0xff] %vm303, 0.0
        %318 = vst.msk [vmem:[#allocation2 + $0x68] sm:$0xff] %vm303, 0.0
        %319 = vst.msk [vmem:[#allocation2 + $0x70] sm:$0x3] %vm306, 0.0
        %320 = vst.msk [vmem:[#allocation2 + $0x78] sm:$0xff] %vm303, 0.0
        %321 = vst.msk [vmem:[#allocation2 + $0x80] sm:$0xff] %vm303, 0.0
        %322 = vst.msk [vmem:[#allocation2 + $0x88] sm:$0x3] %vm306, 0.0
        %323 = vst.msk [vmem:[#allocation2 + $0x90] sm:$0xff] %vm303, 0.0
        %324 = vst.msk [vmem:[#allocation2 + $0x98] sm:$0xff] %vm303, 0.0
        %325 = vst.msk [vmem:[#allocation2 + $0xa0] sm:$0x3] %vm306, 0.0
        %326 = vst.msk [vmem:[#allocation2 + $0xa8] sm:$0xff] %vm303, 0.0
        %327 = vst.msk [vmem:[#allocation2 + $0xb0] sm:$0xff] %vm303, 0.0
        %328 = vst.msk [vmem:[#allocation2 + $0xb8] sm:$0x3] %vm306, 0.0
        %329 = vst.msk [vmem:[#allocation2 + $0xc0] sm:$0xff] %vm303, 0.0
        %330 = vst.msk [vmem:[#allocation2 + $0xc8] sm:$0xff] %vm303, 0.0
        %331 = vst.msk [vmem:[#allocation2 + $0xd0] sm:$0x3] %vm306, 0.0
        %332 = vst.msk [vmem:[#allocation2 + $0xd8] sm:$0xff] %vm303, 0.0
        %333 = vst.msk [vmem:[#allocation2 + $0xe0] sm:$0xff] %vm303, 0.0
        %334 = vst.msk [vmem:[#allocation2 + $0xe8] sm:$0x3] %vm306, 0.0
        %335 = vst.msk [vmem:[#allocation2 + $0xf0] sm:$0xff] %vm303, 0.0
        %336 = vst.msk [vmem:[#allocation2 + $0xf8] sm:$0xff] %vm303, 0.0
        %337 = vst.msk [vmem:[#allocation2 + $0x100] sm:$0x3] %vm306, 0.0
        %338 = vst.msk [vmem:[#allocation2 + $0x108] sm:$0xff] %vm303, 0.0
        %339 = vst.msk [vmem:[#allocation2 + $0x110] sm:$0xff] %vm303, 0.0
        %340 = vst.msk [vmem:[#allocation2 + $0x118] sm:$0x3] %vm306, 0.0
        %341 = vst.msk [vmem:[#allocation2 + $0x120] sm:$0xff] %vm303, 0.0
        %342 = vst.msk [vmem:[#allocation2 + $0x128] sm:$0xff] %vm303, 0.0
        %343 = vst.msk [vmem:[#allocation2 + $0x130] sm:$0x3] %vm306, 0.0
        %344 = vst.msk [vmem:[#allocation2 + $0x138] sm:$0xff] %vm303, 0.0
        %345 = vst.msk [vmem:[#allocation2 + $0x140] sm:$0xff] %vm303, 0.0
        %346 = vst.msk [vmem:[#allocation2 + $0x148] sm:$0x3] %vm306, 0.0
        %347 = vst.msk [vmem:[#allocation2 + $0x150] sm:$0xff] %vm303, 0.0
        %348 = vst.msk [vmem:[#allocation2 + $0x158] sm:$0xff] %vm303, 0.0
        %349 = vst.msk [vmem:[#allocation2 + $0x160] sm:$0x3] %vm306, 0.0
        %350 = vst.msk [vmem:[#allocation2 + $0x168] sm:$0xff] %vm303, 0.0
        %351 = vst.msk [vmem:[#allocation2 + $0x170] sm:$0xff] %vm303, 0.0
        %352 = vst.msk [vmem:[#allocation2 + $0x178] sm:$0x3] %vm306, 0.0
        %353 = vst.msk [vmem:[#allocation2 + $0x180] sm:$0xff] %vm303, 0.0
        %354 = vst.msk [vmem:[#allocation2 + $0x188] sm:$0xff] %vm303, 0.0
        %355 = vst.msk [vmem:[#allocation2 + $0x190] sm:$0x3] %vm306, 0.0
        %356 = vst.msk [vmem:[#allocation2 + $0x198] sm:$0xff] %vm303, 0.0
        %357 = vst.msk [vmem:[#allocation2 + $0x1a0] sm:$0xff] %vm303, 0.0
        %358 = vst.msk [vmem:[#allocation2 + $0x1a8] sm:$0x3] %vm306, 0.0
        %v359 = vld [vmem:[%s278] sm:$0xff]
        %v360 = vld [vmem:[%s278 + $0x8] sm:$0xff]
        %v361 = vld [vmem:[%s278 + $0x10] sm:$0xff]
        %v362 = vld [vmem:[%s278 + $0x18] sm:$0xff]
        %v363 = vld [vmem:[%s278 + $0x20] sm:$0xff]
        %v364 = vld [vmem:[%s278 + $0x28] sm:$0xff]
        %v365 = vld [vmem:[%s278 + $0x30] sm:$0xff]
        %v366 = vld [vmem:[%s278 + $0x38] sm:$0xff]
        %v367 = vld [vmem:[%s278 + $0x40] sm:$0xff]
        %v368 = vld [vmem:[%s278 + $0x48] sm:$0xff]
        %v369 = vld [vmem:[%s278 + $0x50] sm:$0xff]
        %v370 = vld [vmem:[%s278 + $0x58] sm:$0xff]
        %v371 = vld [vmem:[%s278 + $0x60] sm:$0xff]
        %v372 = vld [vmem:[%s278 + $0x68] sm:$0xff]
        %v373 = vld [vmem:[%s278 + $0x70] sm:$0xff]
        %v374 = vld [vmem:[%s278 + $0x78] sm:$0xff]
        %v375 = vld [vmem:[%s278 + $0x80] sm:$0xff]
        %v376 = vld [vmem:[%s278 + $0x88] sm:$0xff]
        %v377 = vld [vmem:[%s278 + $0x90] sm:$0xff]
        %v378 = vld [vmem:[%s278 + $0x98] sm:$0xff]
        %v379 = vld [vmem:[%s278 + $0xa0] sm:$0xff]
        %v380 = vld [vmem:[%s278 + $0xa8] sm:$0xff]
        %v381 = vld [vmem:[%s278 + $0xb0] sm:$0xff]
        %v382 = vld [vmem:[%s278 + $0xb8] sm:$0xff]
        %v383 = vld [vmem:[%s278 + $0xc0] sm:$0xff]
        %v384 = vld [vmem:[%s278 + $0xc8] sm:$0xff]
        %v385 = vld [vmem:[%s278 + $0xd0] sm:$0xff]
        %v386 = vld [vmem:[%s278 + $0xd8] sm:$0xff]
        %v387 = vld [vmem:[%s278 + $0xe0] sm:$0xff]
        %v388 = vld [vmem:[%s278 + $0xe8] sm:$0xff]
        %v389 = vld [vmem:[%s278 + $0xf0] sm:$0xff]
        %v390 = vld [vmem:[%s278 + $0xf8] sm:$0xff]
        %s391 = scalar_lea.vmem [#allocation2], 24
        %392 = vst.msk [vmem:[%s391 + $0x1] sm:$0xff] %vm303, %v359
        %393 = vst.msk [vmem:[%s391 + $0x9] sm:$0xff] %vm303, %v360
        %394 = vst.msk [vmem:[%s391 + $0x19] sm:$0xff] %vm303, %v361
        %395 = vst.msk [vmem:[%s391 + $0x21] sm:$0xff] %vm303, %v362
        %396 = vst.msk [vmem:[%s391 + $0x31] sm:$0xff] %vm303, %v363
        %397 = vst.msk [vmem:[%s391 + $0x39] sm:$0xff] %vm303, %v364
        %398 = vst.msk [vmem:[%s391 + $0x49] sm:$0xff] %vm303, %v365
        %399 = vst.msk [vmem:[%s391 + $0x51] sm:$0xff] %vm303, %v366
        %400 = vst.msk [vmem:[%s391 + $0x61] sm:$0xff] %vm303, %v367
        %401 = vst.msk [vmem:[%s391 + $0x69] sm:$0xff] %vm303, %v368
        %402 = vst.msk [vmem:[%s391 + $0x79] sm:$0xff] %vm303, %v369
        %403 = vst.msk [vmem:[%s391 + $0x81] sm:$0xff] %vm303, %v370
        %404 = vst.msk [vmem:[%s391 + $0x91] sm:$0xff] %vm303, %v371
        %405 = vst.msk [vmem:[%s391 + $0x99] sm:$0xff] %vm303, %v372
        %406 = vst.msk [vmem:[%s391 + $0xa9] sm:$0xff] %vm303, %v373
        %407 = vst.msk [vmem:[%s391 + $0xb1] sm:$0xff] %vm303, %v374
        %408 = vst.msk [vmem:[%s391 + $0xc1] sm:$0xff] %vm303, %v375
        %409 = vst.msk [vmem:[%s391 + $0xc9] sm:$0xff] %vm303, %v376
        %410 = vst.msk [vmem:[%s391 + $0xd9] sm:$0xff] %vm303, %v377
        %411 = vst.msk [vmem:[%s391 + $0xe1] sm:$0xff] %vm303, %v378
        %412 = vst.msk [vmem:[%s391 + $0xf1] sm:$0xff] %vm303, %v379
        %413 = vst.msk [vmem:[%s391 + $0xf9] sm:$0xff] %vm303, %v380
        %414 = vst.msk [vmem:[%s391 + $0x109] sm:$0xff] %vm303, %v381
        %415 = vst.msk [vmem:[%s391 + $0x111] sm:$0xff] %vm303, %v382
        %416 = vst.msk [vmem:[%s391 + $0x121] sm:$0xff] %vm303, %v383
        %417 = vst.msk [vmem:[%s391 + $0x129] sm:$0xff] %vm303, %v384
        %418 = vst.msk [vmem:[%s391 + $0x139] sm:$0xff] %vm303, %v385
        %419 = vst.msk [vmem:[%s391 + $0x141] sm:$0xff] %vm303, %v386
        %420 = vst.msk [vmem:[%s391 + $0x151] sm:$0xff] %vm303, %v387
        %421 = vst.msk [vmem:[%s391 + $0x159] sm:$0xff] %vm303, %v388
        %422 = vst.msk [vmem:[%s391 + $0x169] sm:$0xff] %vm303, %v389
        %423 = vst.msk [vmem:[%s391 + $0x171] sm:$0xff] %vm303, %v390
      $region44: #{encoder_block_forward.3} parent=39 // pred_fallthru
        _
      %s424 = smul.u32 %s23, 8
      %s425 = smul.u32 %s424, 24
      %s426 = scalar_lea.vmem [#allocation2], %s425
      %v427 = vld [vmem:[%s426] sm:$0xff]
      %v428 = vld [vmem:[%s426 + $0x8] sm:$0xff]
      %v429 = vld [vmem:[%s426 + $0x18] sm:$0xff]
      %v430 = vld [vmem:[%s426 + $0x20] sm:$0xff]
      %v431 = vld [vmem:[%s426 + $0x30] sm:$0xff]
      %v432 = vld [vmem:[%s426 + $0x38] sm:$0xff]
      %v433 = vld [vmem:[%s426 + $0x48] sm:$0xff]
      %v434 = vld [vmem:[%s426 + $0x50] sm:$0xff]
      %v435 = vld [vmem:[%s426 + $0x60] sm:$0xff]
      %v436 = vld [vmem:[%s426 + $0x68] sm:$0xff]
      %v437 = vld [vmem:[%s426 + $0x78] sm:$0xff]
      %v438 = vld [vmem:[%s426 + $0x80] sm:$0xff]
      %v439 = vld [vmem:[%s426 + $0x90] sm:$0xff]
      %v440 = vld [vmem:[%s426 + $0x98] sm:$0xff]
      %v441 = vld [vmem:[%s426 + $0xa8] sm:$0xff]
      %v442 = vld [vmem:[%s426 + $0xb0] sm:$0xff]
      %vm443 = vcmask 31744
      %444 = vst.msk [vmem:[#allocation3] sm:$0xff] %vm443, %v427
      %445 = vst.msk [vmem:[#allocation3 + $0x8] sm:$0xff] %vm443, %v428
      %446 = vst.msk [vmem:[#allocation3 + $0x10] sm:$0xff] %vm443, %v429
      %447 = vst.msk [vmem:[#allocation3 + $0x18] sm:$0xff] %vm443, %v430
      %448 = vst.msk [vmem:[#allocation3 + $0x20] sm:$0xff] %vm443, %v431
      %449 = vst.msk [vmem:[#allocation3 + $0x28] sm:$0xff] %vm443, %v432
      %450 = vst.msk [vmem:[#allocation3 + $0x30] sm:$0xff] %vm443, %v433
      %451 = vst.msk [vmem:[#allocation3 + $0x38] sm:$0xff] %vm443, %v434
      %452 = vst.msk [vmem:[#allocation3 + $0x40] sm:$0xff] %vm443, %v435
      %453 = vst.msk [vmem:[#allocation3 + $0x48] sm:$0xff] %vm443, %v436
      %454 = vst.msk [vmem:[#allocation3 + $0x50] sm:$0xff] %vm443, %v437
      %455 = vst.msk [vmem:[#allocation3 + $0x58] sm:$0xff] %vm443, %v438
      %456 = vst.msk [vmem:[#allocation3 + $0x60] sm:$0xff] %vm443, %v439
      %457 = vst.msk [vmem:[#allocation3 + $0x68] sm:$0xff] %vm443, %v440
      %458 = vst.msk [vmem:[#allocation3 + $0x70] sm:$0xff] %vm443, %v441
      %459 = vst.msk [vmem:[#allocation3 + $0x78] sm:$0xff] %vm443, %v442
      %v460 = vld [vmem:[%s426 + $0x1] sm:$0xff]
      %v461 = vld [vmem:[%s426 + $0x9] sm:$0xff]
      %v462 = vld [vmem:[%s426 + $0x19] sm:$0xff]
      %v463 = vld [vmem:[%s426 + $0x21] sm:$0xff]
      %v464 = vld [vmem:[%s426 + $0x31] sm:$0xff]
      %v465 = vld [vmem:[%s426 + $0x39] sm:$0xff]
      %v466 = vld [vmem:[%s426 + $0x49] sm:$0xff]
      %v467 = vld [vmem:[%s426 + $0x51] sm:$0xff]
      %v468 = vld [vmem:[%s426 + $0x61] sm:$0xff]
      %v469 = vld [vmem:[%s426 + $0x69] sm:$0xff]
      %v470 = vld [vmem:[%s426 + $0x79] sm:$0xff]
      %v471 = vld [vmem:[%s426 + $0x81] sm:$0xff]
      %v472 = vld [vmem:[%s426 + $0x91] sm:$0xff]
      %v473 = vld [vmem:[%s426 + $0x99] sm:$0xff]
      %v474 = vld [vmem:[%s426 + $0xa9] sm:$0xff]
      %v475 = vld [vmem:[%s426 + $0xb1] sm:$0xff]
      %492 = vrot.lane.b32.xlu0 %v460, 4
      %v493 = vpop.permute.xlu0 %492
      %494 = vrot.lane.b32.xlu0 %v461, 4
      %v495 = vpop.permute.xlu0 %494
      %496 = vrot.lane.b32.xlu0 %v462, 4
      %v497 = vpop.permute.xlu0 %496
      %498 = vrot.lane.b32.xlu0 %v463, 4
      %v499 = vpop.permute.xlu0 %498
      %500 = vrot.lane.b32.xlu0 %v464, 4
      %v501 = vpop.permute.xlu0 %500
      %502 = vrot.lane.b32.xlu0 %v465, 4
      %v503 = vpop.permute.xlu0 %502
      %504 = vrot.lane.b32.xlu0 %v466, 4
      %v505 = vpop.permute.xlu0 %504
      %506 = vrot.lane.b32.xlu0 %v467, 4
      %v507 = vpop.permute.xlu0 %506
      %508 = vrot.lane.b32.xlu0 %v468, 4
      %v509 = vpop.permute.xlu0 %508
      %510 = vrot.lane.b32.xlu0 %v469, 4
      %v511 = vpop.permute.xlu0 %510
      %512 = vrot.lane.b32.xlu0 %v470, 4
      %v513 = vpop.permute.xlu0 %512
      %514 = vrot.lane.b32.xlu0 %v471, 4
      %v515 = vpop.permute.xlu0 %514
      %516 = vrot.lane.b32.xlu0 %v472, 4
      %v517 = vpop.permute.xlu0 %516
      %518 = vrot.lane.b32.xlu0 %v473, 4
      %v519 = vpop.permute.xlu0 %518
      %520 = vrot.lane.b32.xlu0 %v474, 4
      %v521 = vpop.permute.xlu0 %520
      %522 = vrot.lane.b32.xlu0 %v475, 4
      %v523 = vpop.permute.xlu0 %522
      %vm540 = vcmask 64544
      %541 = vst.msk [vmem:[#allocation3] sm:$0xff] %vm540, %v493
      %542 = vst.msk [vmem:[#allocation3 + $0x8] sm:$0xff] %vm540, %v495
      %543 = vst.msk [vmem:[#allocation3 + $0x10] sm:$0xff] %vm540, %v497
      %544 = vst.msk [vmem:[#allocation3 + $0x18] sm:$0xff] %vm540, %v499
      %545 = vst.msk [vmem:[#allocation3 + $0x20] sm:$0xff] %vm540, %v501
      %546 = vst.msk [vmem:[#allocation3 + $0x28] sm:$0xff] %vm540, %v503
      %547 = vst.msk [vmem:[#allocation3 + $0x30] sm:$0xff] %vm540, %v505
      %548 = vst.msk [vmem:[#allocation3 + $0x38] sm:$0xff] %vm540, %v507
      %549 = vst.msk [vmem:[#allocation3 + $0x40] sm:$0xff] %vm540, %v509
      %550 = vst.msk [vmem:[#allocation3 + $0x48] sm:$0xff] %vm540, %v511
      %551 = vst.msk [vmem:[#allocation3 + $0x50] sm:$0xff] %vm540, %v513
      %552 = vst.msk [vmem:[#allocation3 + $0x58] sm:$0xff] %vm540, %v515
      %553 = vst.msk [vmem:[#allocation3 + $0x60] sm:$0xff] %vm540, %v517
      %554 = vst.msk [vmem:[#allocation3 + $0x68] sm:$0xff] %vm540, %v519
      %555 = vst.msk [vmem:[#allocation3 + $0x70] sm:$0xff] %vm540, %v521
      %556 = vst.msk [vmem:[#allocation3 + $0x78] sm:$0xff] %vm540, %v523
      %v557 = vld [vmem:[%s426 + $0x2] sm:$0xff]
      %v558 = vld [vmem:[%s426 + $0xa] sm:$0xff]
      %v559 = vld [vmem:[%s426 + $0x1a] sm:$0xff]
      %v560 = vld [vmem:[%s426 + $0x22] sm:$0xff]
      %v561 = vld [vmem:[%s426 + $0x32] sm:$0xff]
      %v562 = vld [vmem:[%s426 + $0x3a] sm:$0xff]
      %v563 = vld [vmem:[%s426 + $0x4a] sm:$0xff]
      %v564 = vld [vmem:[%s426 + $0x52] sm:$0xff]
      %v565 = vld [vmem:[%s426 + $0x62] sm:$0xff]
      %v566 = vld [vmem:[%s426 + $0x6a] sm:$0xff]
      %v567 = vld [vmem:[%s426 + $0x7a] sm:$0xff]
      %v568 = vld [vmem:[%s426 + $0x82] sm:$0xff]
      %v569 = vld [vmem:[%s426 + $0x92] sm:$0xff]
      %v570 = vld [vmem:[%s426 + $0x9a] sm:$0xff]
      %v571 = vld [vmem:[%s426 + $0xaa] sm:$0xff]
      %v572 = vld [vmem:[%s426 + $0xb2] sm:$0xff]
      %589 = vrot.lane.b32.xlu0 %v557, 8
      %v590 = vpop.permute.xlu0 %589
      %591 = vrot.lane.b32.xlu0 %v558, 8
      %v592 = vpop.permute.xlu0 %591
      %593 = vrot.lane.b32.xlu0 %v559, 8
      %v594 = vpop.permute.xlu0 %593
      %595 = vrot.lane.b32.xlu0 %v560, 8
      %v596 = vpop.permute.xlu0 %595
      %597 = vrot.lane.b32.xlu0 %v561, 8
      %v598 = vpop.permute.xlu0 %597
      %599 = vrot.lane.b32.xlu0 %v562, 8
      %v600 = vpop.permute.xlu0 %599
      %601 = vrot.lane.b32.xlu0 %v563, 8
      %v602 = vpop.permute.xlu0 %601
      %603 = vrot.lane.b32.xlu0 %v564, 8
      %v604 = vpop.permute.xlu0 %603
      %605 = vrot.lane.b32.xlu0 %v565, 8
      %v606 = vpop.permute.xlu0 %605
      %607 = vrot.lane.b32.xlu0 %v566, 8
      %v608 = vpop.permute.xlu0 %607
      %609 = vrot.lane.b32.xlu0 %v567, 8
      %v610 = vpop.permute.xlu0 %609
      %611 = vrot.lane.b32.xlu0 %v568, 8
      %v612 = vpop.permute.xlu0 %611
      %613 = vrot.lane.b32.xlu0 %v569, 8
      %v614 = vpop.permute.xlu0 %613
      %615 = vrot.lane.b32.xlu0 %v570, 8
      %v616 = vpop.permute.xlu0 %615
      %617 = vrot.lane.b32.xlu0 %v571, 8
      %v618 = vpop.permute.xlu0 %617
      %619 = vrot.lane.b32.xlu0 %v572, 8
      %v620 = vpop.permute.xlu0 %619
      %vm637 = vcmask 97344
      %638 = vst.msk [vmem:[#allocation3] sm:$0xff] %vm637, %v590
      %639 = vst.msk [vmem:[#allocation3 + $0x8] sm:$0xff] %vm637, %v592
      %640 = vst.msk [vmem:[#allocation3 + $0x10] sm:$0xff] %vm637, %v594
      %641 = vst.msk [vmem:[#allocation3 + $0x18] sm:$0xff] %vm637, %v596
      %642 = vst.msk [vmem:[#allocation3 + $0x20] sm:$0xff] %vm637, %v598
      %643 = vst.msk [vmem:[#allocation3 + $0x28] sm:$0xff] %vm637, %v600
      %644 = vst.msk [vmem:[#allocation3 + $0x30] sm:$0xff] %vm637, %v602
      %645 = vst.msk [vmem:[#allocation3 + $0x38] sm:$0xff] %vm637, %v604
      %646 = vst.msk [vmem:[#allocation3 + $0x40] sm:$0xff] %vm637, %v606
      %647 = vst.msk [vmem:[#allocation3 + $0x48] sm:$0xff] %vm637, %v608
      %648 = vst.msk [vmem:[#allocation3 + $0x50] sm:$0xff] %vm637, %v610
      %649 = vst.msk [vmem:[#allocation3 + $0x58] sm:$0xff] %vm637, %v612
      %650 = vst.msk [vmem:[#allocation3 + $0x60] sm:$0xff] %vm637, %v614
      %651 = vst.msk [vmem:[#allocation3 + $0x68] sm:$0xff] %vm637, %v616
      %652 = vst.msk [vmem:[#allocation3 + $0x70] sm:$0xff] %vm637, %v618
      %653 = vst.msk [vmem:[#allocation3 + $0x78] sm:$0xff] %vm637, %v620
      %s654 = sadd.s32 %s424, 1
      %s655 = smul.u32 %s654, 24
      %s656 = scalar_lea.vmem [#allocation2], %s655
      %v657 = vld [vmem:[%s656] sm:$0xff]
      %v658 = vld [vmem:[%s656 + $0x8] sm:$0xff]
      %v659 = vld [vmem:[%s656 + $0x18] sm:$0xff]
      %v660 = vld [vmem:[%s656 + $0x20] sm:$0xff]
      %v661 = vld [vmem:[%s656 + $0x30] sm:$0xff]
      %v662 = vld [vmem:[%s656 + $0x38] sm:$0xff]
      %v663 = vld [vmem:[%s656 + $0x48] sm:$0xff]
      %v664 = vld [vmem:[%s656 + $0x50] sm:$0xff]
      %v665 = vld [vmem:[%s656 + $0x60] sm:$0xff]
      %v666 = vld [vmem:[%s656 + $0x68] sm:$0xff]
      %v667 = vld [vmem:[%s656 + $0x78] sm:$0xff]
      %v668 = vld [vmem:[%s656 + $0x80] sm:$0xff]
      %v669 = vld [vmem:[%s656 + $0x90] sm:$0xff]
      %v670 = vld [vmem:[%s656 + $0x98] sm:$0xff]
      %v671 = vld [vmem:[%s656 + $0xa8] sm:$0xff]
      %v672 = vld [vmem:[%s656 + $0xb0] sm:$0xff]
      %689 = vrot.lane.b32.xlu0 %v657, 12
      %v690 = vpop.permute.xlu0 %689
      %691 = vrot.lane.b32.xlu0 %v658, 12
      %v692 = vpop.permute.xlu0 %691
      %693 = vrot.lane.b32.xlu0 %v659, 12
      %v694 = vpop.permute.xlu0 %693
      %695 = vrot.lane.b32.xlu0 %v660, 12
      %v696 = vpop.permute.xlu0 %695
      %697 = vrot.lane.b32.xlu0 %v661, 12
      %v698 = vpop.permute.xlu0 %697
      %699 = vrot.lane.b32.xlu0 %v662, 12
      %v700 = vpop.permute.xlu0 %699
      %701 = vrot.lane.b32.xlu0 %v663, 12
      %v702 = vpop.permute.xlu0 %701
      %703 = vrot.lane.b32.xlu0 %v664, 12
      %v704 = vpop.permute.xlu0 %703
      %705 = vrot.lane.b32.xlu0 %v665, 12
      %v706 = vpop.permute.xlu0 %705
      %707 = vrot.lane.b32.xlu0 %v666, 12
      %v708 = vpop.permute.xlu0 %707
      %709 = vrot.lane.b32.xlu0 %v667, 12
      %v710 = vpop.permute.xlu0 %709
      %711 = vrot.lane.b32.xlu0 %v668, 12
      %v712 = vpop.permute.xlu0 %711
      %713 = vrot.lane.b32.xlu0 %v669, 12
      %v714 = vpop.permute.xlu0 %713
      %715 = vrot.lane.b32.xlu0 %v670, 12
      %v716 = vpop.permute.xlu0 %715
      %717 = vrot.lane.b32.xlu0 %v671, 12
      %v718 = vpop.permute.xlu0 %717
      %719 = vrot.lane.b32.xlu0 %v672, 12
      %v720 = vpop.permute.xlu0 %719
      %vm737 = vcmask 130144
      %738 = vst.msk [vmem:[#allocation3] sm:$0xff] %vm737, %v690
      %739 = vst.msk [vmem:[#allocation3 + $0x8] sm:$0xff] %vm737, %v692
      %740 = vst.msk [vmem:[#allocation3 + $0x10] sm:$0xff] %vm737, %v694
      %741 = vst.msk [vmem:[#allocation3 + $0x18] sm:$0xff] %vm737, %v696
      %742 = vst.msk [vmem:[#allocation3 + $0x20] sm:$0xff] %vm737, %v698
      %743 = vst.msk [vmem:[#allocation3 + $0x28] sm:$0xff] %vm737, %v700
      %744 = vst.msk [vmem:[#allocation3 + $0x30] sm:$0xff] %vm737, %v702
      %745 = vst.msk [vmem:[#allocation3 + $0x38] sm:$0xff] %vm737, %v704
      %746 = vst.msk [vmem:[#allocation3 + $0x40] sm:$0xff] %vm737, %v706
      %747 = vst.msk [vmem:[#allocation3 + $0x48] sm:$0xff] %vm737, %v708
      %748 = vst.msk [vmem:[#allocation3 + $0x50] sm:$0xff] %vm737, %v710
      %749 = vst.msk [vmem:[#allocation3 + $0x58] sm:$0xff] %vm737, %v712
      %750 = vst.msk [vmem:[#allocation3 + $0x60] sm:$0xff] %vm737, %v714
      %751 = vst.msk [vmem:[#allocation3 + $0x68] sm:$0xff] %vm737, %v716
      %752 = vst.msk [vmem:[#allocation3 + $0x70] sm:$0xff] %vm737, %v718
      %753 = vst.msk [vmem:[#allocation3 + $0x78] sm:$0xff] %vm737, %v720
      %v754 = vld [vmem:[%s656 + $0x1] sm:$0xff]
      %v755 = vld [vmem:[%s656 + $0x9] sm:$0xff]
      %v756 = vld [vmem:[%s656 + $0x19] sm:$0xff]
      %v757 = vld [vmem:[%s656 + $0x21] sm:$0xff]
      %v758 = vld [vmem:[%s656 + $0x31] sm:$0xff]
      %v759 = vld [vmem:[%s656 + $0x39] sm:$0xff]
      %v760 = vld [vmem:[%s656 + $0x49] sm:$0xff]
      %v761 = vld [vmem:[%s656 + $0x51] sm:$0xff]
      %v762 = vld [vmem:[%s656 + $0x61] sm:$0xff]
      %v763 = vld [vmem:[%s656 + $0x69] sm:$0xff]
      %v764 = vld [vmem:[%s656 + $0x79] sm:$0xff]
      %v765 = vld [vmem:[%s656 + $0x81] sm:$0xff]
      %v766 = vld [vmem:[%s656 + $0x91] sm:$0xff]
      %v767 = vld [vmem:[%s656 + $0x99] sm:$0xff]
      %v768 = vld [vmem:[%s656 + $0xa9] sm:$0xff]
      %v769 = vld [vmem:[%s656 + $0xb1] sm:$0xff]
      %786 = vrot.lane.b32.xlu0 %v754, 16
      %v787 = vpop.permute.xlu0 %786
      %788 = vrot.lane.b32.xlu0 %v755, 16
      %v789 = vpop.permute.xlu0 %788
      %790 = vrot.lane.b32.xlu0 %v756, 16
      %v791 = vpop.permute.xlu0 %790
      %792 = vrot.lane.b32.xlu0 %v757, 16
      %v793 = vpop.permute.xlu0 %792
      %794 = vrot.lane.b32.xlu0 %v758, 16
      %v795 = vpop.permute.xlu0 %794
      %796 = vrot.lane.b32.xlu0 %v759, 16
      %v797 = vpop.permute.xlu0 %796
      %798 = vrot.lane.b32.xlu0 %v760, 16
      %v799 = vpop.permute.xlu0 %798
      %800 = vrot.lane.b32.xlu0 %v761, 16
      %v801 = vpop.permute.xlu0 %800
      %802 = vrot.lane.b32.xlu0 %v762, 16
      %v803 = vpop.permute.xlu0 %802
      %804 = vrot.lane.b32.xlu0 %v763, 16
      %v805 = vpop.permute.xlu0 %804
      %806 = vrot.lane.b32.xlu0 %v764, 16
      %v807 = vpop.permute.xlu0 %806
      %808 = vrot.lane.b32.xlu0 %v765, 16
      %v809 = vpop.permute.xlu0 %808
      %810 = vrot.lane.b32.xlu0 %v766, 16
      %v811 = vpop.permute.xlu0 %810
      %812 = vrot.lane.b32.xlu0 %v767, 16
      %v813 = vpop.permute.xlu0 %812
      %814 = vrot.lane.b32.xlu0 %v768, 16
      %v815 = vpop.permute.xlu0 %814
      %816 = vrot.lane.b32.xlu0 %v769, 16
      %v817 = vpop.permute.xlu0 %816
      %vm834 = vcmask 162944
      %835 = vst.msk [vmem:[#allocation3] sm:$0xff] %vm834, %v787
      %836 = vst.msk [vmem:[#allocation3 + $0x8] sm:$0xff] %vm834, %v789
      %837 = vst.msk [vmem:[#allocation3 + $0x10] sm:$0xff] %vm834, %v791
      %838 = vst.msk [vmem:[#allocation3 + $0x18] sm:$0xff] %vm834, %v793
      %839 = vst.msk [vmem:[#allocation3 + $0x20] sm:$0xff] %vm834, %v795
      %840 = vst.msk [vmem:[#allocation3 + $0x28] sm:$0xff] %vm834, %v797
      %841 = vst.msk [vmem:[#allocation3 + $0x30] sm:$0xff] %vm834, %v799
      %842 = vst.msk [vmem:[#allocation3 + $0x38] sm:$0xff] %vm834, %v801
      %843 = vst.msk [vmem:[#allocation3 + $0x40] sm:$0xff] %vm834, %v803
      %844 = vst.msk [vmem:[#allocation3 + $0x48] sm:$0xff] %vm834, %v805
      %845 = vst.msk [vmem:[#allocation3 + $0x50] sm:$0xff] %vm834, %v807
      %846 = vst.msk [vmem:[#allocation3 + $0x58] sm:$0xff] %vm834, %v809
      %847 = vst.msk [vmem:[#allocation3 + $0x60] sm:$0xff] %vm834, %v811
      %848 = vst.msk [vmem:[#allocation3 + $0x68] sm:$0xff] %vm834, %v813
      %849 = vst.msk [vmem:[#allocation3 + $0x70] sm:$0xff] %vm834, %v815
      %850 = vst.msk [vmem:[#allocation3 + $0x78] sm:$0xff] %vm834, %v817
      %v851 = vld [vmem:[%s656 + $0x2] sm:$0xff]
      %v852 = vld [vmem:[%s656 + $0xa] sm:$0xff]
      %v853 = vld [vmem:[%s656 + $0x1a] sm:$0xff]
      %v854 = vld [vmem:[%s656 + $0x22] sm:$0xff]
      %v855 = vld [vmem:[%s656 + $0x32] sm:$0xff]
      %v856 = vld [vmem:[%s656 + $0x3a] sm:$0xff]
      %v857 = vld [vmem:[%s656 + $0x4a] sm:$0xff]
      %v858 = vld [vmem:[%s656 + $0x52] sm:$0xff]
      %v859 = vld [vmem:[%s656 + $0x62] sm:$0xff]
      %v860 = vld [vmem:[%s656 + $0x6a] sm:$0xff]
      %v861 = vld [vmem:[%s656 + $0x7a] sm:$0xff]
      %v862 = vld [vmem:[%s656 + $0x82] sm:$0xff]
      %v863 = vld [vmem:[%s656 + $0x92] sm:$0xff]
      %v864 = vld [vmem:[%s656 + $0x9a] sm:$0xff]
      %v865 = vld [vmem:[%s656 + $0xaa] sm:$0xff]
      %v866 = vld [vmem:[%s656 + $0xb2] sm:$0xff]
      %883 = vrot.lane.b32.xlu0 %v851, 20
      %v884 = vpop.permute.xlu0 %883
      %885 = vrot.lane.b32.xlu0 %v852, 20
      %v886 = vpop.permute.xlu0 %885
      %887 = vrot.lane.b32.xlu0 %v853, 20
      %v888 = vpop.permute.xlu0 %887
      %889 = vrot.lane.b32.xlu0 %v854, 20
      %v890 = vpop.permute.xlu0 %889
      %891 = vrot.lane.b32.xlu0 %v855, 20
      %v892 = vpop.permute.xlu0 %891
      %893 = vrot.lane.b32.xlu0 %v856, 20
      %v894 = vpop.permute.xlu0 %893
      %895 = vrot.lane.b32.xlu0 %v857, 20
      %v896 = vpop.permute.xlu0 %895
      %897 = vrot.lane.b32.xlu0 %v858, 20
      %v898 = vpop.permute.xlu0 %897
      %899 = vrot.lane.b32.xlu0 %v859, 20
      %v900 = vpop.permute.xlu0 %899
      %901 = vrot.lane.b32.xlu0 %v860, 20
      %v902 = vpop.permute.xlu0 %901
      %903 = vrot.lane.b32.xlu0 %v861, 20
      %v904 = vpop.permute.xlu0 %903
      %905 = vrot.lane.b32.xlu0 %v862, 20
      %v906 = vpop.permute.xlu0 %905
      %907 = vrot.lane.b32.xlu0 %v863, 20
      %v908 = vpop.permute.xlu0 %907
      %909 = vrot.lane.b32.xlu0 %v864, 20
      %v910 = vpop.permute.xlu0 %909
      %911 = vrot.lane.b32.xlu0 %v865, 20
      %v912 = vpop.permute.xlu0 %911
      %913 = vrot.lane.b32.xlu0 %v866, 20
      %v914 = vpop.permute.xlu0 %913
      %vm931 = vcmask 195744
      %932 = vst.msk [vmem:[#allocation3] sm:$0xff] %vm931, %v884
      %933 = vst.msk [vmem:[#allocation3 + $0x8] sm:$0xff] %vm931, %v886
      %934 = vst.msk [vmem:[#allocation3 + $0x10] sm:$0xff] %vm931, %v888
      %935 = vst.msk [vmem:[#allocation3 + $0x18] sm:$0xff] %vm931, %v890
      %936 = vst.msk [vmem:[#allocation3 + $0x20] sm:$0xff] %vm931, %v892
      %937 = vst.msk [vmem:[#allocation3 + $0x28] sm:$0xff] %vm931, %v894
      %938 = vst.msk [vmem:[#allocation3 + $0x30] sm:$0xff] %vm931, %v896
      %939 = vst.msk [vmem:[#allocation3 + $0x38] sm:$0xff] %vm931, %v898
      %940 = vst.msk [vmem:[#allocation3 + $0x40] sm:$0xff] %vm931, %v900
      %941 = vst.msk [vmem:[#allocation3 + $0x48] sm:$0xff] %vm931, %v902
      %942 = vst.msk [vmem:[#allocation3 + $0x50] sm:$0xff] %vm931, %v904
      %943 = vst.msk [vmem:[#allocation3 + $0x58] sm:$0xff] %vm931, %v906
      %944 = vst.msk [vmem:[#allocation3 + $0x60] sm:$0xff] %vm931, %v908
      %945 = vst.msk [vmem:[#allocation3 + $0x68] sm:$0xff] %vm931, %v910
      %946 = vst.msk [vmem:[#allocation3 + $0x70] sm:$0xff] %vm931, %v912
      %947 = vst.msk [vmem:[#allocation3 + $0x78] sm:$0xff] %vm931, %v914
      %s948 = sadd.s32 %s424, 2
      %s949 = smul.u32 %s948, 24
      %s950 = scalar_lea.vmem [#allocation2], %s949
      %v951 = vld [vmem:[%s950] sm:$0xff]
      %v952 = vld [vmem:[%s950 + $0x8] sm:$0xff]
      %v953 = vld [vmem:[%s950 + $0x18] sm:$0xff]
      %v954 = vld [vmem:[%s950 + $0x20] sm:$0xff]
      %v955 = vld [vmem:[%s950 + $0x30] sm:$0xff]
      %v956 = vld [vmem:[%s950 + $0x38] sm:$0xff]
      %v957 = vld [vmem:[%s950 + $0x48] sm:$0xff]
      %v958 = vld [vmem:[%s950 + $0x50] sm:$0xff]
      %v959 = vld [vmem:[%s950 + $0x60] sm:$0xff]
      %v960 = vld [vmem:[%s950 + $0x68] sm:$0xff]
      %v961 = vld [vmem:[%s950 + $0x78] sm:$0xff]
      %v962 = vld [vmem:[%s950 + $0x80] sm:$0xff]
      %v963 = vld [vmem:[%s950 + $0x90] sm:$0xff]
      %v964 = vld [vmem:[%s950 + $0x98] sm:$0xff]
      %v965 = vld [vmem:[%s950 + $0xa8] sm:$0xff]
      %v966 = vld [vmem:[%s950 + $0xb0] sm:$0xff]
      %983 = vrot.lane.b32.xlu0 %v951, 24
      %v984 = vpop.permute.xlu0 %983
      %985 = vrot.lane.b32.xlu0 %v952, 24
      %v986 = vpop.permute.xlu0 %985
      %987 = vrot.lane.b32.xlu0 %v953, 24
      %v988 = vpop.permute.xlu0 %987
      %989 = vrot.lane.b32.xlu0 %v954, 24
      %v990 = vpop.permute.xlu0 %989
      %991 = vrot.lane.b32.xlu0 %v955, 24
      %v992 = vpop.permute.xlu0 %991
      %993 = vrot.lane.b32.xlu0 %v956, 24
      %v994 = vpop.permute.xlu0 %993
      %995 = vrot.lane.b32.xlu0 %v957, 24
      %v996 = vpop.permute.xlu0 %995
      %997 = vrot.lane.b32.xlu0 %v958, 24
      %v998 = vpop.permute.xlu0 %997
      %999 = vrot.lane.b32.xlu0 %v959, 24
      %v1000 = vpop.permute.xlu0 %999
      %1001 = vrot.lane.b32.xlu0 %v960, 24
      %v1002 = vpop.permute.xlu0 %1001
      %1003 = vrot.lane.b32.xlu0 %v961, 24
      %v1004 = vpop.permute.xlu0 %1003
      %1005 = vrot.lane.b32.xlu0 %v962, 24
      %v1006 = vpop.permute.xlu0 %1005
      %1007 = vrot.lane.b32.xlu0 %v963, 24
      %v1008 = vpop.permute.xlu0 %1007
      %1009 = vrot.lane.b32.xlu0 %v964, 24
      %v1010 = vpop.permute.xlu0 %1009
      %1011 = vrot.lane.b32.xlu0 %v965, 24
      %v1012 = vpop.permute.xlu0 %1011
      %1013 = vrot.lane.b32.xlu0 %v966, 24
      %v1014 = vpop.permute.xlu0 %1013
      %vm1031 = vcmask 228544
      %1032 = vst.msk [vmem:[#allocation3] sm:$0xff] %vm1031, %v984
      %1033 = vst.msk [vmem:[#allocation3 + $0x8] sm:$0xff] %vm1031, %v986
      %1034 = vst.msk [vmem:[#allocation3 + $0x10] sm:$0xff] %vm1031, %v988
      %1035 = vst.msk [vmem:[#allocation3 + $0x18] sm:$0xff] %vm1031, %v990
      %1036 = vst.msk [vmem:[#allocation3 + $0x20] sm:$0xff] %vm1031, %v992
      %1037 = vst.msk [vmem:[#allocation3 + $0x28] sm:$0xff] %vm1031, %v994
      %1038 = vst.msk [vmem:[#allocation3 + $0x30] sm:$0xff] %vm1031, %v996
      %1039 = vst.msk [vmem:[#allocation3 + $0x38] sm:$0xff] %vm1031, %v998
      %1040 = vst.msk [vmem:[#allocation3 + $0x40] sm:$0xff] %vm1031, %v1000
      %1041 = vst.msk [vmem:[#allocation3 + $0x48] sm:$0xff] %vm1031, %v1002
      %1042 = vst.msk [vmem:[#allocation3 + $0x50] sm:$0xff] %vm1031, %v1004
      %1043 = vst.msk [vmem:[#allocation3 + $0x58] sm:$0xff] %vm1031, %v1006
      %1044 = vst.msk [vmem:[#allocation3 + $0x60] sm:$0xff] %vm1031, %v1008
      %1045 = vst.msk [vmem:[#allocation3 + $0x68] sm:$0xff] %vm1031, %v1010
      %1046 = vst.msk [vmem:[#allocation3 + $0x70] sm:$0xff] %vm1031, %v1012
      %1047 = vst.msk [vmem:[#allocation3 + $0x78] sm:$0xff] %vm1031, %v1014
      %v1048 = vld [vmem:[%s950 + $0x1] sm:$0xff]
      %v1049 = vld [vmem:[%s950 + $0x9] sm:$0xff]
      %v1050 = vld [vmem:[%s950 + $0x19] sm:$0xff]
      %v1051 = vld [vmem:[%s950 + $0x21] sm:$0xff]
      %v1052 = vld [vmem:[%s950 + $0x31] sm:$0xff]
      %v1053 = vld [vmem:[%s950 + $0x39] sm:$0xff]
      %v1054 = vld [vmem:[%s950 + $0x49] sm:$0xff]
      %v1055 = vld [vmem:[%s950 + $0x51] sm:$0xff]
      %v1056 = vld [vmem:[%s950 + $0x61] sm:$0xff]
      %v1057 = vld [vmem:[%s950 + $0x69] sm:$0xff]
      %v1058 = vld [vmem:[%s950 + $0x79] sm:$0xff]
      %v1059 = vld [vmem:[%s950 + $0x81] sm:$0xff]
      %v1060 = vld [vmem:[%s950 + $0x91] sm:$0xff]
      %v1061 = vld [vmem:[%s950 + $0x99] sm:$0xff]
      %v1062 = vld [vmem:[%s950 + $0xa9] sm:$0xff]
      %v1063 = vld [vmem:[%s950 + $0xb1] sm:$0xff]
      %1080 = vrot.lane.b32.xlu0 %v1048, 28
      %v1081 = vpop.permute.xlu0 %1080
      %1082 = vrot.lane.b32.xlu0 %v1049, 28
      %v1083 = vpop.permute.xlu0 %1082
      %1084 = vrot.lane.b32.xlu0 %v1050, 28
      %v1085 = vpop.permute.xlu0 %1084
      %1086 = vrot.lane.b32.xlu0 %v1051, 28
      %v1087 = vpop.permute.xlu0 %1086
      %1088 = vrot.lane.b32.xlu0 %v1052, 28
      %v1089 = vpop.permute.xlu0 %1088
      %1090 = vrot.lane.b32.xlu0 %v1053, 28
      %v1091 = vpop.permute.xlu0 %1090
      %1092 = vrot.lane.b32.xlu0 %v1054, 28
      %v1093 = vpop.permute.xlu0 %1092
      %1094 = vrot.lane.b32.xlu0 %v1055, 28
      %v1095 = vpop.permute.xlu0 %1094
      %1096 = vrot.lane.b32.xlu0 %v1056, 28
      %v1097 = vpop.permute.xlu0 %1096
      %1098 = vrot.lane.b32.xlu0 %v1057, 28
      %v1099 = vpop.permute.xlu0 %1098
      %1100 = vrot.lane.b32.xlu0 %v1058, 28
      %v1101 = vpop.permute.xlu0 %1100
      %1102 = vrot.lane.b32.xlu0 %v1059, 28
      %v1103 = vpop.permute.xlu0 %1102
      %1104 = vrot.lane.b32.xlu0 %v1060, 28
      %v1105 = vpop.permute.xlu0 %1104
      %1106 = vrot.lane.b32.xlu0 %v1061, 28
      %v1107 = vpop.permute.xlu0 %1106
      %1108 = vrot.lane.b32.xlu0 %v1062, 28
      %v1109 = vpop.permute.xlu0 %1108
      %1110 = vrot.lane.b32.xlu0 %v1063, 28
      %v1111 = vpop.permute.xlu0 %1110
      %vm1128 = vcmask 261344
      %1129 = vst.msk [vmem:[#allocation3] sm:$0xff] %vm1128, %v1081
      %1130 = vst.msk [vmem:[#allocation3 + $0x8] sm:$0xff] %vm1128, %v1083
      %1131 = vst.msk [vmem:[#allocation3 + $0x10] sm:$0xff] %vm1128, %v1085
      %1132 = vst.msk [vmem:[#allocation3 + $0x18] sm:$0xff] %vm1128, %v1087
      %1133 = vst.msk [vmem:[#allocation3 + $0x20] sm:$0xff] %vm1128, %v1089
      %1134 = vst.msk [vmem:[#allocation3 + $0x28] sm:$0xff] %vm1128, %v1091
      %1135 = vst.msk [vmem:[#allocation3 + $0x30] sm:$0xff] %vm1128, %v1093
      %1136 = vst.msk [vmem:[#allocation3 + $0x38] sm:$0xff] %vm1128, %v1095
      %1137 = vst.msk [vmem:[#allocation3 + $0x40] sm:$0xff] %vm1128, %v1097
      %1138 = vst.msk [vmem:[#allocation3 + $0x48] sm:$0xff] %vm1128, %v1099
      %1139 = vst.msk [vmem:[#allocation3 + $0x50] sm:$0xff] %vm1128, %v1101
      %1140 = vst.msk [vmem:[#allocation3 + $0x58] sm:$0xff] %vm1128, %v1103
      %1141 = vst.msk [vmem:[#allocation3 + $0x60] sm:$0xff] %vm1128, %v1105
      %1142 = vst.msk [vmem:[#allocation3 + $0x68] sm:$0xff] %vm1128, %v1107
      %1143 = vst.msk [vmem:[#allocation3 + $0x70] sm:$0xff] %vm1128, %v1109
      %1144 = vst.msk [vmem:[#allocation3 + $0x78] sm:$0xff] %vm1128, %v1111
      %v1145 = vld [vmem:[%s950 + $0x2] sm:$0xff]
      %v1146 = vld [vmem:[%s950 + $0xa] sm:$0xff]
      %v1147 = vld [vmem:[%s950 + $0x1a] sm:$0xff]
      %v1148 = vld [vmem:[%s950 + $0x22] sm:$0xff]
      %v1149 = vld [vmem:[%s950 + $0x32] sm:$0xff]
      %v1150 = vld [vmem:[%s950 + $0x3a] sm:$0xff]
      %v1151 = vld [vmem:[%s950 + $0x4a] sm:$0xff]
      %v1152 = vld [vmem:[%s950 + $0x52] sm:$0xff]
      %v1153 = vld [vmem:[%s950 + $0x62] sm:$0xff]
      %v1154 = vld [vmem:[%s950 + $0x6a] sm:$0xff]
      %v1155 = vld [vmem:[%s950 + $0x7a] sm:$0xff]
      %v1156 = vld [vmem:[%s950 + $0x82] sm:$0xff]
      %v1157 = vld [vmem:[%s950 + $0x92] sm:$0xff]
      %v1158 = vld [vmem:[%s950 + $0x9a] sm:$0xff]
      %v1159 = vld [vmem:[%s950 + $0xaa] sm:$0xff]
      %v1160 = vld [vmem:[%s950 + $0xb2] sm:$0xff]
      %1177 = vrot.lane.b32.xlu0 %v1145, 32
      %v1178 = vpop.permute.xlu0 %1177
      %1179 = vrot.lane.b32.xlu0 %v1146, 32
      %v1180 = vpop.permute.xlu0 %1179
      %1181 = vrot.lane.b32.xlu0 %v1147, 32
      %v1182 = vpop.permute.xlu0 %1181
      %1183 = vrot.lane.b32.xlu0 %v1148, 32
      %v1184 = vpop.permute.xlu0 %1183
      %1185 = vrot.lane.b32.xlu0 %v1149, 32
      %v1186 = vpop.permute.xlu0 %1185
      %1187 = vrot.lane.b32.xlu0 %v1150, 32
      %v1188 = vpop.permute.xlu0 %1187
      %1189 = vrot.lane.b32.xlu0 %v1151, 32
      %v1190 = vpop.permute.xlu0 %1189
      %1191 = vrot.lane.b32.xlu0 %v1152, 32
      %v1192 = vpop.permute.xlu0 %1191
      %1193 = vrot.lane.b32.xlu0 %v1153, 32
      %v1194 = vpop.permute.xlu0 %1193
      %1195 = vrot.lane.b32.xlu0 %v1154, 32
      %v1196 = vpop.permute.xlu0 %1195
      %1197 = vrot.lane.b32.xlu0 %v1155, 32
      %v1198 = vpop.permute.xlu0 %1197
      %1199 = vrot.lane.b32.xlu0 %v1156, 32
      %v1200 = vpop.permute.xlu0 %1199
      %1201 = vrot.lane.b32.xlu0 %v1157, 32
      %v1202 = vpop.permute.xlu0 %1201
      %1203 = vrot.lane.b32.xlu0 %v1158, 32
      %v1204 = vpop.permute.xlu0 %1203
      %1205 = vrot.lane.b32.xlu0 %v1159, 32
      %v1206 = vpop.permute.xlu0 %1205
      %1207 = vrot.lane.b32.xlu0 %v1160, 32
      %v1208 = vpop.permute.xlu0 %1207
      %vm1225 = vcmask 294144
      %1226 = vst.msk [vmem:[#allocation3] sm:$0xff] %vm1225, %v1178
      %1227 = vst.msk [vmem:[#allocation3 + $0x8] sm:$0xff] %vm1225, %v1180
      %1228 = vst.msk [vmem:[#allocation3 + $0x10] sm:$0xff] %vm1225, %v1182
      %1229 = vst.msk [vmem:[#allocation3 + $0x18] sm:$0xff] %vm1225, %v1184
      %1230 = vst.msk [vmem:[#allocation3 + $0x20] sm:$0xff] %vm1225, %v1186
      %1231 = vst.msk [vmem:[#allocation3 + $0x28] sm:$0xff] %vm1225, %v1188
      %1232 = vst.msk [vmem:[#allocation3 + $0x30] sm:$0xff] %vm1225, %v1190
      %1233 = vst.msk [vmem:[#allocation3 + $0x38] sm:$0xff] %vm1225, %v1192
      %1234 = vst.msk [vmem:[#allocation3 + $0x40] sm:$0xff] %vm1225, %v1194
      %1235 = vst.msk [vmem:[#allocation3 + $0x48] sm:$0xff] %vm1225, %v1196
      %1236 = vst.msk [vmem:[#allocation3 + $0x50] sm:$0xff] %vm1225, %v1198
      %1237 = vst.msk [vmem:[#allocation3 + $0x58] sm:$0xff] %vm1225, %v1200
      %1238 = vst.msk [vmem:[#allocation3 + $0x60] sm:$0xff] %vm1225, %v1202
      %1239 = vst.msk [vmem:[#allocation3 + $0x68] sm:$0xff] %vm1225, %v1204
      %1240 = vst.msk [vmem:[#allocation3 + $0x70] sm:$0xff] %vm1225, %v1206
      %1241 = vst.msk [vmem:[#allocation3 + $0x78] sm:$0xff] %vm1225, %v1208
      %v1242 = vld [vmem:[#allocation3] sm:$0xff]
      %v1243 = vld [vmem:[#allocation3 + $0x8] sm:$0xff]
      %v1244 = vld [vmem:[#allocation3 + $0x10] sm:$0xff]
      %v1245 = vld [vmem:[#allocation3 + $0x18] sm:$0xff]
      %v1246 = vld [vmem:[#allocation3 + $0x20] sm:$0xff]
      %v1247 = vld [vmem:[#allocation3 + $0x28] sm:$0xff]
      %v1248 = vld [vmem:[#allocation3 + $0x30] sm:$0xff]
      %v1249 = vld [vmem:[#allocation3 + $0x38] sm:$0xff]
      %v1250 = vld [vmem:[#allocation3 + $0x40] sm:$0xff]
      %v1251 = vld [vmem:[#allocation3 + $0x48] sm:$0xff]
      %v1252 = vld [vmem:[#allocation3 + $0x50] sm:$0xff]
      %v1253 = vld [vmem:[#allocation3 + $0x58] sm:$0xff]
      %v1254 = vld [vmem:[#allocation3 + $0x60] sm:$0xff]
      %v1255 = vld [vmem:[#allocation3 + $0x68] sm:$0xff]
      %v1256 = vld [vmem:[#allocation3 + $0x70] sm:$0xff]
      %v1257 = vld [vmem:[#allocation3 + $0x78] sm:$0xff]
      %v1258 = vpack.c.bf16 %v1243, %v1242
      %v1259 = vpack.c.bf16 %v1245, %v1244
      %v1260 = vpack.c.bf16 %v1247, %v1246
      %v1261 = vpack.c.bf16 %v1249, %v1248
      %v1262 = vpack.c.bf16 %v1251, %v1250
      %v1263 = vpack.c.bf16 %v1253, %v1252
      %v1264 = vpack.c.bf16 %v1255, %v1254
      %v1265 = vpack.c.bf16 %v1257, %v1256
      %v1266 = vld [vmem:[%s1] sm:$0xf]
      %v1267 = vld [vmem:[%s1 + $0x4] sm:$0xf]
      %v1268 = vld [vmem:[%s1 + $0x8] sm:$0xf]
      %v1269 = vld [vmem:[%s1 + $0xc] sm:$0xf]
      %v1270 = vld [vmem:[%s1 + $0x10] sm:$0x3]
      %v1271 = vld [vmem:[%s2] sm:$0x1]
      %v1273 = vlaneseq
      %v1274 = vshrl.u32 %v1273, 7
      %v1275 = vsub.s32 0, %v1274
      %v1276 = vrot.slane %v1271, %v1275
      %v1283 = vunpack.c.l.b16 %v1266
      %v1284 = vunpack.c.l.b16 %v1267
      %v1285 = vunpack.c.l.b16 %v1268
      %v1286 = vunpack.c.l.b16 %v1269
      %v1287 = vunpack.c.l.b16 %v1270
      %v1288 = vpack.c.b16 %v1284, %v1283
      %v1289 = vpack.c.b16 %v1286, %v1285
      %v1290 = vpack.c.b16 %v1287, %v1287
      %vm1293 = vcmask 293888
      %v1295 = vsel %vm1293, %v1258, 0
      %v1298 = vsel %vm1293, %v1259, 0
      %v1301 = vsel %vm1293, %v1260, 0
      %v1304 = vsel %vm1293, %v1261, 0
      %v1307 = vsel %vm1293, %v1262, 0
      %v1310 = vsel %vm1293, %v1263, 0
      %v1313 = vsel %vm1293, %v1264, 0
      %v1316 = vsel %vm1293, %v1265, 0
      %vm1318 = vcmask 1041408
      %v1320 = vsel %vm1318, %v1290, 0
      %1322 = vmatprep.subr.bf16.mxu0 0
      %1323 = vmatpush1.bf16.msra.mxu0 0
      %1324 = vmatprep.subr.bf16.mxu0 0
      %1325 = vmatpush1.bf16.msra.mxu0 0
      %1326 = vmatprep.subr.bf16.mxu0 0
      %1327 = vmatpush1.bf16.msra.mxu0 0
      %1328 = vmatprep.subr.bf16.mxu0 0
      %1329 = vmatpush1.bf16.msra.mxu0 0
      %1330 = vmatprep.subr.bf16.mxu0 0
      %1331 = vmatpush1.bf16.msra.mxu0 0
      %1332 = vmatprep.subr.bf16.mxu0 0
      %1333 = vmatpush1.bf16.msra.mxu0 %v1320
      %1334 = vmatprep.subr.bf16.mxu0 0
      %1335 = vmatpush1.bf16.msra.mxu0 %v1289
      %1336 = vmatprep.subr.bf16.mxu0 0
      %1337 = vmatpush1.bf16.msra.mxu0 %v1288
      %1338 = vmatprep.subr.bf16.mxu0 0
      %1339 = vmatpush2.bf16.msra.mxu0 0
      %1340 = vmatprep.subr.bf16.mxu0 0
      %1341 = vmatpush2.bf16.msra.mxu0 0
      %1342 = vmatprep.subr.bf16.mxu0 0
      %1343 = vmatpush2.bf16.msra.mxu0 0
      %1344 = vmatprep.subr.bf16.mxu0 0
      %1345 = vmatpush2.bf16.msra.mxu0 0
      %1346 = vmatprep.subr.bf16.mxu0 0
      %1347 = vmatpush2.bf16.msra.mxu0 0
      %1348 = vmatprep.subr.bf16.mxu0 0
      %1349 = vmatpush2.bf16.msra.mxu0 0
      %1350 = vmatprep.subr.bf16.mxu0 0
      %1351 = vmatpush2.bf16.msra.mxu0 0
      %1352 = vmatprep.subr.bf16.mxu0 0
      %1353 = vmatpush2.bf16.msra.mxu0 0
      %1354 = vmatprep.mubr.bf16.mxu0 0
      %1355 = vmatmul.mubr.bf16.gmra.mxu0 %v1295
      %v1356 = vpop.f32.mrf.mxu0
      %v1357 = vadd.f32 %v1276, %v1356
      %v1358 = vpop.f32.mrf.mxu0
      %v1359 = vpop.f32.mrf.mxu0
      %v1360 = vadd.f32 %v1276, %v1359
      %v1361 = vpop.f32.mrf.mxu0
      %1362 = vmatprep.mubr.bf16.mxu0 0
      %1363 = vmatmul.mubr.bf16.gmra.mxu0 %v1298
      %v1364 = vpop.f32.mrf.mxu0
      %v1365 = vadd.f32 %v1276, %v1364
      %v1366 = vpop.f32.mrf.mxu0
      %v1367 = vpop.f32.mrf.mxu0
      %v1368 = vadd.f32 %v1276, %v1367
      %v1369 = vpop.f32.mrf.mxu0
      %1370 = vmatprep.mubr.bf16.mxu0 0
      %1371 = vmatmul.mubr.bf16.gmra.mxu0 %v1301
      %v1372 = vpop.f32.mrf.mxu0
      %v1373 = vadd.f32 %v1276, %v1372
      %v1374 = vpop.f32.mrf.mxu0
      %v1375 = vpop.f32.mrf.mxu0
      %v1376 = vadd.f32 %v1276, %v1375
      %v1377 = vpop.f32.mrf.mxu0
      %1378 = vmatprep.mubr.bf16.mxu0 0
      %1379 = vmatmul.mubr.bf16.gmra.mxu0 %v1304
      %v1380 = vpop.f32.mrf.mxu0
      %v1381 = vadd.f32 %v1276, %v1380
      %v1382 = vpop.f32.mrf.mxu0
      %v1383 = vpop.f32.mrf.mxu0
      %v1384 = vadd.f32 %v1276, %v1383
      %v1385 = vpop.f32.mrf.mxu0
      %1386 = vmatprep.mubr.bf16.mxu0 0
      %1387 = vmatmul.mubr.bf16.gmra.mxu0 %v1307
      %v1388 = vpop.f32.mrf.mxu0
      %v1389 = vadd.f32 %v1276, %v1388
      %v1390 = vpop.f32.mrf.mxu0
      %v1391 = vpop.f32.mrf.mxu0
      %v1392 = vadd.f32 %v1276, %v1391
      %v1393 = vpop.f32.mrf.mxu0
      %1394 = vmatprep.mubr.bf16.mxu0 0
      %1395 = vmatmul.mubr.bf16.gmra.mxu0 %v1310
      %v1396 = vpop.f32.mrf.mxu0
      %v1397 = vadd.f32 %v1276, %v1396
      %v1398 = vpop.f32.mrf.mxu0
      %v1399 = vpop.f32.mrf.mxu0
      %v1400 = vadd.f32 %v1276, %v1399
      %v1401 = vpop.f32.mrf.mxu0
      %1402 = vmatprep.mubr.bf16.mxu0 0
      %1403 = vmatmul.mubr.bf16.gmra.mxu0 %v1313
      %v1404 = vpop.f32.mrf.mxu0
      %v1405 = vadd.f32 %v1276, %v1404
      %v1406 = vpop.f32.mrf.mxu0
      %v1407 = vpop.f32.mrf.mxu0
      %v1408 = vadd.f32 %v1276, %v1407
      %v1409 = vpop.f32.mrf.mxu0
      %1410 = vmatprep.mubr.bf16.mxu0 0
      %1411 = vmatmul.mubr.bf16.gmra.mxu0 %v1316
      %v1412 = vpop.f32.mrf.mxu0
      %v1413 = vadd.f32 %v1276, %v1412
      %v1414 = vpop.f32.mrf.mxu0
      %v1415 = vpop.f32.mrf.mxu0
      %v1416 = vadd.f32 %v1276, %v1415
      %v1417 = vpop.f32.mrf.mxu0
      %1418 = vdwg.mxu0
      %vm1419 = vcmask 64512
      %1420 = vst.msk [vmem:[%s288] sm:$0xff] %vm1419, %v1357
      %1421 = vst.msk [vmem:[%s288 + $0x8] sm:$0xff] %vm1419, %v1360
      %1422 = vst.msk [vmem:[%s288 + $0x10] sm:$0xff] %vm1419, %v1365
      %1423 = vst.msk [vmem:[%s288 + $0x18] sm:$0xff] %vm1419, %v1368
      %1424 = vst.msk [vmem:[%s288 + $0x20] sm:$0xff] %vm1419, %v1373
      %1425 = vst.msk [vmem:[%s288 + $0x28] sm:$0xff] %vm1419, %v1376
      %1426 = vst.msk [vmem:[%s288 + $0x30] sm:$0xff] %vm1419, %v1381
      %1427 = vst.msk [vmem:[%s288 + $0x38] sm:$0xff] %vm1419, %v1384
      %1428 = vst.msk [vmem:[%s288 + $0x40] sm:$0xff] %vm1419, %v1389
      %1429 = vst.msk [vmem:[%s288 + $0x48] sm:$0xff] %vm1419, %v1392
      %1430 = vst.msk [vmem:[%s288 + $0x50] sm:$0xff] %vm1419, %v1397
      %1431 = vst.msk [vmem:[%s288 + $0x58] sm:$0xff] %vm1419, %v1400
      %1432 = vst.msk [vmem:[%s288 + $0x60] sm:$0xff] %vm1419, %v1405
      %1433 = vst.msk [vmem:[%s288 + $0x68] sm:$0xff] %vm1419, %v1408
      %1434 = vst.msk [vmem:[%s288 + $0x70] sm:$0xff] %vm1419, %v1413
      %1435 = vst.msk [vmem:[%s288 + $0x78] sm:$0xff] %vm1419, %v1416
      %v1436 = vsel %vm1419, %v1357, 0.0
      %v1437 = vsel %vm1419, %v1360, 0.0
      %v1438 = vadd.f32 %v1436, %v1437
      %v1439 = vsel %vm1419, %v1365, 0.0
      %v1440 = vadd.f32 %v1438, %v1439
      %v1441 = vsel %vm1419, %v1368, 0.0
      %v1442 = vadd.f32 %v1440, %v1441
      %v1443 = vsel %vm1419, %v1373, 0.0
      %v1444 = vadd.f32 %v1442, %v1443
      %v1445 = vsel %vm1419, %v1376, 0.0
      %v1446 = vadd.f32 %v1444, %v1445
      %v1447 = vsel %vm1419, %v1381, 0.0
      %v1448 = vadd.f32 %v1446, %v1447
      %v1449 = vsel %vm1419, %v1384, 0.0
      %v1450 = vadd.f32 %v1448, %v1449
      %v1451 = vsel %vm1419, %v1389, 0.0
      %v1452 = vadd.f32 %v1450, %v1451
      %v1453 = vsel %vm1419, %v1392, 0.0
      %v1454 = vadd.f32 %v1452, %v1453
      %v1455 = vsel %vm1419, %v1397, 0.0
      %v1456 = vadd.f32 %v1454, %v1455
      %v1457 = vsel %vm1419, %v1400, 0.0
      %v1458 = vadd.f32 %v1456, %v1457
      %v1459 = vsel %vm1419, %v1405, 0.0
      %v1460 = vadd.f32 %v1458, %v1459
      %v1461 = vsel %vm1419, %v1408, 0.0
      %v1462 = vadd.f32 %v1460, %v1461
      %v1463 = vsel %vm1419, %v1413, 0.0
      %v1464 = vadd.f32 %v1462, %v1463
      %v1465 = vsel %vm1419, %v1416, 0.0
      %v1466 = vadd.f32 %v1464, %v1465
      %v1467 = vrot.slane %v1466, 4
      %v1468 = vadd.f32 %v1466, %v1467
      %v1469 = vrot.slane %v1468, 2
      %v1470 = vadd.f32 %v1468, %v1469
      %v1471 = vrot.slane %v1470, 1
      %v1472 = vadd.f32 %v1470, %v1471
      %vm1473 = vcmask 57344
      %1474 = vst.msk [vmem:[%s297] sm:$0x1] %vm1473, %v1472
      %v1475 = vmul.f32 %v1357, %v1357
      %v1476 = vmul.f32 %v1360, %v1360
      %v1477 = vmul.f32 %v1365, %v1365
      %v1478 = vmul.f32 %v1368, %v1368
      %v1479 = vmul.f32 %v1373, %v1373
      %v1480 = vmul.f32 %v1376, %v1376
      %v1481 = vmul.f32 %v1381, %v1381
      %v1482 = vmul.f32 %v1384, %v1384
      %v1483 = vmul.f32 %v1389, %v1389
      %v1484 = vmul.f32 %v1392, %v1392
      %v1485 = vmul.f32 %v1397, %v1397
      %v1486 = vmul.f32 %v1400, %v1400
      %v1487 = vmul.f32 %v1405, %v1405
      %v1488 = vmul.f32 %v1408, %v1408
      %v1489 = vmul.f32 %v1413, %v1413
      %v1490 = vmul.f32 %v1416, %v1416
      %v1491 = vsel %vm1419, %v1475, 0.0
      %v1492 = vsel %vm1419, %v1476, 0.0
      %v1493 = vadd.f32 %v1491, %v1492
      %v1494 = vsel %vm1419, %v1477, 0.0
      %v1495 = vadd.f32 %v1493, %v1494
      %v1496 = vsel %vm1419, %v1478, 0.0
      %v1497 = vadd.f32 %v1495, %v1496
      %v1498 = vsel %vm1419, %v1479, 0.0
      %v1499 = vadd.f32 %v1497, %v1498
      %v1500 = vsel %vm1419, %v1480, 0.0
      %v1501 = vadd.f32 %v1499, %v1500
      %v1502 = vsel %vm1419, %v1481, 0.0
      %v1503 = vadd.f32 %v1501, %v1502
      %v1504 = vsel %vm1419, %v1482, 0.0
      %v1505 = vadd.f32 %v1503, %v1504
      %v1506 = vsel %vm1419, %v1483, 0.0
      %v1507 = vadd.f32 %v1505, %v1506
      %v1508 = vsel %vm1419, %v1484, 0.0
      %v1509 = vadd.f32 %v1507, %v1508
      %v1510 = vsel %vm1419, %v1485, 0.0
      %v1511 = vadd.f32 %v1509, %v1510
      %v1512 = vsel %vm1419, %v1486, 0.0
      %v1513 = vadd.f32 %v1511, %v1512
      %v1514 = vsel %vm1419, %v1487, 0.0
      %v1515 = vadd.f32 %v1513, %v1514
      %v1516 = vsel %vm1419, %v1488, 0.0
      %v1517 = vadd.f32 %v1515, %v1516
      %v1518 = vsel %vm1419, %v1489, 0.0
      %v1519 = vadd.f32 %v1517, %v1518
      %v1520 = vsel %vm1419, %v1490, 0.0
      %v1521 = vadd.f32 %v1519, %v1520
      %v1522 = vrot.slane %v1521, 4
      %v1523 = vadd.f32 %v1521, %v1522
      %v1524 = vrot.slane %v1523, 2
      %v1525 = vadd.f32 %v1523, %v1524
      %v1526 = vrot.slane %v1525, 1
      %v1527 = vadd.f32 %v1525, %v1526
      %1528 = vst.msk [vmem:[%s297 + $0x1] sm:$0x1] %vm1473, %v1527
      %s1529 = smul.u32 8, %s23
      %p1530 = scmp.lt.s32.totalorder %s22, 1
      %s1531 = scalar_select %p1530, %s22, 1
      %p1532 = scmp.lt.s32.totalorder %s1529, 15
      %s1533 = scalar_select %p1532, %s1529, 15
      %s1534 = smul.addr %s1533, 2
      %s1535 = smul.addr %s1531, 32
      %s1536 = sadd.s32 %s1534, %s1535
      %s1537 = smul.addr %s1536, 8
      %s1538 = scalar_lea.vmem %s5, %s1537
      %p1539 = scmp.lt.s32.totalorder %s22, 1
      %s1540 = scalar_select %p1539, %s22, 1
      %p1541 = scmp.lt.s32.totalorder %s23, 1
      %s1542 = scalar_select %p1541, %s23, 1
      %s1543 = smul.addr %s1540, 2
      %s1544 = sadd.s32 %s1542, %s1543
      %s1545 = smul.addr %s1544, 2
      %s1546 = scalar_lea.vmem %s6, %s1545
      // Predicated region
      $region45: #{encoder_block_forward.3} parent=39 // pred_check
        %p1547 = pneg %p160
      $region46: #{encoder_block_forward.3} parent=39 // pred_check_branch
        %1549 = sbr.rel (%p1547) target = $region48
      $region47: #{encoder_block_forward.3} parent=39 // pred_region
        %s1550 = smul.u32 8, %s23
      $region48: #{encoder_block_forward.3} parent=39 // pred_fallthru
        _
      // Predicated region
      $region49: #{encoder_block_forward.3} parent=39 // pred_check
        %p1551 = pneg %p188
      $region50: #{encoder_block_forward.3} parent=39 // pred_check_branch
        %1553 = sbr.rel (%p1551) target = $region52
      $region51: #{encoder_block_forward.3} parent=39 // pred_region
        _
      $region52: #{encoder_block_forward.3} parent=39 // pred_fallthru
        _
    $region40: #{encoder_block_forward.3} parent=5 // pred_fallthru
      _
    %p1554 = scmp.le.s32.totalorder 2, %s13
    // Predicated region
    $region53: #{encoder_block_forward.3} parent=5 // pred_check
      %p1555 = pneg %p1554
    $region54: #{encoder_block_forward.3} parent=5 // pred_check_branch
      %1557 = sbr.rel (%p1555) target = $region56
    $region55: #{encoder_block_forward.3} parent=5 // pred_region
      %s1558 = ssub.s32 %s13, 2
      // Predicated region
      $region57: #{encoder_block_forward.3} parent=55 // pred_check
        %p1559 = pneg %p166
      $region58: #{encoder_block_forward.3} parent=55 // pred_check_branch
        %1561 = sbr.rel (%p1559) target = $region60
      $region59: #{encoder_block_forward.3} parent=55 // pred_region
        %s1562 = smul.u32 8, %s25
        %p1563 = scmp.lt.s32.totalorder %s24, 1
        %s1564 = scalar_select %p1563, %s24, 1
        %p1565 = scmp.lt.s32.totalorder %s1562, 15
        %s1566 = scalar_select %p1565, %s1562, 15
        %s1567 = smul.addr %s1566, 2
        %s1568 = smul.addr %s1564, 32
        %s1569 = sadd.s32 %s1567, %s1568
        %s1570 = smul.addr %s1569, 8
        %s1571 = scalar_lea.vmem %s5, %s1570
      $region60: #{encoder_block_forward.3} parent=55 // pred_fallthru
        _
      // Predicated region
      $region61: #{encoder_block_forward.3} parent=55 // pred_check
        %p1572 = pneg %p194
      $region62: #{encoder_block_forward.3} parent=55 // pred_check_branch
        %1574 = sbr.rel (%p1572) target = $region64
      $region63: #{encoder_block_forward.3} parent=55 // pred_region
        %p1575 = scmp.lt.s32.totalorder %s24, 1
        %s1576 = scalar_select %p1575, %s24, 1
        %p1577 = scmp.lt.s32.totalorder %s25, 1
        %s1578 = scalar_select %p1577, %s25, 1
        %s1579 = smul.addr %s1576, 2
        %s1580 = sadd.s32 %s1578, %s1579
        %s1581 = smul.addr %s1580, 2
        %s1582 = scalar_lea.vmem %s6, %s1581
      $region64: #{encoder_block_forward.3} parent=55 // pred_fallthru
        _
    $region56: #{encoder_block_forward.3} parent=5 // pred_fallthru
      _
  $region6: #{encoder_block_forward.3} parent=0 // loop_footer
    %s17 = sadd.s32 1, %s13
  $region7: #{encoder_block_forward.3} parent=0 // loop_footer_branch
    %12 = sbr.rel target = $region3
  $region8: #{encoder_block_forward.3} parent=0 // loop_exit
    _

// kernel: encoder_block_forward.4
$region0: #{encoder_block_forward.4}
  #allocation0 [shape = 'u32[]', space=smem, size = 0x4, offset = 0x4, fixed_abs, tag = 'smem constant byte address 0x4 - core index']
  #allocation1 [shape = 'u32[144,128]{1,0:T(1,128)}', space=vmem, size = 0x12000, scoped, tag = 'internal scratch']
  #allocation2 [shape = 'f32[18,18,8]{2,1,0:T(8,128)}', space=vmem, size = 0x36000, scoped, tag = 'scratch operand']
  #allocation3 [shape = 'f32[8,16,72]{2,1,0:T(8,128)}', space=vmem, size = 0x10000, scoped, tag = 'scratch operand']
  %s0 = inlined_call_operand.vmem [shape: f32[2,16,16,8], index: 0, kind: input, shape index: {}]
  %s1 = inlined_call_operand.vmem [shape: bf16[72,8], index: 1, kind: input, shape index: {}]
  %s2 = inlined_call_operand.vmem [shape: f32[1,8], index: 2, kind: input, shape index: {}]
  %s3 = inlined_call_operand.vmem [shape: f32[1,8], index: 3, kind: input, shape index: {}]
  %s4 = inlined_call_operand.vmem [shape: f32[1,8], index: 4, kind: input, shape index: {}]
  %s5 = inlined_call_operand.vmem [shape: f32[2,16,16,8], index: 5, kind: output, shape index: {0}]
  %s6 = inlined_call_operand.vmem [shape: f32[2,2,2,8], index: 6, kind: output, shape index: {1}]
  %7 = xla_tuple %s5, %s6
  %s8 = sld [smem:[#allocation0]]
  $region65: #{encoder_block_forward.4} parent=0
    _
  %s10 = ssub.s32 1, %s8
  %s11 = scalar_select 0, %s10, %s8
  loop: start=0, step=1, limit=6
  $region2: #{encoder_block_forward.4} parent=0 // loop_pre_header
    _
  $region3: #{encoder_block_forward.4} parent=0 // loop_header
    %s13 = sphi 0, %s17
    %p14 = scmp.ge.s32.totalorder %s13, 6
    %s20 = sphi 0, %s32
    %s21 = sphi 0, %s28
    %s22 = sphi 0, %s20
    %s23 = sphi 0, %s21
    %s24 = sphi 0, %s22
    %s25 = sphi 0, %s23
    %s35 = sphi 0, %s37
    %s38 = sphi 0, %s35
    %s39 = sphi 0, %s38
    %s55 = sphi 0, %s39
    %s59 = sphi 0, %s59
    %s61 = sphi 0, %s59
    %s62 = sphi 0, %s61
    %s76 = sphi 0, %s62
    %s80 = sphi 0, %s80
    %s82 = sphi 0, %s80
    %s83 = sphi 0, %s82
    %s97 = sphi 0, %s83
    %s101 = sphi 0, %s101
    %s103 = sphi 0, %s101
    %s104 = sphi 0, %s103
    %s118 = sphi 0, %s104
    %s122 = sphi 0, %s122
    %s124 = sphi 0, %s122
    %s125 = sphi 0, %s124
    %s139 = sphi 0, %s125
    %s147 = sphi 0, %s149
    %s150 = sphi 0, %s147
    %s151 = sphi 0, %s150
    %s167 = sphi 0, %s151
    %s175 = sphi 0, %s177
    %s178 = sphi 0, %s175
    %s179 = sphi 0, %s178
    %s195 = sphi 0, %s179
  $region4: #{encoder_block_forward.4} parent=0 // loop_header_branch
    %16 = sbr.rel (%p14) target = $region8
  $region5: #{encoder_block_forward.4} parent=0 // loop_body
    %s18 = ssub.s32 %s13, 1
    %s19 = ssub.s32 %s13, 2
    %s26 = sadd.s32 1, %s21
    %p27 = scmp.ge.s32.totalorder %s26, 2
    %s28 = scalar_select %p27, 0, %s26
    %s29 = sadd.s32 1, %s20
    %s30 = scalar_select %p27, %s29, %s20
    %p31 = scmp.ge.s32.totalorder %s30, 2
    %s32 = scalar_select %p31, 0, %s30
    %s33 = ssub.s32 %s20, %s32
    %p34 = scmp.eq.s32.totalorder %s33, 0
    %s36 = sadd.s32 %s35, 1
    %s37 = scalar_select %p34, %s35, %s36
    %p40 = pneg %p34
    %p41 = scmp.eq.s32.totalorder %s13, 3
    %p42 = por %p40, %p41
    %p43 = scmp.ne.s32.totalorder %s35, %s38
    %p44 = scmp.eq.s32.totalorder %s13, 0
    %p45 = por %p43, %p44
    %p46 = scmp.ne.s32.totalorder %s35, %s38
    %p47 = scmp.eq.s32.totalorder %s18, 3
    %p48 = por %p46, %p47
    %p49 = scmp.ne.s32.totalorder %s38, %s39
    %p50 = scmp.eq.s32.totalorder %s18, 0
    %p51 = por %p49, %p50
    %p52 = scmp.ne.s32.totalorder %s38, %s39
    %p53 = scmp.eq.s32.totalorder %s19, 3
    %p54 = por %p52, %p53
    %p56 = scmp.ne.s32.totalorder %s39, %s55
    %p57 = scmp.eq.s32.totalorder %s19, 0
    %p58 = por %p56, %p57
    %s60 = sadd.s32 %s59, 1
    %p63 = scmp.eq.s32.totalorder %s13, 3
    %p64 = scmp.ne.s32.totalorder %s59, %s61
    %p65 = scmp.eq.s32.totalorder %s13, 0
    %p66 = por %p64, %p65
    %p67 = scmp.ne.s32.totalorder %s59, %s61
    %p68 = scmp.eq.s32.totalorder %s18, 3
    %p69 = por %p67, %p68
    %p70 = scmp.ne.s32.totalorder %s61, %s62
    %p71 = scmp.eq.s32.totalorder %s18, 0
    %p72 = por %p70, %p71
    %p73 = scmp.ne.s32.totalorder %s61, %s62
    %p74 = scmp.eq.s32.totalorder %s19, 3
    %p75 = por %p73, %p74
    %p77 = scmp.ne.s32.totalorder %s62, %s76
    %p78 = scmp.eq.s32.totalorder %s19, 0
    %p79 = por %p77, %p78
    %s81 = sadd.s32 %s80, 1
    %p84 = scmp.eq.s32.totalorder %s13, 3
    %p85 = scmp.ne.s32.totalorder %s80, %s82
    %p86 = scmp.eq.s32.totalorder %s13, 0
    %p87 = por %p85, %p86
    %p88 = scmp.ne.s32.totalorder %s80, %s82
    %p89 = scmp.eq.s32.totalorder %s18, 3
    %p90 = por %p88, %p89
    %p91 = scmp.ne.s32.totalorder %s82, %s83
    %p92 = scmp.eq.s32.totalorder %s18, 0
    %p93 = por %p91, %p92
    %p94 = scmp.ne.s32.totalorder %s82, %s83
    %p95 = scmp.eq.s32.totalorder %s19, 3
    %p96 = por %p94, %p95
    %p98 = scmp.ne.s32.totalorder %s83, %s97
    %p99 = scmp.eq.s32.totalorder %s19, 0
    %p100 = por %p98, %p99
    %s102 = sadd.s32 %s101, 1
    %p105 = scmp.eq.s32.totalorder %s13, 3
    %p106 = scmp.ne.s32.totalorder %s101, %s103
    %p107 = scmp.eq.s32.totalorder %s13, 0
    %p108 = por %p106, %p107
    %p109 = scmp.ne.s32.totalorder %s101, %s103
    %p110 = scmp.eq.s32.totalorder %s18, 3
    %p111 = por %p109, %p110
    %p112 = scmp.ne.s32.totalorder %s103, %s104
    %p113 = scmp.eq.s32.totalorder %s18, 0
    %p114 = por %p112, %p113
    %p115 = scmp.ne.s32.totalorder %s103, %s104
    %p116 = scmp.eq.s32.totalorder %s19, 3
    %p117 = por %p115, %p116
    %p119 = scmp.ne.s32.totalorder %s104, %s118
    %p120 = scmp.eq.s32.totalorder %s19, 0
    %p121 = por %p119, %p120
    %s123 = sadd.s32 %s122, 1
    %p126 = scmp.eq.s32.totalorder %s13, 3
    %p127 = scmp.ne.s32.totalorder %s122, %s124
    %p128 = scmp.eq.s32.totalorder %s13, 0
    %p129 = por %p127, %p128
    %p130 = scmp.ne.s32.totalorder %s122, %s124
    %p131 = scmp.eq.s32.totalorder %s18, 3
    %p132 = por %p130, %p131
    %p133 = scmp.ne.s32.totalorder %s124, %s125
    %p134 = scmp.eq.s32.totalorder %s18, 0
    %p135 = por %p133, %p134
    %p136 = scmp.ne.s32.totalorder %s124, %s125
    %p137 = scmp.eq.s32.totalorder %s19, 3
    %p138 = por %p136, %p137
    %p140 = scmp.ne.s32.totalorder %s125, %s139
    %p141 = scmp.eq.s32.totalorder %s19, 0
    %p142 = por %p140, %p141
    %s143 = ssub.s32 %s20, %s32
    %s144 = ssub.s32 %s21, %s28
    %s145 = sor.u32 %s143, %s144
    %p146 = scmp.eq.s32.totalorder %s145, 0
    %s148 = sadd.s32 %s147, 1
    %s149 = scalar_select %p146, %s147, %s148
    %p152 = pneg %p146
    %p153 = scmp.eq.s32.totalorder %s13, 3
    %p154 = por %p152, %p153
    %p155 = scmp.ne.s32.totalorder %s147, %s150
    %p156 = scmp.eq.s32.totalorder %s13, 0
    %p157 = por %p155, %p156
    %p158 = scmp.ne.s32.totalorder %s147, %s150
    %p159 = scmp.eq.s32.totalorder %s18, 3
    %p160 = por %p158, %p159
    %p161 = scmp.ne.s32.totalorder %s150, %s151
    %p162 = scmp.eq.s32.totalorder %s18, 0
    %p163 = por %p161, %p162
    %p164 = scmp.ne.s32.totalorder %s150, %s151
    %p165 = scmp.eq.s32.totalorder %s19, 3
    %p166 = por %p164, %p165
    %p168 = scmp.ne.s32.totalorder %s151, %s167
    %p169 = scmp.eq.s32.totalorder %s19, 0
    %p170 = por %p168, %p169
    %s171 = ssub.s32 %s20, %s32
    %s172 = ssub.s32 %s21, %s28
    %s173 = sor.u32 %s171, %s172
    %p174 = scmp.eq.s32.totalorder %s173, 0
    %s176 = sadd.s32 %s175, 1
    %s177 = scalar_select %p174, %s175, %s176
    %p180 = pneg %p174
    %p181 = scmp.eq.s32.totalorder %s13, 3
    %p182 = por %p180, %p181
    %p183 = scmp.ne.s32.totalorder %s175, %s178
    %p184 = scmp.eq.s32.totalorder %s13, 0
    %p185 = por %p183, %p184
    %p186 = scmp.ne.s32.totalorder %s175, %s178
    %p187 = scmp.eq.s32.totalorder %s18, 3
    %p188 = por %p186, %p187
    %p189 = scmp.ne.s32.totalorder %s178, %s179
    %p190 = scmp.eq.s32.totalorder %s18, 0
    %p191 = por %p189, %p190
    %p192 = scmp.ne.s32.totalorder %s178, %s179
    %p193 = scmp.eq.s32.totalorder %s19, 3
    %p194 = por %p192, %p193
    %p196 = scmp.ne.s32.totalorder %s179, %s195
    %p197 = scmp.eq.s32.totalorder %s19, 0
    %p198 = por %p196, %p197
    %p199 = scmp.le.s32.totalorder 1, %s13
    %p200 = scmp.lt.s32.totalorder %s13, 5
    %p201 = pnand %p199, %p200
    %p202 = pneg %p201
    // Predicated region
    $region9: #{encoder_block_forward.4} parent=5 // pred_check
      _
    $region10: #{encoder_block_forward.4} parent=5 // pred_check_branch
      %204 = sbr.rel (%p201) target = $region12
    $region11: #{encoder_block_forward.4} parent=5 // pred_region
      %s205 = ssub.s32 %s13, 1
      // Predicated region
      $region13: #{encoder_block_forward.4} parent=11 // pred_check
        %p206 = pneg %p72
      $region14: #{encoder_block_forward.4} parent=11 // pred_check_branch
        %208 = sbr.rel (%p206) target = $region16
      $region15: #{encoder_block_forward.4} parent=11 // pred_region
        _
      $region16: #{encoder_block_forward.4} parent=11 // pred_fallthru
        _
      // Predicated region
      $region17: #{encoder_block_forward.4} parent=11 // pred_check
        %p209 = pneg %p93
      $region18: #{encoder_block_forward.4} parent=11 // pred_check_branch
        %211 = sbr.rel (%p209) target = $region20
      $region19: #{encoder_block_forward.4} parent=11 // pred_region
        _
      $region20: #{encoder_block_forward.4} parent=11 // pred_fallthru
        _
      // Predicated region
      $region21: #{encoder_block_forward.4} parent=11 // pred_check
        %p212 = pneg %p114
      $region22: #{encoder_block_forward.4} parent=11 // pred_check_branch
        %214 = sbr.rel (%p212) target = $region24
      $region23: #{encoder_block_forward.4} parent=11 // pred_region
        _
      $region24: #{encoder_block_forward.4} parent=11 // pred_fallthru
        _
      // Predicated region
      $region25: #{encoder_block_forward.4} parent=11 // pred_check
        %p215 = pneg %p135
      $region26: #{encoder_block_forward.4} parent=11 // pred_check_branch
        %217 = sbr.rel (%p215) target = $region28
      $region27: #{encoder_block_forward.4} parent=11 // pred_region
        _
      $region28: #{encoder_block_forward.4} parent=11 // pred_fallthru
        _
    $region12: #{encoder_block_forward.4} parent=5 // pred_fallthru
      _
    %p218 = scmp.lt.s32.totalorder %s13, 4
    // Predicated region
    $region29: #{encoder_block_forward.4} parent=5 // pred_check
      %p219 = pneg %p218
    $region30: #{encoder_block_forward.4} parent=5 // pred_check_branch
      %221 = sbr.rel (%p219) target = $region32
    $region31: #{encoder_block_forward.4} parent=5 // pred_region
      // Predicated region
      $region33: #{encoder_block_forward.4} parent=31 // pred_check
        %p222 = pneg %p45
      $region34: #{encoder_block_forward.4} parent=31 // pred_check_branch
        %224 = sbr.rel (%p222) target = $region36
      $region35: #{encoder_block_forward.4} parent=31 // pred_region
        %p225 = scmp.lt.s32.totalorder %s20, 1
        %s226 = scalar_select %p225, %s20, 1
        %s227 = smul.addr %s226, 32
        %s228 = smul.addr %s227, 8
        %s229 = scalar_lea.vmem %s0, %s228
      $region36: #{encoder_block_forward.4} parent=31 // pred_fallthru
        _
    $region32: #{encoder_block_forward.4} parent=5 // pred_fallthru
      _
    %p230 = scmp.le.s32.totalorder 1, %s13
    %p231 = scmp.lt.s32.totalorder %s13, 5
    %p232 = pnand %p230, %p231
    %p233 = pneg %p232
    // Predicated region
    $region37: #{encoder_block_forward.4} parent=5 // pred_check
      _
    $region38: #{encoder_block_forward.4} parent=5 // pred_check_branch
      %235 = sbr.rel (%p232) target = $region40
    $region39: #{encoder_block_forward.4} parent=5 // pred_region
      %s236 = ssub.s32 %s13, 1
      %p237 = scmp.lt.s32.totalorder %s22, 1
      %s238 = scalar_select %p237, %s22, 1
      %s239 = smul.addr %s238, 32
      %s240 = smul.addr %s239, 8
      %s241 = scalar_lea.vmem %s0, %s240
      %p242 = pneg %p51
      %p243 = pneg %p48
      %p244 = pneg %p72
      %p245 = pneg %p69
      %p246 = pneg %p93
      %p247 = pneg %p90
      %p248 = pneg %p114
      %p249 = pneg %p111
      %p250 = pneg %p135
      %p251 = pneg %p132
      %p252 = pneg %p163
      %p253 = pneg %p160
      %s254 = smul.u32 8, %s23
      %p255 = scmp.lt.s32.totalorder %s22, 1
      %s256 = scalar_select %p255, %s22, 1
      %p257 = scmp.lt.s32.totalorder %s254, 15
      %s258 = scalar_select %p257, %s254, 15
      %s259 = smul.addr %s258, 2
      %s260 = smul.addr %s256, 32
      %s261 = sadd.s32 %s259, %s260
      %s262 = smul.addr %s261, 8
      %s263 = scalar_lea.vmem %s5, %s262
      %p264 = pneg %p191
      %p265 = pneg %p188
      %p266 = scmp.lt.s32.totalorder %s22, 1
      %s267 = scalar_select %p266, %s22, 1
      %p268 = scmp.lt.s32.totalorder %s23, 1
      %s269 = scalar_select %p268, %s23, 1
      %s270 = smul.addr %s267, 2
      %s271 = sadd.s32 %s269, %s270
      %s272 = smul.addr %s271, 2
      %s273 = scalar_lea.vmem %s6, %s272
      %p274 = scmp.lt.s32.totalorder %s22, 1
      %s275 = scalar_select %p274, %s22, 1
      %s276 = smul.addr %s275, 32
      %s277 = smul.addr %s276, 8
      %s278 = scalar_lea.vmem %s0, %s277
      %s279 = smul.u32 8, %s23
      %p280 = scmp.lt.s32.totalorder %s22, 1
      %s281 = scalar_select %p280, %s22, 1
      %p282 = scmp.lt.s32.totalorder %s279, 15
      %s283 = scalar_select %p282, %s279, 15
      %s284 = smul.addr %s283, 2
      %s285 = smul.addr %s281, 32
      %s286 = sadd.s32 %s284, %s285
      %s287 = smul.addr %s286, 8
      %s288 = scalar_lea.vmem %s5, %s287
      %s289 = smul.u32 8, %s23
      %p290 = scmp.lt.s32.totalorder %s22, 1
      %s291 = scalar_select %p290, %s22, 1
      %p292 = scmp.lt.s32.totalorder %s23, 1
      %s293 = scalar_select %p292, %s23, 1
      %s294 = smul.addr %s291, 2
      %s295 = sadd.s32 %s293, %s294
      %s296 = smul.addr %s295, 2
      %s297 = scalar_lea.vmem %s6, %s296
      %p299 = scmp.eq.s32.totalorder %s23, 0
      // Predicated region
      $region41: #{encoder_block_forward.4} parent=39 // pred_check
        %p300 = pneg %p299
      $region42: #{encoder_block_forward.4} parent=39 // pred_check_branch
        %302 = sbr.rel (%p300) target = $region44
      $region43: #{encoder_block_forward.4} parent=39 // pred_region
        %vm303 = vcmask 64512
        %304 = vst.msk [vmem:[#allocation2] sm:$0xff] %vm303, 0.0
        %305 = vst.msk [vmem:[#allocation2 + $0x8] sm:$0xff] %vm303, 0.0
        %vm306 = vcmask 58368
        %307 = vst.msk [vmem:[#allocation2 + $0x10] sm:$0x3] %vm306, 0.0
        %308 = vst.msk [vmem:[#allocation2 + $0x18] sm:$0xff] %vm303, 0.0
        %309 = vst.msk [vmem:[#allocation2 + $0x20] sm:$0xff] %vm303, 0.0
        %310 = vst.msk [vmem:[#allocation2 + $0x28] sm:$0x3] %vm306, 0.0
        %311 = vst.msk [vmem:[#allocation2 + $0x30] sm:$0xff] %vm303, 0.0
        %312 = vst.msk [vmem:[#allocation2 + $0x38] sm:$0xff] %vm303, 0.0
        %313 = vst.msk [vmem:[#allocation2 + $0x40] sm:$0x3] %vm306, 0.0
        %314 = vst.msk [vmem:[#allocation2 + $0x48] sm:$0xff] %vm303, 0.0
        %315 = vst.msk [vmem:[#allocation2 + $0x50] sm:$0xff] %vm303, 0.0
        %316 = vst.msk [vmem:[#allocation2 + $0x58] sm:$0x3] %vm306, 0.0
        %317 = vst.msk [vmem:[#allocation2 + $0x60] sm:$0xff] %vm303, 0.0
        %318 = vst.msk [vmem:[#allocation2 + $0x68] sm:$0xff] %vm303, 0.0
        %319 = vst.msk [vmem:[#allocation2 + $0x70] sm:$0x3] %vm306, 0.0
        %320 = vst.msk [vmem:[#allocation2 + $0x78] sm:$0xff] %vm303, 0.0
        %321 = vst.msk [vmem:[#allocation2 + $0x80] sm:$0xff] %vm303, 0.0
        %322 = vst.msk [vmem:[#allocation2 + $0x88] sm:$0x3] %vm306, 0.0
        %323 = vst.msk [vmem:[#allocation2 + $0x90] sm:$0xff] %vm303, 0.0
        %324 = vst.msk [vmem:[#allocation2 + $0x98] sm:$0xff] %vm303, 0.0
        %325 = vst.msk [vmem:[#allocation2 + $0xa0] sm:$0x3] %vm306, 0.0
        %326 = vst.msk [vmem:[#allocation2 + $0xa8] sm:$0xff] %vm303, 0.0
        %327 = vst.msk [vmem:[#allocation2 + $0xb0] sm:$0xff] %vm303, 0.0
        %328 = vst.msk [vmem:[#allocation2 + $0xb8] sm:$0x3] %vm306, 0.0
        %329 = vst.msk [vmem:[#allocation2 + $0xc0] sm:$0xff] %vm303, 0.0
        %330 = vst.msk [vmem:[#allocation2 + $0xc8] sm:$0xff] %vm303, 0.0
        %331 = vst.msk [vmem:[#allocation2 + $0xd0] sm:$0x3] %vm306, 0.0
        %332 = vst.msk [vmem:[#allocation2 + $0xd8] sm:$0xff] %vm303, 0.0
        %333 = vst.msk [vmem:[#allocation2 + $0xe0] sm:$0xff] %vm303, 0.0
        %334 = vst.msk [vmem:[#allocation2 + $0xe8] sm:$0x3] %vm306, 0.0
        %335 = vst.msk [vmem:[#allocation2 + $0xf0] sm:$0xff] %vm303, 0.0
        %336 = vst.msk [vmem:[#allocation2 + $0xf8] sm:$0xff] %vm303, 0.0
        %337 = vst.msk [vmem:[#allocation2 + $0x100] sm:$0x3] %vm306, 0.0
        %338 = vst.msk [vmem:[#allocation2 + $0x108] sm:$0xff] %vm303, 0.0
        %339 = vst.msk [vmem:[#allocation2 + $0x110] sm:$0xff] %vm303, 0.0
        %340 = vst.msk [vmem:[#allocation2 + $0x118] sm:$0x3] %vm306, 0.0
        %341 = vst.msk [vmem:[#allocation2 + $0x120] sm:$0xff] %vm303, 0.0
        %342 = vst.msk [vmem:[#allocation2 + $0x128] sm:$0xff] %vm303, 0.0
        %343 = vst.msk [vmem:[#allocation2 + $0x130] sm:$0x3] %vm306, 0.0
        %344 = vst.msk [vmem:[#allocation2 + $0x138] sm:$0xff] %vm303, 0.0
        %345 = vst.msk [vmem:[#allocation2 + $0x140] sm:$0xff] %vm303, 0.0
        %346 = vst.msk [vmem:[#allocation2 + $0x148] sm:$0x3] %vm306, 0.0
        %347 = vst.msk [vmem:[#allocation2 + $0x150] sm:$0xff] %vm303, 0.0
        %348 = vst.msk [vmem:[#allocation2 + $0x158] sm:$0xff] %vm303, 0.0
        %349 = vst.msk [vmem:[#allocation2 + $0x160] sm:$0x3] %vm306, 0.0
        %350 = vst.msk [vmem:[#allocation2 + $0x168] sm:$0xff] %vm303, 0.0
        %351 = vst.msk [vmem:[#allocation2 + $0x170] sm:$0xff] %vm303, 0.0
        %352 = vst.msk [vmem:[#allocation2 + $0x178] sm:$0x3] %vm306, 0.0
        %353 = vst.msk [vmem:[#allocation2 + $0x180] sm:$0xff] %vm303, 0.0
        %354 = vst.msk [vmem:[#allocation2 + $0x188] sm:$0xff] %vm303, 0.0
        %355 = vst.msk [vmem:[#allocation2 + $0x190] sm:$0x3] %vm306, 0.0
        %356 = vst.msk [vmem:[#allocation2 + $0x198] sm:$0xff] %vm303, 0.0
        %357 = vst.msk [vmem:[#allocation2 + $0x1a0] sm:$0xff] %vm303, 0.0
        %358 = vst.msk [vmem:[#allocation2 + $0x1a8] sm:$0x3] %vm306, 0.0
        %v359 = vld [vmem:[%s278] sm:$0xff]
        %v360 = vld [vmem:[%s278 + $0x8] sm:$0xff]
        %v361 = vld [vmem:[%s278 + $0x10] sm:$0xff]
        %v362 = vld [vmem:[%s278 + $0x18] sm:$0xff]
        %v363 = vld [vmem:[%s278 + $0x20] sm:$0xff]
        %v364 = vld [vmem:[%s278 + $0x28] sm:$0xff]
        %v365 = vld [vmem:[%s278 + $0x30] sm:$0xff]
        %v366 = vld [vmem:[%s278 + $0x38] sm:$0xff]
        %v367 = vld [vmem:[%s278 + $0x40] sm:$0xff]
        %v368 = vld [vmem:[%s278 + $0x48] sm:$0xff]
        %v369 = vld [vmem:[%s278 + $0x50] sm:$0xff]
        %v370 = vld [vmem:[%s278 + $0x58] sm:$0xff]
        %v371 = vld [vmem:[%s278 + $0x60] sm:$0xff]
        %v372 = vld [vmem:[%s278 + $0x68] sm:$0xff]
        %v373 = vld [vmem:[%s278 + $0x70] sm:$0xff]
        %v374 = vld [vmem:[%s278 + $0x78] sm:$0xff]
        %v375 = vld [vmem:[%s278 + $0x80] sm:$0xff]
        %v376 = vld [vmem:[%s278 + $0x88] sm:$0xff]
        %v377 = vld [vmem:[%s278 + $0x90] sm:$0xff]
        %v378 = vld [vmem:[%s278 + $0x98] sm:$0xff]
        %v379 = vld [vmem:[%s278 + $0xa0] sm:$0xff]
        %v380 = vld [vmem:[%s278 + $0xa8] sm:$0xff]
        %v381 = vld [vmem:[%s278 + $0xb0] sm:$0xff]
        %v382 = vld [vmem:[%s278 + $0xb8] sm:$0xff]
        %v383 = vld [vmem:[%s278 + $0xc0] sm:$0xff]
        %v384 = vld [vmem:[%s278 + $0xc8] sm:$0xff]
        %v385 = vld [vmem:[%s278 + $0xd0] sm:$0xff]
        %v386 = vld [vmem:[%s278 + $0xd8] sm:$0xff]
        %v387 = vld [vmem:[%s278 + $0xe0] sm:$0xff]
        %v388 = vld [vmem:[%s278 + $0xe8] sm:$0xff]
        %v389 = vld [vmem:[%s278 + $0xf0] sm:$0xff]
        %v390 = vld [vmem:[%s278 + $0xf8] sm:$0xff]
        %v391 = vld [vmem:[%s3] sm:$0x1]
        %v393 = vlaneseq
        %v394 = vshrl.u32 %v393, 7
        %v395 = vsub.s32 0, %v394
        %v396 = vrot.slane %v391, %v395
        %v398 = vmul.f32 %v359, %v396
        %v399 = vmul.f32 %v360, %v396
        %v400 = vmul.f32 %v361, %v396
        %v401 = vmul.f32 %v362, %v396
        %v402 = vmul.f32 %v363, %v396
        %v403 = vmul.f32 %v364, %v396
        %v404 = vmul.f32 %v365, %v396
        %v405 = vmul.f32 %v366, %v396
        %v406 = vmul.f32 %v367, %v396
        %v407 = vmul.f32 %v368, %v396
        %v408 = vmul.f32 %v369, %v396
        %v409 = vmul.f32 %v370, %v396
        %v410 = vmul.f32 %v371, %v396
        %v411 = vmul.f32 %v372, %v396
        %v412 = vmul.f32 %v373, %v396
        %v413 = vmul.f32 %v374, %v396
        %v414 = vmul.f32 %v375, %v396
        %v415 = vmul.f32 %v376, %v396
        %v416 = vmul.f32 %v377, %v396
        %v417 = vmul.f32 %v378, %v396
        %v418 = vmul.f32 %v379, %v396
        %v419 = vmul.f32 %v380, %v396
        %v420 = vmul.f32 %v381, %v396
        %v421 = vmul.f32 %v382, %v396
        %v422 = vmul.f32 %v383, %v396
        %v423 = vmul.f32 %v384, %v396
        %v424 = vmul.f32 %v385, %v396
        %v425 = vmul.f32 %v386, %v396
        %v426 = vmul.f32 %v387, %v396
        %v427 = vmul.f32 %v388, %v396
        %v428 = vmul.f32 %v389, %v396
        %v429 = vmul.f32 %v390, %v396
        %v430 = vld [vmem:[%s4] sm:$0x1]
        %v432 = vlaneseq
        %v433 = vshrl.u32 %v432, 7
        %v434 = vsub.s32 0, %v433
        %v435 = vrot.slane %v430, %v434
        %v437 = vadd.f32 %v398, %v435
        %v438 = vadd.f32 %v399, %v435
        %v439 = vadd.f32 %v400, %v435
        %v440 = vadd.f32 %v401, %v435
        %v441 = vadd.f32 %v402, %v435
        %v442 = vadd.f32 %v403, %v435
        %v443 = vadd.f32 %v404, %v435
        %v444 = vadd.f32 %v405, %v435
        %v445 = vadd.f32 %v406, %v435
        %v446 = vadd.f32 %v407, %v435
        %v447 = vadd.f32 %v408, %v435
        %v448 = vadd.f32 %v409, %v435
        %v449 = vadd.f32 %v410, %v435
        %v450 = vadd.f32 %v411, %v435
        %v451 = vadd.f32 %v412, %v435
        %v452 = vadd.f32 %v413, %v435
        %v453 = vadd.f32 %v414, %v435
        %v454 = vadd.f32 %v415, %v435
        %v455 = vadd.f32 %v416, %v435
        %v456 = vadd.f32 %v417, %v435
        %v457 = vadd.f32 %v418, %v435
        %v458 = vadd.f32 %v419, %v435
        %v459 = vadd.f32 %v420, %v435
        %v460 = vadd.f32 %v421, %v435
        %v461 = vadd.f32 %v422, %v435
        %v462 = vadd.f32 %v423, %v435
        %v463 = vadd.f32 %v424, %v435
        %v464 = vadd.f32 %v425, %v435
        %v465 = vadd.f32 %v426, %v435
        %v466 = vadd.f32 %v427, %v435
        %v467 = vadd.f32 %v428, %v435
        %v468 = vadd.f32 %v429, %v435
        %v469 = vmax.f32 %v437, 0.0
        %v470 = vmax.f32 %v438, 0.0
        %v471 = vmax.f32 %v439, 0.0
        %v472 = vmax.f32 %v440, 0.0
        %v473 = vmax.f32 %v441, 0.0
        %v474 = vmax.f32 %v442, 0.0
        %v475 = vmax.f32 %v443, 0.0
        %v476 = vmax.f32 %v444, 0.0
        %v477 = vmax.f32 %v445, 0.0
        %v478 = vmax.f32 %v446, 0.0
        %v479 = vmax.f32 %v447, 0.0
        %v480 = vmax.f32 %v448, 0.0
        %v481 = vmax.f32 %v449, 0.0
        %v482 = vmax.f32 %v450, 0.0
        %v483 = vmax.f32 %v451, 0.0
        %v484 = vmax.f32 %v452, 0.0
        %v485 = vmax.f32 %v453, 0.0
        %v486 = vmax.f32 %v454, 0.0
        %v487 = vmax.f32 %v455, 0.0
        %v488 = vmax.f32 %v456, 0.0
        %v489 = vmax.f32 %v457, 0.0
        %v490 = vmax.f32 %v458, 0.0
        %v491 = vmax.f32 %v459, 0.0
        %v492 = vmax.f32 %v460, 0.0
        %v493 = vmax.f32 %v461, 0.0
        %v494 = vmax.f32 %v462, 0.0
        %v495 = vmax.f32 %v463, 0.0
        %v496 = vmax.f32 %v464, 0.0
        %v497 = vmax.f32 %v465, 0.0
        %v498 = vmax.f32 %v466, 0.0
        %v499 = vmax.f32 %v467, 0.0
        %v500 = vmax.f32 %v468, 0.0
        %s501 = scalar_lea.vmem [#allocation2], 24
        %502 = vst.msk [vmem:[%s501 + $0x1] sm:$0xff] %vm303, %v469
        %503 = vst.msk [vmem:[%s501 + $0x9] sm:$0xff] %vm303, %v470
        %504 = vst.msk [vmem:[%s501 + $0x19] sm:$0xff] %vm303, %v471
        %505 = vst.msk [vmem:[%s501 + $0x21] sm:$0xff] %vm303, %v472
        %506 = vst.msk [vmem:[%s501 + $0x31] sm:$0xff] %vm303, %v473
        %507 = vst.msk [vmem:[%s501 + $0x39] sm:$0xff] %vm303, %v474
        %508 = vst.msk [vmem:[%s501 + $0x49] sm:$0xff] %vm303, %v475
        %509 = vst.msk [vmem:[%s501 + $0x51] sm:$0xff] %vm303, %v476
        %510 = vst.msk [vmem:[%s501 + $0x61] sm:$0xff] %vm303, %v477
        %511 = vst.msk [vmem:[%s501 + $0x69] sm:$0xff] %vm303, %v478
        %512 = vst.msk [vmem:[%s501 + $0x79] sm:$0xff] %vm303, %v479
        %513 = vst.msk [vmem:[%s501 + $0x81] sm:$0xff] %vm303, %v480
        %514 = vst.msk [vmem:[%s501 + $0x91] sm:$0xff] %vm303, %v481
        %515 = vst.msk [vmem:[%s501 + $0x99] sm:$0xff] %vm303, %v482
        %516 = vst.msk [vmem:[%s501 + $0xa9] sm:$0xff] %vm303, %v483
        %517 = vst.msk [vmem:[%s501 + $0xb1] sm:$0xff] %vm303, %v484
        %518 = vst.msk [vmem:[%s501 + $0xc1] sm:$0xff] %vm303, %v485
        %519 = vst.msk [vmem:[%s501 + $0xc9] sm:$0xff] %vm303, %v486
        %520 = vst.msk [vmem:[%s501 + $0xd9] sm:$0xff] %vm303, %v487
        %521 = vst.msk [vmem:[%s501 + $0xe1] sm:$0xff] %vm303, %v488
        %522 = vst.msk [vmem:[%s501 + $0xf1] sm:$0xff] %vm303, %v489
        %523 = vst.msk [vmem:[%s501 + $0xf9] sm:$0xff] %vm303, %v490
        %524 = vst.msk [vmem:[%s501 + $0x109] sm:$0xff] %vm303, %v491
        %525 = vst.msk [vmem:[%s501 + $0x111] sm:$0xff] %vm303, %v492
        %526 = vst.msk [vmem:[%s501 + $0x121] sm:$0xff] %vm303, %v493
        %527 = vst.msk [vmem:[%s501 + $0x129] sm:$0xff] %vm303, %v494
        %528 = vst.msk [vmem:[%s501 + $0x139] sm:$0xff] %vm303, %v495
        %529 = vst.msk [vmem:[%s501 + $0x141] sm:$0xff] %vm303, %v496
        %530 = vst.msk [vmem:[%s501 + $0x151] sm:$0xff] %vm303, %v497
        %531 = vst.msk [vmem:[%s501 + $0x159] sm:$0xff] %vm303, %v498
        %532 = vst.msk [vmem:[%s501 + $0x169] sm:$0xff] %vm303, %v499
        %533 = vst.msk [vmem:[%s501 + $0x171] sm:$0xff] %vm303, %v500
      $region44: #{encoder_block_forward.4} parent=39 // pred_fallthru
        _
      %s534 = smul.u32 %s23, 8
      %s535 = smul.u32 %s534, 24
      %s536 = scalar_lea.vmem [#allocation2], %s535
      %v537 = vld [vmem:[%s536] sm:$0xff]
      %v538 = vld [vmem:[%s536 + $0x8] sm:$0xff]
      %v539 = vld [vmem:[%s536 + $0x18] sm:$0xff]
      %v540 = vld [vmem:[%s536 + $0x20] sm:$0xff]
      %v541 = vld [vmem:[%s536 + $0x30] sm:$0xff]
      %v542 = vld [vmem:[%s536 + $0x38] sm:$0xff]
      %v543 = vld [vmem:[%s536 + $0x48] sm:$0xff]
      %v544 = vld [vmem:[%s536 + $0x50] sm:$0xff]
      %v545 = vld [vmem:[%s536 + $0x60] sm:$0xff]
      %v546 = vld [vmem:[%s536 + $0x68] sm:$0xff]
      %v547 = vld [vmem:[%s536 + $0x78] sm:$0xff]
      %v548 = vld [vmem:[%s536 + $0x80] sm:$0xff]
      %v549 = vld [vmem:[%s536 + $0x90] sm:$0xff]
      %v550 = vld [vmem:[%s536 + $0x98] sm:$0xff]
      %v551 = vld [vmem:[%s536 + $0xa8] sm:$0xff]
      %v552 = vld [vmem:[%s536 + $0xb0] sm:$0xff]
      %vm553 = vcmask 64512
      %554 = vst.msk [vmem:[#allocation3] sm:$0xff] %vm553, %v537
      %555 = vst.msk [vmem:[#allocation3 + $0x8] sm:$0xff] %vm553, %v538
      %556 = vst.msk [vmem:[#allocation3 + $0x10] sm:$0xff] %vm553, %v539
      %557 = vst.msk [vmem:[#allocation3 + $0x18] sm:$0xff] %vm553, %v540
      %558 = vst.msk [vmem:[#allocation3 + $0x20] sm:$0xff] %vm553, %v541
      %559 = vst.msk [vmem:[#allocation3 + $0x28] sm:$0xff] %vm553, %v542
      %560 = vst.msk [vmem:[#allocation3 + $0x30] sm:$0xff] %vm553, %v543
      %561 = vst.msk [vmem:[#allocation3 + $0x38] sm:$0xff] %vm553, %v544
      %562 = vst.msk [vmem:[#allocation3 + $0x40] sm:$0xff] %vm553, %v545
      %563 = vst.msk [vmem:[#allocation3 + $0x48] sm:$0xff] %vm553, %v546
      %564 = vst.msk [vmem:[#allocation3 + $0x50] sm:$0xff] %vm553, %v547
      %565 = vst.msk [vmem:[#allocation3 + $0x58] sm:$0xff] %vm553, %v548
      %566 = vst.msk [vmem:[#allocation3 + $0x60] sm:$0xff] %vm553, %v549
      %567 = vst.msk [vmem:[#allocation3 + $0x68] sm:$0xff] %vm553, %v550
      %568 = vst.msk [vmem:[#allocation3 + $0x70] sm:$0xff] %vm553, %v551
      %569 = vst.msk [vmem:[#allocation3 + $0x78] sm:$0xff] %vm553, %v552
      %v570 = vld [vmem:[%s536 + $0x1] sm:$0xff]
      %v571 = vld [vmem:[%s536 + $0x9] sm:$0xff]
      %v572 = vld [vmem:[%s536 + $0x19] sm:$0xff]
      %v573 = vld [vmem:[%s536 + $0x21] sm:$0xff]
      %v574 = vld [vmem:[%s536 + $0x31] sm:$0xff]
      %v575 = vld [vmem:[%s536 + $0x39] sm:$0xff]
      %v576 = vld [vmem:[%s536 + $0x49] sm:$0xff]
      %v577 = vld [vmem:[%s536 + $0x51] sm:$0xff]
      %v578 = vld [vmem:[%s536 + $0x61] sm:$0xff]
      %v579 = vld [vmem:[%s536 + $0x69] sm:$0xff]
      %v580 = vld [vmem:[%s536 + $0x79] sm:$0xff]
      %v581 = vld [vmem:[%s536 + $0x81] sm:$0xff]
      %v582 = vld [vmem:[%s536 + $0x91] sm:$0xff]
      %v583 = vld [vmem:[%s536 + $0x99] sm:$0xff]
      %v584 = vld [vmem:[%s536 + $0xa9] sm:$0xff]
      %v585 = vld [vmem:[%s536 + $0xb1] sm:$0xff]
      %602 = vrot.lane.b32.xlu0 %v570, 8
      %v603 = vpop.permute.xlu0 %602
      %604 = vrot.lane.b32.xlu0 %v571, 8
      %v605 = vpop.permute.xlu0 %604
      %606 = vrot.lane.b32.xlu0 %v572, 8
      %v607 = vpop.permute.xlu0 %606
      %608 = vrot.lane.b32.xlu0 %v573, 8
      %v609 = vpop.permute.xlu0 %608
      %610 = vrot.lane.b32.xlu0 %v574, 8
      %v611 = vpop.permute.xlu0 %610
      %612 = vrot.lane.b32.xlu0 %v575, 8
      %v613 = vpop.permute.xlu0 %612
      %614 = vrot.lane.b32.xlu0 %v576, 8
      %v615 = vpop.permute.xlu0 %614
      %616 = vrot.lane.b32.xlu0 %v577, 8
      %v617 = vpop.permute.xlu0 %616
      %618 = vrot.lane.b32.xlu0 %v578, 8
      %v619 = vpop.permute.xlu0 %618
      %620 = vrot.lane.b32.xlu0 %v579, 8
      %v621 = vpop.permute.xlu0 %620
      %622 = vrot.lane.b32.xlu0 %v580, 8
      %v623 = vpop.permute.xlu0 %622
      %624 = vrot.lane.b32.xlu0 %v581, 8
      %v625 = vpop.permute.xlu0 %624
      %626 = vrot.lane.b32.xlu0 %v582, 8
      %v627 = vpop.permute.xlu0 %626
      %628 = vrot.lane.b32.xlu0 %v583, 8
      %v629 = vpop.permute.xlu0 %628
      %630 = vrot.lane.b32.xlu0 %v584, 8
      %v631 = vpop.permute.xlu0 %630
      %632 = vrot.lane.b32.xlu0 %v585, 8
      %v633 = vpop.permute.xlu0 %632
      %vm650 = vcmask 130112
      %651 = vst.msk [vmem:[#allocation3] sm:$0xff] %vm650, %v603
      %652 = vst.msk [vmem:[#allocation3 + $0x8] sm:$0xff] %vm650, %v605
      %653 = vst.msk [vmem:[#allocation3 + $0x10] sm:$0xff] %vm650, %v607
      %654 = vst.msk [vmem:[#allocation3 + $0x18] sm:$0xff] %vm650, %v609
      %655 = vst.msk [vmem:[#allocation3 + $0x20] sm:$0xff] %vm650, %v611
      %656 = vst.msk [vmem:[#allocation3 + $0x28] sm:$0xff] %vm650, %v613
      %657 = vst.msk [vmem:[#allocation3 + $0x30] sm:$0xff] %vm650, %v615
      %658 = vst.msk [vmem:[#allocation3 + $0x38] sm:$0xff] %vm650, %v617
      %659 = vst.msk [vmem:[#allocation3 + $0x40] sm:$0xff] %vm650, %v619
      %660 = vst.msk [vmem:[#allocation3 + $0x48] sm:$0xff] %vm650, %v621
      %661 = vst.msk [vmem:[#allocation3 + $0x50] sm:$0xff] %vm650, %v623
      %662 = vst.msk [vmem:[#allocation3 + $0x58] sm:$0xff] %vm650, %v625
      %663 = vst.msk [vmem:[#allocation3 + $0x60] sm:$0xff] %vm650, %v627
      %664 = vst.msk [vmem:[#allocation3 + $0x68] sm:$0xff] %vm650, %v629
      %665 = vst.msk [vmem:[#allocation3 + $0x70] sm:$0xff] %vm650, %v631
      %666 = vst.msk [vmem:[#allocation3 + $0x78] sm:$0xff] %vm650, %v633
      %v667 = vld [vmem:[%s536 + $0x2] sm:$0xff]
      %v668 = vld [vmem:[%s536 + $0xa] sm:$0xff]
      %v669 = vld [vmem:[%s536 + $0x1a] sm:$0xff]
      %v670 = vld [vmem:[%s536 + $0x22] sm:$0xff]
      %v671 = vld [vmem:[%s536 + $0x32] sm:$0xff]
      %v672 = vld [vmem:[%s536 + $0x3a] sm:$0xff]
      %v673 = vld [vmem:[%s536 + $0x4a] sm:$0xff]
      %v674 = vld [vmem:[%s536 + $0x52] sm:$0xff]
      %v675 = vld [vmem:[%s536 + $0x62] sm:$0xff]
      %v676 = vld [vmem:[%s536 + $0x6a] sm:$0xff]
      %v677 = vld [vmem:[%s536 + $0x7a] sm:$0xff]
      %v678 = vld [vmem:[%s536 + $0x82] sm:$0xff]
      %v679 = vld [vmem:[%s536 + $0x92] sm:$0xff]
      %v680 = vld [vmem:[%s536 + $0x9a] sm:$0xff]
      %v681 = vld [vmem:[%s536 + $0xaa] sm:$0xff]
      %v682 = vld [vmem:[%s536 + $0xb2] sm:$0xff]
      %699 = vrot.lane.b32.xlu0 %v667, 16
      %v700 = vpop.permute.xlu0 %699
      %701 = vrot.lane.b32.xlu0 %v668, 16
      %v702 = vpop.permute.xlu0 %701
      %703 = vrot.lane.b32.xlu0 %v669, 16
      %v704 = vpop.permute.xlu0 %703
      %705 = vrot.lane.b32.xlu0 %v670, 16
      %v706 = vpop.permute.xlu0 %705
      %707 = vrot.lane.b32.xlu0 %v671, 16
      %v708 = vpop.permute.xlu0 %707
      %709 = vrot.lane.b32.xlu0 %v672, 16
      %v710 = vpop.permute.xlu0 %709
      %711 = vrot.lane.b32.xlu0 %v673, 16
      %v712 = vpop.permute.xlu0 %711
      %713 = vrot.lane.b32.xlu0 %v674, 16
      %v714 = vpop.permute.xlu0 %713
      %715 = vrot.lane.b32.xlu0 %v675, 16
      %v716 = vpop.permute.xlu0 %715
      %717 = vrot.lane.b32.xlu0 %v676, 16
      %v718 = vpop.permute.xlu0 %717
      %719 = vrot.lane.b32.xlu0 %v677, 16
      %v720 = vpop.permute.xlu0 %719
      %721 = vrot.lane.b32.xlu0 %v678, 16
      %v722 = vpop.permute.xlu0 %721
      %723 = vrot.lane.b32.xlu0 %v679, 16
      %v724 = vpop.permute.xlu0 %723
      %725 = vrot.lane.b32.xlu0 %v680, 16
      %v726 = vpop.permute.xlu0 %725
      %727 = vrot.lane.b32.xlu0 %v681, 16
      %v728 = vpop.permute.xlu0 %727
      %729 = vrot.lane.b32.xlu0 %v682, 16
      %v730 = vpop.permute.xlu0 %729
      %vm747 = vcmask 195712
      %748 = vst.msk [vmem:[#allocation3] sm:$0xff] %vm747, %v700
      %749 = vst.msk [vmem:[#allocation3 + $0x8] sm:$0xff] %vm747, %v702
      %750 = vst.msk [vmem:[#allocation3 + $0x10] sm:$0xff] %vm747, %v704
      %751 = vst.msk [vmem:[#allocation3 + $0x18] sm:$0xff] %vm747, %v706
      %752 = vst.msk [vmem:[#allocation3 + $0x20] sm:$0xff] %vm747, %v708
      %753 = vst.msk [vmem:[#allocation3 + $0x28] sm:$0xff] %vm747, %v710
      %754 = vst.msk [vmem:[#allocation3 + $0x30] sm:$0xff] %vm747, %v712
      %755 = vst.msk [vmem:[#allocation3 + $0x38] sm:$0xff] %vm747, %v714
      %756 = vst.msk [vmem:[#allocation3 + $0x40] sm:$0xff] %vm747, %v716
      %757 = vst.msk [vmem:[#allocation3 + $0x48] sm:$0xff] %vm747, %v718
      %758 = vst.msk [vmem:[#allocation3 + $0x50] sm:$0xff] %vm747, %v720
      %759 = vst.msk [vmem:[#allocation3 + $0x58] sm:$0xff] %vm747, %v722
      %760 = vst.msk [vmem:[#allocation3 + $0x60] sm:$0xff] %vm747, %v724
      %761 = vst.msk [vmem:[#allocation3 + $0x68] sm:$0xff] %vm747, %v726
      %762 = vst.msk [vmem:[#allocation3 + $0x70] sm:$0xff] %vm747, %v728
      %763 = vst.msk [vmem:[#allocation3 + $0x78] sm:$0xff] %vm747, %v730
      %s764 = sadd.s32 %s534, 1
      %s765 = smul.u32 %s764, 24
      %s766 = scalar_lea.vmem [#allocation2], %s765
      %v767 = vld [vmem:[%s766] sm:$0xff]
      %v768 = vld [vmem:[%s766 + $0x8] sm:$0xff]
      %v769 = vld [vmem:[%s766 + $0x18] sm:$0xff]
      %v770 = vld [vmem:[%s766 + $0x20] sm:$0xff]
      %v771 = vld [vmem:[%s766 + $0x30] sm:$0xff]
      %v772 = vld [vmem:[%s766 + $0x38] sm:$0xff]
      %v773 = vld [vmem:[%s766 + $0x48] sm:$0xff]
      %v774 = vld [vmem:[%s766 + $0x50] sm:$0xff]
      %v775 = vld [vmem:[%s766 + $0x60] sm:$0xff]
      %v776 = vld [vmem:[%s766 + $0x68] sm:$0xff]
      %v777 = vld [vmem:[%s766 + $0x78] sm:$0xff]
      %v778 = vld [vmem:[%s766 + $0x80] sm:$0xff]
      %v779 = vld [vmem:[%s766 + $0x90] sm:$0xff]
      %v780 = vld [vmem:[%s766 + $0x98] sm:$0xff]
      %v781 = vld [vmem:[%s766 + $0xa8] sm:$0xff]
      %v782 = vld [vmem:[%s766 + $0xb0] sm:$0xff]
      %799 = vrot.lane.b32.xlu0 %v767, 24
      %v800 = vpop.permute.xlu0 %799
      %801 = vrot.lane.b32.xlu0 %v768, 24
      %v802 = vpop.permute.xlu0 %801
      %803 = vrot.lane.b32.xlu0 %v769, 24
      %v804 = vpop.permute.xlu0 %803
      %805 = vrot.lane.b32.xlu0 %v770, 24
      %v806 = vpop.permute.xlu0 %805
      %807 = vrot.lane.b32.xlu0 %v771, 24
      %v808 = vpop.permute.xlu0 %807
      %809 = vrot.lane.b32.xlu0 %v772, 24
      %v810 = vpop.permute.xlu0 %809
      %811 = vrot.lane.b32.xlu0 %v773, 24
      %v812 = vpop.permute.xlu0 %811
      %813 = vrot.lane.b32.xlu0 %v774, 24
      %v814 = vpop.permute.xlu0 %813
      %815 = vrot.lane.b32.xlu0 %v775, 24
      %v816 = vpop.permute.xlu0 %815
      %817 = vrot.lane.b32.xlu0 %v776, 24
      %v818 = vpop.permute.xlu0 %817
      %819 = vrot.lane.b32.xlu0 %v777, 24
      %v820 = vpop.permute.xlu0 %819
      %821 = vrot.lane.b32.xlu0 %v778, 24
      %v822 = vpop.permute.xlu0 %821
      %823 = vrot.lane.b32.xlu0 %v779, 24
      %v824 = vpop.permute.xlu0 %823
      %825 = vrot.lane.b32.xlu0 %v780, 24
      %v826 = vpop.permute.xlu0 %825
      %827 = vrot.lane.b32.xlu0 %v781, 24
      %v828 = vpop.permute.xlu0 %827
      %829 = vrot.lane.b32.xlu0 %v782, 24
      %v830 = vpop.permute.xlu0 %829
      %vm847 = vcmask 261312
      %848 = vst.msk [vmem:[#allocation3] sm:$0xff] %vm847, %v800
      %849 = vst.msk [vmem:[#allocation3 + $0x8] sm:$0xff] %vm847, %v802
      %850 = vst.msk [vmem:[#allocation3 + $0x10] sm:$0xff] %vm847, %v804
      %851 = vst.msk [vmem:[#allocation3 + $0x18] sm:$0xff] %vm847, %v806
      %852 = vst.msk [vmem:[#allocation3 + $0x20] sm:$0xff] %vm847, %v808
      %853 = vst.msk [vmem:[#allocation3 + $0x28] sm:$0xff] %vm847, %v810
      %854 = vst.msk [vmem:[#allocation3 + $0x30] sm:$0xff] %vm847, %v812
      %855 = vst.msk [vmem:[#allocation3 + $0x38] sm:$0xff] %vm847, %v814
      %856 = vst.msk [vmem:[#allocation3 + $0x40] sm:$0xff] %vm847, %v816
      %857 = vst.msk [vmem:[#allocation3 + $0x48] sm:$0xff] %vm847, %v818
      %858 = vst.msk [vmem:[#allocation3 + $0x50] sm:$0xff] %vm847, %v820
      %859 = vst.msk [vmem:[#allocation3 + $0x58] sm:$0xff] %vm847, %v822
      %860 = vst.msk [vmem:[#allocation3 + $0x60] sm:$0xff] %vm847, %v824
      %861 = vst.msk [vmem:[#allocation3 + $0x68] sm:$0xff] %vm847, %v826
      %862 = vst.msk [vmem:[#allocation3 + $0x70] sm:$0xff] %vm847, %v828
      %863 = vst.msk [vmem:[#allocation3 + $0x78] sm:$0xff] %vm847, %v830
      %v864 = vld [vmem:[%s766 + $0x1] sm:$0xff]
      %v865 = vld [vmem:[%s766 + $0x9] sm:$0xff]
      %v866 = vld [vmem:[%s766 + $0x19] sm:$0xff]
      %v867 = vld [vmem:[%s766 + $0x21] sm:$0xff]
      %v868 = vld [vmem:[%s766 + $0x31] sm:$0xff]
      %v869 = vld [vmem:[%s766 + $0x39] sm:$0xff]
      %v870 = vld [vmem:[%s766 + $0x49] sm:$0xff]
      %v871 = vld [vmem:[%s766 + $0x51] sm:$0xff]
      %v872 = vld [vmem:[%s766 + $0x61] sm:$0xff]
      %v873 = vld [vmem:[%s766 + $0x69] sm:$0xff]
      %v874 = vld [vmem:[%s766 + $0x79] sm:$0xff]
      %v875 = vld [vmem:[%s766 + $0x81] sm:$0xff]
      %v876 = vld [vmem:[%s766 + $0x91] sm:$0xff]
      %v877 = vld [vmem:[%s766 + $0x99] sm:$0xff]
      %v878 = vld [vmem:[%s766 + $0xa9] sm:$0xff]
      %v879 = vld [vmem:[%s766 + $0xb1] sm:$0xff]
      %896 = vrot.lane.b32.xlu0 %v864, 32
      %v897 = vpop.permute.xlu0 %896
      %898 = vrot.lane.b32.xlu0 %v865, 32
      %v899 = vpop.permute.xlu0 %898
      %900 = vrot.lane.b32.xlu0 %v866, 32
      %v901 = vpop.permute.xlu0 %900
      %902 = vrot.lane.b32.xlu0 %v867, 32
      %v903 = vpop.permute.xlu0 %902
      %904 = vrot.lane.b32.xlu0 %v868, 32
      %v905 = vpop.permute.xlu0 %904
      %906 = vrot.lane.b32.xlu0 %v869, 32
      %v907 = vpop.permute.xlu0 %906
      %908 = vrot.lane.b32.xlu0 %v870, 32
      %v909 = vpop.permute.xlu0 %908
      %910 = vrot.lane.b32.xlu0 %v871, 32
      %v911 = vpop.permute.xlu0 %910
      %912 = vrot.lane.b32.xlu0 %v872, 32
      %v913 = vpop.permute.xlu0 %912
      %914 = vrot.lane.b32.xlu0 %v873, 32
      %v915 = vpop.permute.xlu0 %914
      %916 = vrot.lane.b32.xlu0 %v874, 32
      %v917 = vpop.permute.xlu0 %916
      %918 = vrot.lane.b32.xlu0 %v875, 32
      %v919 = vpop.permute.xlu0 %918
      %920 = vrot.lane.b32.xlu0 %v876, 32
      %v921 = vpop.permute.xlu0 %920
      %922 = vrot.lane.b32.xlu0 %v877, 32
      %v923 = vpop.permute.xlu0 %922
      %924 = vrot.lane.b32.xlu0 %v878, 32
      %v925 = vpop.permute.xlu0 %924
      %926 = vrot.lane.b32.xlu0 %v879, 32
      %v927 = vpop.permute.xlu0 %926
      %vm944 = vcmask 326912
      %945 = vst.msk [vmem:[#allocation3] sm:$0xff] %vm944, %v897
      %946 = vst.msk [vmem:[#allocation3 + $0x8] sm:$0xff] %vm944, %v899
      %947 = vst.msk [vmem:[#allocation3 + $0x10] sm:$0xff] %vm944, %v901
      %948 = vst.msk [vmem:[#allocation3 + $0x18] sm:$0xff] %vm944, %v903
      %949 = vst.msk [vmem:[#allocation3 + $0x20] sm:$0xff] %vm944, %v905
      %950 = vst.msk [vmem:[#allocation3 + $0x28] sm:$0xff] %vm944, %v907
      %951 = vst.msk [vmem:[#allocation3 + $0x30] sm:$0xff] %vm944, %v909
      %952 = vst.msk [vmem:[#allocation3 + $0x38] sm:$0xff] %vm944, %v911
      %953 = vst.msk [vmem:[#allocation3 + $0x40] sm:$0xff] %vm944, %v913
      %954 = vst.msk [vmem:[#allocation3 + $0x48] sm:$0xff] %vm944, %v915
      %955 = vst.msk [vmem:[#allocation3 + $0x50] sm:$0xff] %vm944, %v917
      %956 = vst.msk [vmem:[#allocation3 + $0x58] sm:$0xff] %vm944, %v919
      %957 = vst.msk [vmem:[#allocation3 + $0x60] sm:$0xff] %vm944, %v921
      %958 = vst.msk [vmem:[#allocation3 + $0x68] sm:$0xff] %vm944, %v923
      %959 = vst.msk [vmem:[#allocation3 + $0x70] sm:$0xff] %vm944, %v925
      %960 = vst.msk [vmem:[#allocation3 + $0x78] sm:$0xff] %vm944, %v927
      %v961 = vld [vmem:[%s766 + $0x2] sm:$0xff]
      %v962 = vld [vmem:[%s766 + $0xa] sm:$0xff]
      %v963 = vld [vmem:[%s766 + $0x1a] sm:$0xff]
      %v964 = vld [vmem:[%s766 + $0x22] sm:$0xff]
      %v965 = vld [vmem:[%s766 + $0x32] sm:$0xff]
      %v966 = vld [vmem:[%s766 + $0x3a] sm:$0xff]
      %v967 = vld [vmem:[%s766 + $0x4a] sm:$0xff]
      %v968 = vld [vmem:[%s766 + $0x52] sm:$0xff]
      %v969 = vld [vmem:[%s766 + $0x62] sm:$0xff]
      %v970 = vld [vmem:[%s766 + $0x6a] sm:$0xff]
      %v971 = vld [vmem:[%s766 + $0x7a] sm:$0xff]
      %v972 = vld [vmem:[%s766 + $0x82] sm:$0xff]
      %v973 = vld [vmem:[%s766 + $0x92] sm:$0xff]
      %v974 = vld [vmem:[%s766 + $0x9a] sm:$0xff]
      %v975 = vld [vmem:[%s766 + $0xaa] sm:$0xff]
      %v976 = vld [vmem:[%s766 + $0xb2] sm:$0xff]
      %993 = vrot.lane.b32.xlu0 %v961, 40
      %v994 = vpop.permute.xlu0 %993
      %995 = vrot.lane.b32.xlu0 %v962, 40
      %v996 = vpop.permute.xlu0 %995
      %997 = vrot.lane.b32.xlu0 %v963, 40
      %v998 = vpop.permute.xlu0 %997
      %999 = vrot.lane.b32.xlu0 %v964, 40
      %v1000 = vpop.permute.xlu0 %999
      %1001 = vrot.lane.b32.xlu0 %v965, 40
      %v1002 = vpop.permute.xlu0 %1001
      %1003 = vrot.lane.b32.xlu0 %v966, 40
      %v1004 = vpop.permute.xlu0 %1003
      %1005 = vrot.lane.b32.xlu0 %v967, 40
      %v1006 = vpop.permute.xlu0 %1005
      %1007 = vrot.lane.b32.xlu0 %v968, 40
      %v1008 = vpop.permute.xlu0 %1007
      %1009 = vrot.lane.b32.xlu0 %v969, 40
      %v1010 = vpop.permute.xlu0 %1009
      %1011 = vrot.lane.b32.xlu0 %v970, 40
      %v1012 = vpop.permute.xlu0 %1011
      %1013 = vrot.lane.b32.xlu0 %v971, 40
      %v1014 = vpop.permute.xlu0 %1013
      %1015 = vrot.lane.b32.xlu0 %v972, 40
      %v1016 = vpop.permute.xlu0 %1015
      %1017 = vrot.lane.b32.xlu0 %v973, 40
      %v1018 = vpop.permute.xlu0 %1017
      %1019 = vrot.lane.b32.xlu0 %v974, 40
      %v1020 = vpop.permute.xlu0 %1019
      %1021 = vrot.lane.b32.xlu0 %v975, 40
      %v1022 = vpop.permute.xlu0 %1021
      %1023 = vrot.lane.b32.xlu0 %v976, 40
      %v1024 = vpop.permute.xlu0 %1023
      %vm1041 = vcmask 392512
      %1042 = vst.msk [vmem:[#allocation3] sm:$0xff] %vm1041, %v994
      %1043 = vst.msk [vmem:[#allocation3 + $0x8] sm:$0xff] %vm1041, %v996
      %1044 = vst.msk [vmem:[#allocation3 + $0x10] sm:$0xff] %vm1041, %v998
      %1045 = vst.msk [vmem:[#allocation3 + $0x18] sm:$0xff] %vm1041, %v1000
      %1046 = vst.msk [vmem:[#allocation3 + $0x20] sm:$0xff] %vm1041, %v1002
      %1047 = vst.msk [vmem:[#allocation3 + $0x28] sm:$0xff] %vm1041, %v1004
      %1048 = vst.msk [vmem:[#allocation3 + $0x30] sm:$0xff] %vm1041, %v1006
      %1049 = vst.msk [vmem:[#allocation3 + $0x38] sm:$0xff] %vm1041, %v1008
      %1050 = vst.msk [vmem:[#allocation3 + $0x40] sm:$0xff] %vm1041, %v1010
      %1051 = vst.msk [vmem:[#allocation3 + $0x48] sm:$0xff] %vm1041, %v1012
      %1052 = vst.msk [vmem:[#allocation3 + $0x50] sm:$0xff] %vm1041, %v1014
      %1053 = vst.msk [vmem:[#allocation3 + $0x58] sm:$0xff] %vm1041, %v1016
      %1054 = vst.msk [vmem:[#allocation3 + $0x60] sm:$0xff] %vm1041, %v1018
      %1055 = vst.msk [vmem:[#allocation3 + $0x68] sm:$0xff] %vm1041, %v1020
      %1056 = vst.msk [vmem:[#allocation3 + $0x70] sm:$0xff] %vm1041, %v1022
      %1057 = vst.msk [vmem:[#allocation3 + $0x78] sm:$0xff] %vm1041, %v1024
      %s1058 = sadd.s32 %s534, 2
      %s1059 = smul.u32 %s1058, 24
      %s1060 = scalar_lea.vmem [#allocation2], %s1059
      %v1061 = vld [vmem:[%s1060] sm:$0xff]
      %v1062 = vld [vmem:[%s1060 + $0x8] sm:$0xff]
      %v1063 = vld [vmem:[%s1060 + $0x18] sm:$0xff]
      %v1064 = vld [vmem:[%s1060 + $0x20] sm:$0xff]
      %v1065 = vld [vmem:[%s1060 + $0x30] sm:$0xff]
      %v1066 = vld [vmem:[%s1060 + $0x38] sm:$0xff]
      %v1067 = vld [vmem:[%s1060 + $0x48] sm:$0xff]
      %v1068 = vld [vmem:[%s1060 + $0x50] sm:$0xff]
      %v1069 = vld [vmem:[%s1060 + $0x60] sm:$0xff]
      %v1070 = vld [vmem:[%s1060 + $0x68] sm:$0xff]
      %v1071 = vld [vmem:[%s1060 + $0x78] sm:$0xff]
      %v1072 = vld [vmem:[%s1060 + $0x80] sm:$0xff]
      %v1073 = vld [vmem:[%s1060 + $0x90] sm:$0xff]
      %v1074 = vld [vmem:[%s1060 + $0x98] sm:$0xff]
      %v1075 = vld [vmem:[%s1060 + $0xa8] sm:$0xff]
      %v1076 = vld [vmem:[%s1060 + $0xb0] sm:$0xff]
      %1093 = vrot.lane.b32.xlu0 %v1061, 48
      %v1094 = vpop.permute.xlu0 %1093
      %1095 = vrot.lane.b32.xlu0 %v1062, 48
      %v1096 = vpop.permute.xlu0 %1095
      %1097 = vrot.lane.b32.xlu0 %v1063, 48
      %v1098 = vpop.permute.xlu0 %1097
      %1099 = vrot.lane.b32.xlu0 %v1064, 48
      %v1100 = vpop.permute.xlu0 %1099
      %1101 = vrot.lane.b32.xlu0 %v1065, 48
      %v1102 = vpop.permute.xlu0 %1101
      %1103 = vrot.lane.b32.xlu0 %v1066, 48
      %v1104 = vpop.permute.xlu0 %1103
      %1105 = vrot.lane.b32.xlu0 %v1067, 48
      %v1106 = vpop.permute.xlu0 %1105
      %1107 = vrot.lane.b32.xlu0 %v1068, 48
      %v1108 = vpop.permute.xlu0 %1107
      %1109 = vrot.lane.b32.xlu0 %v1069, 48
      %v1110 = vpop.permute.xlu0 %1109
      %1111 = vrot.lane.b32.xlu0 %v1070, 48
      %v1112 = vpop.permute.xlu0 %1111
      %1113 = vrot.lane.b32.xlu0 %v1071, 48
      %v1114 = vpop.permute.xlu0 %1113
      %1115 = vrot.lane.b32.xlu0 %v1072, 48
      %v1116 = vpop.permute.xlu0 %1115
      %1117 = vrot.lane.b32.xlu0 %v1073, 48
      %v1118 = vpop.permute.xlu0 %1117
      %1119 = vrot.lane.b32.xlu0 %v1074, 48
      %v1120 = vpop.permute.xlu0 %1119
      %1121 = vrot.lane.b32.xlu0 %v1075, 48
      %v1122 = vpop.permute.xlu0 %1121
      %1123 = vrot.lane.b32.xlu0 %v1076, 48
      %v1124 = vpop.permute.xlu0 %1123
      %vm1141 = vcmask 458112
      %1142 = vst.msk [vmem:[#allocation3] sm:$0xff] %vm1141, %v1094
      %1143 = vst.msk [vmem:[#allocation3 + $0x8] sm:$0xff] %vm1141, %v1096
      %1144 = vst.msk [vmem:[#allocation3 + $0x10] sm:$0xff] %vm1141, %v1098
      %1145 = vst.msk [vmem:[#allocation3 + $0x18] sm:$0xff] %vm1141, %v1100
      %1146 = vst.msk [vmem:[#allocation3 + $0x20] sm:$0xff] %vm1141, %v1102
      %1147 = vst.msk [vmem:[#allocation3 + $0x28] sm:$0xff] %vm1141, %v1104
      %1148 = vst.msk [vmem:[#allocation3 + $0x30] sm:$0xff] %vm1141, %v1106
      %1149 = vst.msk [vmem:[#allocation3 + $0x38] sm:$0xff] %vm1141, %v1108
      %1150 = vst.msk [vmem:[#allocation3 + $0x40] sm:$0xff] %vm1141, %v1110
      %1151 = vst.msk [vmem:[#allocation3 + $0x48] sm:$0xff] %vm1141, %v1112
      %1152 = vst.msk [vmem:[#allocation3 + $0x50] sm:$0xff] %vm1141, %v1114
      %1153 = vst.msk [vmem:[#allocation3 + $0x58] sm:$0xff] %vm1141, %v1116
      %1154 = vst.msk [vmem:[#allocation3 + $0x60] sm:$0xff] %vm1141, %v1118
      %1155 = vst.msk [vmem:[#allocation3 + $0x68] sm:$0xff] %vm1141, %v1120
      %1156 = vst.msk [vmem:[#allocation3 + $0x70] sm:$0xff] %vm1141, %v1122
      %1157 = vst.msk [vmem:[#allocation3 + $0x78] sm:$0xff] %vm1141, %v1124
      %v1158 = vld [vmem:[%s1060 + $0x1] sm:$0xff]
      %v1159 = vld [vmem:[%s1060 + $0x9] sm:$0xff]
      %v1160 = vld [vmem:[%s1060 + $0x19] sm:$0xff]
      %v1161 = vld [vmem:[%s1060 + $0x21] sm:$0xff]
      %v1162 = vld [vmem:[%s1060 + $0x31] sm:$0xff]
      %v1163 = vld [vmem:[%s1060 + $0x39] sm:$0xff]
      %v1164 = vld [vmem:[%s1060 + $0x49] sm:$0xff]
      %v1165 = vld [vmem:[%s1060 + $0x51] sm:$0xff]
      %v1166 = vld [vmem:[%s1060 + $0x61] sm:$0xff]
      %v1167 = vld [vmem:[%s1060 + $0x69] sm:$0xff]
      %v1168 = vld [vmem:[%s1060 + $0x79] sm:$0xff]
      %v1169 = vld [vmem:[%s1060 + $0x81] sm:$0xff]
      %v1170 = vld [vmem:[%s1060 + $0x91] sm:$0xff]
      %v1171 = vld [vmem:[%s1060 + $0x99] sm:$0xff]
      %v1172 = vld [vmem:[%s1060 + $0xa9] sm:$0xff]
      %v1173 = vld [vmem:[%s1060 + $0xb1] sm:$0xff]
      %1190 = vrot.lane.b32.xlu0 %v1158, 56
      %v1191 = vpop.permute.xlu0 %1190
      %1192 = vrot.lane.b32.xlu0 %v1159, 56
      %v1193 = vpop.permute.xlu0 %1192
      %1194 = vrot.lane.b32.xlu0 %v1160, 56
      %v1195 = vpop.permute.xlu0 %1194
      %1196 = vrot.lane.b32.xlu0 %v1161, 56
      %v1197 = vpop.permute.xlu0 %1196
      %1198 = vrot.lane.b32.xlu0 %v1162, 56
      %v1199 = vpop.permute.xlu0 %1198
      %1200 = vrot.lane.b32.xlu0 %v1163, 56
      %v1201 = vpop.permute.xlu0 %1200
      %1202 = vrot.lane.b32.xlu0 %v1164, 56
      %v1203 = vpop.permute.xlu0 %1202
      %1204 = vrot.lane.b32.xlu0 %v1165, 56
      %v1205 = vpop.permute.xlu0 %1204
      %1206 = vrot.lane.b32.xlu0 %v1166, 56
      %v1207 = vpop.permute.xlu0 %1206
      %1208 = vrot.lane.b32.xlu0 %v1167, 56
      %v1209 = vpop.permute.xlu0 %1208
      %1210 = vrot.lane.b32.xlu0 %v1168, 56
      %v1211 = vpop.permute.xlu0 %1210
      %1212 = vrot.lane.b32.xlu0 %v1169, 56
      %v1213 = vpop.permute.xlu0 %1212
      %1214 = vrot.lane.b32.xlu0 %v1170, 56
      %v1215 = vpop.permute.xlu0 %1214
      %1216 = vrot.lane.b32.xlu0 %v1171, 56
      %v1217 = vpop.permute.xlu0 %1216
      %1218 = vrot.lane.b32.xlu0 %v1172, 56
      %v1219 = vpop.permute.xlu0 %1218
      %1220 = vrot.lane.b32.xlu0 %v1173, 56
      %v1221 = vpop.permute.xlu0 %1220
      %vm1238 = vcmask 523712
      %1239 = vst.msk [vmem:[#allocation3] sm:$0xff] %vm1238, %v1191
      %1240 = vst.msk [vmem:[#allocation3 + $0x8] sm:$0xff] %vm1238, %v1193
      %1241 = vst.msk [vmem:[#allocation3 + $0x10] sm:$0xff] %vm1238, %v1195
      %1242 = vst.msk [vmem:[#allocation3 + $0x18] sm:$0xff] %vm1238, %v1197
      %1243 = vst.msk [vmem:[#allocation3 + $0x20] sm:$0xff] %vm1238, %v1199
      %1244 = vst.msk [vmem:[#allocation3 + $0x28] sm:$0xff] %vm1238, %v1201
      %1245 = vst.msk [vmem:[#allocation3 + $0x30] sm:$0xff] %vm1238, %v1203
      %1246 = vst.msk [vmem:[#allocation3 + $0x38] sm:$0xff] %vm1238, %v1205
      %1247 = vst.msk [vmem:[#allocation3 + $0x40] sm:$0xff] %vm1238, %v1207
      %1248 = vst.msk [vmem:[#allocation3 + $0x48] sm:$0xff] %vm1238, %v1209
      %1249 = vst.msk [vmem:[#allocation3 + $0x50] sm:$0xff] %vm1238, %v1211
      %1250 = vst.msk [vmem:[#allocation3 + $0x58] sm:$0xff] %vm1238, %v1213
      %1251 = vst.msk [vmem:[#allocation3 + $0x60] sm:$0xff] %vm1238, %v1215
      %1252 = vst.msk [vmem:[#allocation3 + $0x68] sm:$0xff] %vm1238, %v1217
      %1253 = vst.msk [vmem:[#allocation3 + $0x70] sm:$0xff] %vm1238, %v1219
      %1254 = vst.msk [vmem:[#allocation3 + $0x78] sm:$0xff] %vm1238, %v1221
      %v1255 = vld [vmem:[%s1060 + $0x2] sm:$0xff]
      %v1256 = vld [vmem:[%s1060 + $0xa] sm:$0xff]
      %v1257 = vld [vmem:[%s1060 + $0x1a] sm:$0xff]
      %v1258 = vld [vmem:[%s1060 + $0x22] sm:$0xff]
      %v1259 = vld [vmem:[%s1060 + $0x32] sm:$0xff]
      %v1260 = vld [vmem:[%s1060 + $0x3a] sm:$0xff]
      %v1261 = vld [vmem:[%s1060 + $0x4a] sm:$0xff]
      %v1262 = vld [vmem:[%s1060 + $0x52] sm:$0xff]
      %v1263 = vld [vmem:[%s1060 + $0x62] sm:$0xff]
      %v1264 = vld [vmem:[%s1060 + $0x6a] sm:$0xff]
      %v1265 = vld [vmem:[%s1060 + $0x7a] sm:$0xff]
      %v1266 = vld [vmem:[%s1060 + $0x82] sm:$0xff]
      %v1267 = vld [vmem:[%s1060 + $0x92] sm:$0xff]
      %v1268 = vld [vmem:[%s1060 + $0x9a] sm:$0xff]
      %v1269 = vld [vmem:[%s1060 + $0xaa] sm:$0xff]
      %v1270 = vld [vmem:[%s1060 + $0xb2] sm:$0xff]
      %1287 = vrot.lane.b32.xlu0 %v1255, 64
      %v1288 = vpop.permute.xlu0 %1287
      %1289 = vrot.lane.b32.xlu0 %v1256, 64
      %v1290 = vpop.permute.xlu0 %1289
      %1291 = vrot.lane.b32.xlu0 %v1257, 64
      %v1292 = vpop.permute.xlu0 %1291
      %1293 = vrot.lane.b32.xlu0 %v1258, 64
      %v1294 = vpop.permute.xlu0 %1293
      %1295 = vrot.lane.b32.xlu0 %v1259, 64
      %v1296 = vpop.permute.xlu0 %1295
      %1297 = vrot.lane.b32.xlu0 %v1260, 64
      %v1298 = vpop.permute.xlu0 %1297
      %1299 = vrot.lane.b32.xlu0 %v1261, 64
      %v1300 = vpop.permute.xlu0 %1299
      %1301 = vrot.lane.b32.xlu0 %v1262, 64
      %v1302 = vpop.permute.xlu0 %1301
      %1303 = vrot.lane.b32.xlu0 %v1263, 64
      %v1304 = vpop.permute.xlu0 %1303
      %1305 = vrot.lane.b32.xlu0 %v1264, 64
      %v1306 = vpop.permute.xlu0 %1305
      %1307 = vrot.lane.b32.xlu0 %v1265, 64
      %v1308 = vpop.permute.xlu0 %1307
      %1309 = vrot.lane.b32.xlu0 %v1266, 64
      %v1310 = vpop.permute.xlu0 %1309
      %1311 = vrot.lane.b32.xlu0 %v1267, 64
      %v1312 = vpop.permute.xlu0 %1311
      %1313 = vrot.lane.b32.xlu0 %v1268, 64
      %v1314 = vpop.permute.xlu0 %1313
      %1315 = vrot.lane.b32.xlu0 %v1269, 64
      %v1316 = vpop.permute.xlu0 %1315
      %1317 = vrot.lane.b32.xlu0 %v1270, 64
      %v1318 = vpop.permute.xlu0 %1317
      %vm1335 = vcmask 589312
      %1336 = vst.msk [vmem:[#allocation3] sm:$0xff] %vm1335, %v1288
      %1337 = vst.msk [vmem:[#allocation3 + $0x8] sm:$0xff] %vm1335, %v1290
      %1338 = vst.msk [vmem:[#allocation3 + $0x10] sm:$0xff] %vm1335, %v1292
      %1339 = vst.msk [vmem:[#allocation3 + $0x18] sm:$0xff] %vm1335, %v1294
      %1340 = vst.msk [vmem:[#allocation3 + $0x20] sm:$0xff] %vm1335, %v1296
      %1341 = vst.msk [vmem:[#allocation3 + $0x28] sm:$0xff] %vm1335, %v1298
      %1342 = vst.msk [vmem:[#allocation3 + $0x30] sm:$0xff] %vm1335, %v1300
      %1343 = vst.msk [vmem:[#allocation3 + $0x38] sm:$0xff] %vm1335, %v1302
      %1344 = vst.msk [vmem:[#allocation3 + $0x40] sm:$0xff] %vm1335, %v1304
      %1345 = vst.msk [vmem:[#allocation3 + $0x48] sm:$0xff] %vm1335, %v1306
      %1346 = vst.msk [vmem:[#allocation3 + $0x50] sm:$0xff] %vm1335, %v1308
      %1347 = vst.msk [vmem:[#allocation3 + $0x58] sm:$0xff] %vm1335, %v1310
      %1348 = vst.msk [vmem:[#allocation3 + $0x60] sm:$0xff] %vm1335, %v1312
      %1349 = vst.msk [vmem:[#allocation3 + $0x68] sm:$0xff] %vm1335, %v1314
      %1350 = vst.msk [vmem:[#allocation3 + $0x70] sm:$0xff] %vm1335, %v1316
      %1351 = vst.msk [vmem:[#allocation3 + $0x78] sm:$0xff] %vm1335, %v1318
      %v1352 = vld [vmem:[#allocation3] sm:$0xff]
      %v1353 = vld [vmem:[#allocation3 + $0x8] sm:$0xff]
      %v1354 = vld [vmem:[#allocation3 + $0x10] sm:$0xff]
      %v1355 = vld [vmem:[#allocation3 + $0x18] sm:$0xff]
      %v1356 = vld [vmem:[#allocation3 + $0x20] sm:$0xff]
      %v1357 = vld [vmem:[#allocation3 + $0x28] sm:$0xff]
      %v1358 = vld [vmem:[#allocation3 + $0x30] sm:$0xff]
      %v1359 = vld [vmem:[#allocation3 + $0x38] sm:$0xff]
      %v1360 = vld [vmem:[#allocation3 + $0x40] sm:$0xff]
      %v1361 = vld [vmem:[#allocation3 + $0x48] sm:$0xff]
      %v1362 = vld [vmem:[#allocation3 + $0x50] sm:$0xff]
      %v1363 = vld [vmem:[#allocation3 + $0x58] sm:$0xff]
      %v1364 = vld [vmem:[#allocation3 + $0x60] sm:$0xff]
      %v1365 = vld [vmem:[#allocation3 + $0x68] sm:$0xff]
      %v1366 = vld [vmem:[#allocation3 + $0x70] sm:$0xff]
      %v1367 = vld [vmem:[#allocation3 + $0x78] sm:$0xff]
      %v1368 = vpack.c.bf16 %v1353, %v1352
      %v1369 = vpack.c.bf16 %v1355, %v1354
      %v1370 = vpack.c.bf16 %v1357, %v1356
      %v1371 = vpack.c.bf16 %v1359, %v1358
      %v1372 = vpack.c.bf16 %v1361, %v1360
      %v1373 = vpack.c.bf16 %v1363, %v1362
      %v1374 = vpack.c.bf16 %v1365, %v1364
      %v1375 = vpack.c.bf16 %v1367, %v1366
      %v1376 = vld [vmem:[%s1] sm:$0xf]
      %v1377 = vld [vmem:[%s1 + $0x4] sm:$0xf]
      %v1378 = vld [vmem:[%s1 + $0x8] sm:$0xf]
      %v1379 = vld [vmem:[%s1 + $0xc] sm:$0xf]
      %v1380 = vld [vmem:[%s1 + $0x10] sm:$0xf]
      %v1381 = vld [vmem:[%s1 + $0x14] sm:$0xf]
      %v1382 = vld [vmem:[%s1 + $0x18] sm:$0xf]
      %v1383 = vld [vmem:[%s1 + $0x1c] sm:$0xf]
      %v1384 = vld [vmem:[%s1 + $0x20] sm:$0xf]
      %v1385 = vld [vmem:[%s2] sm:$0x1]
      %v1387 = vlaneseq
      %v1388 = vshrl.u32 %v1387, 7
      %v1389 = vsub.s32 0, %v1388
      %v1390 = vrot.slane %v1385, %v1389
      %v1401 = vunpack.c.l.b16 %v1376
      %v1402 = vunpack.c.l.b16 %v1377
      %v1403 = vunpack.c.l.b16 %v1378
      %v1404 = vunpack.c.l.b16 %v1379
      %v1405 = vunpack.c.l.b16 %v1380
      %v1406 = vunpack.c.l.b16 %v1381
      %v1407 = vunpack.c.l.b16 %v1382
      %v1408 = vunpack.c.l.b16 %v1383
      %v1409 = vunpack.c.l.b16 %v1384
      %v1410 = vpack.c.b16 %v1402, %v1401
      %v1411 = vpack.c.b16 %v1404, %v1403
      %v1412 = vpack.c.b16 %v1406, %v1405
      %v1413 = vpack.c.b16 %v1408, %v1407
      %v1414 = vpack.c.b16 %v1409, %v1409
      %vm1419 = vcmask 588800
      %v1421 = vsel %vm1419, %v1368, 0
      %v1424 = vsel %vm1419, %v1369, 0
      %v1427 = vsel %vm1419, %v1370, 0
      %v1430 = vsel %vm1419, %v1371, 0
      %v1433 = vsel %vm1419, %v1372, 0
      %v1436 = vsel %vm1419, %v1373, 0
      %v1439 = vsel %vm1419, %v1374, 0
      %v1442 = vsel %vm1419, %v1375, 0
      %vm1444 = vcmask 1043456
      %v1446 = vsel %vm1444, %v1414, 0
      %1448 = vmatprep.subr.bf16.mxu0 0
      %1449 = vmatpush1.bf16.msra.mxu0 0
      %1450 = vmatprep.subr.bf16.mxu0 0
      %1451 = vmatpush1.bf16.msra.mxu0 0
      %1452 = vmatprep.subr.bf16.mxu0 0
      %1453 = vmatpush1.bf16.msra.mxu0 0
      %1454 = vmatprep.subr.bf16.mxu0 0
      %1455 = vmatpush1.bf16.msra.mxu0 %v1446
      %1456 = vmatprep.subr.bf16.mxu0 0
      %1457 = vmatpush1.bf16.msra.mxu0 %v1413
      %1458 = vmatprep.subr.bf16.mxu0 0
      %1459 = vmatpush1.bf16.msra.mxu0 %v1412
      %1460 = vmatprep.subr.bf16.mxu0 0
      %1461 = vmatpush1.bf16.msra.mxu0 %v1411
      %1462 = vmatprep.subr.bf16.mxu0 0
      %1463 = vmatpush1.bf16.msra.mxu0 %v1410
      %1464 = vmatprep.subr.bf16.mxu0 0
      %1465 = vmatpush2.bf16.msra.mxu0 0
      %1466 = vmatprep.subr.bf16.mxu0 0
      %1467 = vmatpush2.bf16.msra.mxu0 0
      %1468 = vmatprep.subr.bf16.mxu0 0
      %1469 = vmatpush2.bf16.msra.mxu0 0
      %1470 = vmatprep.subr.bf16.mxu0 0
      %1471 = vmatpush2.bf16.msra.mxu0 0
      %1472 = vmatprep.subr.bf16.mxu0 0
      %1473 = vmatpush2.bf16.msra.mxu0 0
      %1474 = vmatprep.subr.bf16.mxu0 0
      %1475 = vmatpush2.bf16.msra.mxu0 0
      %1476 = vmatprep.subr.bf16.mxu0 0
      %1477 = vmatpush2.bf16.msra.mxu0 0
      %1478 = vmatprep.subr.bf16.mxu0 0
      %1479 = vmatpush2.bf16.msra.mxu0 0
      %1480 = vmatprep.mubr.bf16.mxu0 0
      %1481 = vmatmul.mubr.bf16.gmra.mxu0 %v1421
      %v1482 = vpop.f32.mrf.mxu0
      %v1483 = vadd.f32 %v1390, %v1482
      %v1484 = vpop.f32.mrf.mxu0
      %v1485 = vpop.f32.mrf.mxu0
      %v1486 = vadd.f32 %v1390, %v1485
      %v1487 = vpop.f32.mrf.mxu0
      %1488 = vmatprep.mubr.bf16.mxu0 0
      %1489 = vmatmul.mubr.bf16.gmra.mxu0 %v1424
      %v1490 = vpop.f32.mrf.mxu0
      %v1491 = vadd.f32 %v1390, %v1490
      %v1492 = vpop.f32.mrf.mxu0
      %v1493 = vpop.f32.mrf.mxu0
      %v1494 = vadd.f32 %v1390, %v1493
      %v1495 = vpop.f32.mrf.mxu0
      %1496 = vmatprep.mubr.bf16.mxu0 0
      %1497 = vmatmul.mubr.bf16.gmra.mxu0 %v1427
      %v1498 = vpop.f32.mrf.mxu0
      %v1499 = vadd.f32 %v1390, %v1498
      %v1500 = vpop.f32.mrf.mxu0
      %v1501 = vpop.f32.mrf.mxu0
      %v1502 = vadd.f32 %v1390, %v1501
      %v1503 = vpop.f32.mrf.mxu0
      %1504 = vmatprep.mubr.bf16.mxu0 0
      %1505 = vmatmul.mubr.bf16.gmra.mxu0 %v1430
      %v1506 = vpop.f32.mrf.mxu0
      %v1507 = vadd.f32 %v1390, %v1506
      %v1508 = vpop.f32.mrf.mxu0
      %v1509 = vpop.f32.mrf.mxu0
      %v1510 = vadd.f32 %v1390, %v1509
      %v1511 = vpop.f32.mrf.mxu0
      %1512 = vmatprep.mubr.bf16.mxu0 0
      %1513 = vmatmul.mubr.bf16.gmra.mxu0 %v1433
      %v1514 = vpop.f32.mrf.mxu0
      %v1515 = vadd.f32 %v1390, %v1514
      %v1516 = vpop.f32.mrf.mxu0
      %v1517 = vpop.f32.mrf.mxu0
      %v1518 = vadd.f32 %v1390, %v1517
      %v1519 = vpop.f32.mrf.mxu0
      %1520 = vmatprep.mubr.bf16.mxu0 0
      %1521 = vmatmul.mubr.bf16.gmra.mxu0 %v1436
      %v1522 = vpop.f32.mrf.mxu0
      %v1523 = vadd.f32 %v1390, %v1522
      %v1524 = vpop.f32.mrf.mxu0
      %v1525 = vpop.f32.mrf.mxu0
      %v1526 = vadd.f32 %v1390, %v1525
      %v1527 = vpop.f32.mrf.mxu0
      %1528 = vmatprep.mubr.bf16.mxu0 0
      %1529 = vmatmul.mubr.bf16.gmra.mxu0 %v1439
      %v1530 = vpop.f32.mrf.mxu0
      %v1531 = vadd.f32 %v1390, %v1530
      %v1532 = vpop.f32.mrf.mxu0
      %v1533 = vpop.f32.mrf.mxu0
      %v1534 = vadd.f32 %v1390, %v1533
      %v1535 = vpop.f32.mrf.mxu0
      %1536 = vmatprep.mubr.bf16.mxu0 0
      %1537 = vmatmul.mubr.bf16.gmra.mxu0 %v1442
      %v1538 = vpop.f32.mrf.mxu0
      %v1539 = vadd.f32 %v1390, %v1538
      %v1540 = vpop.f32.mrf.mxu0
      %v1541 = vpop.f32.mrf.mxu0
      %v1542 = vadd.f32 %v1390, %v1541
      %v1543 = vpop.f32.mrf.mxu0
      %1544 = vdwg.mxu0
      %1545 = vst.msk [vmem:[%s288] sm:$0xff] %vm553, %v1483
      %1546 = vst.msk [vmem:[%s288 + $0x8] sm:$0xff] %vm553, %v1486
      %1547 = vst.msk [vmem:[%s288 + $0x10] sm:$0xff] %vm553, %v1491
      %1548 = vst.msk [vmem:[%s288 + $0x18] sm:$0xff] %vm553, %v1494
      %1549 = vst.msk [vmem:[%s288 + $0x20] sm:$0xff] %vm553, %v1499
      %1550 = vst.msk [vmem:[%s288 + $0x28] sm:$0xff] %vm553, %v1502
      %1551 = vst.msk [vmem:[%s288 + $0x30] sm:$0xff] %vm553, %v1507
      %1552 = vst.msk [vmem:[%s288 + $0x38] sm:$0xff] %vm553, %v1510
      %1553 = vst.msk [vmem:[%s288 + $0x40] sm:$0xff] %vm553, %v1515
      %1554 = vst.msk [vmem:[%s288 + $0x48] sm:$0xff] %vm553, %v1518
      %1555 = vst.msk [vmem:[%s288 + $0x50] sm:$0xff] %vm553, %v1523
      %1556 = vst.msk [vmem:[%s288 + $0x58] sm:$0xff] %vm553, %v1526
      %1557 = vst.msk [vmem:[%s288 + $0x60] sm:$0xff] %vm553, %v1531
      %1558 = vst.msk [vmem:[%s288 + $0x68] sm:$0xff] %vm553, %v1534
      %1559 = vst.msk [vmem:[%s288 + $0x70] sm:$0xff] %vm553, %v1539
      %1560 = vst.msk [vmem:[%s288 + $0x78] sm:$0xff] %vm553, %v1542
      %v1561 = vsel %vm553, %v1483, 0.0
      %v1562 = vsel %vm553, %v1486, 0.0
      %v1563 = vadd.f32 %v1561, %v1562
      %v1564 = vsel %vm553, %v1491, 0.0
      %v1565 = vadd.f32 %v1563, %v1564
      %v1566 = vsel %vm553, %v1494, 0.0
      %v1567 = vadd.f32 %v1565, %v1566
      %v1568 = vsel %vm553, %v1499, 0.0
      %v1569 = vadd.f32 %v1567, %v1568
      %v1570 = vsel %vm553, %v1502, 0.0
      %v1571 = vadd.f32 %v1569, %v1570
      %v1572 = vsel %vm553, %v1507, 0.0
      %v1573 = vadd.f32 %v1571, %v1572
      %v1574 = vsel %vm553, %v1510, 0.0
      %v1575 = vadd.f32 %v1573, %v1574
      %v1576 = vsel %vm553, %v1515, 0.0
      %v1577 = vadd.f32 %v1575, %v1576
      %v1578 = vsel %vm553, %v1518, 0.0
      %v1579 = vadd.f32 %v1577, %v1578
      %v1580 = vsel %vm553, %v1523, 0.0
      %v1581 = vadd.f32 %v1579, %v1580
      %v1582 = vsel %vm553, %v1526, 0.0
      %v1583 = vadd.f32 %v1581, %v1582
      %v1584 = vsel %vm553, %v1531, 0.0
      %v1585 = vadd.f32 %v1583, %v1584
      %v1586 = vsel %vm553, %v1534, 0.0
      %v1587 = vadd.f32 %v1585, %v1586
      %v1588 = vsel %vm553, %v1539, 0.0
      %v1589 = vadd.f32 %v1587, %v1588
      %v1590 = vsel %vm553, %v1542, 0.0
      %v1591 = vadd.f32 %v1589, %v1590
      %v1592 = vrot.slane %v1591, 4
      %v1593 = vadd.f32 %v1591, %v1592
      %v1594 = vrot.slane %v1593, 2
      %v1595 = vadd.f32 %v1593, %v1594
      %v1596 = vrot.slane %v1595, 1
      %v1597 = vadd.f32 %v1595, %v1596
      %vm1598 = vcmask 57344
      %1599 = vst.msk [vmem:[%s297] sm:$0x1] %vm1598, %v1597
      %v1600 = vmul.f32 %v1483, %v1483
      %v1601 = vmul.f32 %v1486, %v1486
      %v1602 = vmul.f32 %v1491, %v1491
      %v1603 = vmul.f32 %v1494, %v1494
      %v1604 = vmul.f32 %v1499, %v1499
      %v1605 = vmul.f32 %v1502, %v1502
      %v1606 = vmul.f32 %v1507, %v1507
      %v1607 = vmul.f32 %v1510, %v1510
      %v1608 = vmul.f32 %v1515, %v1515
      %v1609 = vmul.f32 %v1518, %v1518
      %v1610 = vmul.f32 %v1523, %v1523
      %v1611 = vmul.f32 %v1526, %v1526
      %v1612 = vmul.f32 %v1531, %v1531
      %v1613 = vmul.f32 %v1534, %v1534
      %v1614 = vmul.f32 %v1539, %v1539
      %v1615 = vmul.f32 %v1542, %v1542
      %v1616 = vsel %vm553, %v1600, 0.0
      %v1617 = vsel %vm553, %v1601, 0.0
      %v1618 = vadd.f32 %v1616, %v1617
      %v1619 = vsel %vm553, %v1602, 0.0
      %v1620 = vadd.f32 %v1618, %v1619
      %v1621 = vsel %vm553, %v1603, 0.0
      %v1622 = vadd.f32 %v1620, %v1621
      %v1623 = vsel %vm553, %v1604, 0.0
      %v1624 = vadd.f32 %v1622, %v1623
      %v1625 = vsel %vm553, %v1605, 0.0
      %v1626 = vadd.f32 %v1624, %v1625
      %v1627 = vsel %vm553, %v1606, 0.0
      %v1628 = vadd.f32 %v1626, %v1627
      %v1629 = vsel %vm553, %v1607, 0.0
      %v1630 = vadd.f32 %v1628, %v1629
      %v1631 = vsel %vm553, %v1608, 0.0
      %v1632 = vadd.f32 %v1630, %v1631
      %v1633 = vsel %vm553, %v1609, 0.0
      %v1634 = vadd.f32 %v1632, %v1633
      %v1635 = vsel %vm553, %v1610, 0.0
      %v1636 = vadd.f32 %v1634, %v1635
      %v1637 = vsel %vm553, %v1611, 0.0
      %v1638 = vadd.f32 %v1636, %v1637
      %v1639 = vsel %vm553, %v1612, 0.0
      %v1640 = vadd.f32 %v1638, %v1639
      %v1641 = vsel %vm553, %v1613, 0.0
      %v1642 = vadd.f32 %v1640, %v1641
      %v1643 = vsel %vm553, %v1614, 0.0
      %v1644 = vadd.f32 %v1642, %v1643
      %v1645 = vsel %vm553, %v1615, 0.0
      %v1646 = vadd.f32 %v1644, %v1645
      %v1647 = vrot.slane %v1646, 4
      %v1648 = vadd.f32 %v1646, %v1647
      %v1649 = vrot.slane %v1648, 2
      %v1650 = vadd.f32 %v1648, %v1649
      %v1651 = vrot.slane %v1650, 1
      %v1652 = vadd.f32 %v1650, %v1651
      %1653 = vst.msk [vmem:[%s297 + $0x1] sm:$0x1] %vm1598, %v1652
      %s1654 = smul.u32 8, %s23
      %p1655 = scmp.lt.s32.totalorder %s22, 1
      %s1656 = scalar_select %p1655, %s22, 1
      %p1657 = scmp.lt.s32.totalorder %s1654, 15
      %s1658 = scalar_select %p1657, %s1654, 15
      %s1659 = smul.addr %s1658, 2
      %s1660 = smul.addr %s1656, 32
      %s1661 = sadd.s32 %s1659, %s1660
      %s1662 = smul.addr %s1661, 8
      %s1663 = scalar_lea.vmem %s5, %s1662
      %p1664 = scmp.lt.s32.totalorder %s22, 1
      %s1665 = scalar_select %p1664, %s22, 1
      %p1666 = scmp.lt.s32.totalorder %s23, 1
      %s1667 = scalar_select %p1666, %s23, 1
      %s1668 = smul.addr %s1665, 2
      %s1669 = sadd.s32 %s1667, %s1668
      %s1670 = smul.addr %s1669, 2
      %s1671 = scalar_lea.vmem %s6, %s1670
      // Predicated region
      $region45: #{encoder_block_forward.4} parent=39 // pred_check
        %p1672 = pneg %p160
      $region46: #{encoder_block_forward.4} parent=39 // pred_check_branch
        %1674 = sbr.rel (%p1672) target = $region48
      $region47: #{encoder_block_forward.4} parent=39 // pred_region
        %s1675 = smul.u32 8, %s23
      $region48: #{encoder_block_forward.4} parent=39 // pred_fallthru
        _
      // Predicated region
      $region49: #{encoder_block_forward.4} parent=39 // pred_check
        %p1676 = pneg %p188
      $region50: #{encoder_block_forward.4} parent=39 // pred_check_branch
        %1678 = sbr.rel (%p1676) target = $region52
      $region51: #{encoder_block_forward.4} parent=39 // pred_region
        _
      $region52: #{encoder_block_forward.4} parent=39 // pred_fallthru
        _
    $region40: #{encoder_block_forward.4} parent=5 // pred_fallthru
      _
    %p1679 = scmp.le.s32.totalorder 2, %s13
    // Predicated region
    $region53: #{encoder_block_forward.4} parent=5 // pred_check
      %p1680 = pneg %p1679
    $region54: #{encoder_block_forward.4} parent=5 // pred_check_branch
      %1682 = sbr.rel (%p1680) target = $region56
    $region55: #{encoder_block_forward.4} parent=5 // pred_region
      %s1683 = ssub.s32 %s13, 2
      // Predicated region
      $region57: #{encoder_block_forward.4} parent=55 // pred_check
        %p1684 = pneg %p166
      $region58: #{encoder_block_forward.4} parent=55 // pred_check_branch
        %1686 = sbr.rel (%p1684) target = $region60
      $region59: #{encoder_block_forward.4} parent=55 // pred_region
        %s1687 = smul.u32 8, %s25
        %p1688 = scmp.lt.s32.totalorder %s24, 1
        %s1689 = scalar_select %p1688, %s24, 1
        %p1690 = scmp.lt.s32.totalorder %s1687, 15
        %s1691 = scalar_select %p1690, %s1687, 15
        %s1692 = smul.addr %s1691, 2
        %s1693 = smul.addr %s1689, 32
        %s1694 = sadd.s32 %s1692, %s1693
        %s1695 = smul.addr %s1694, 8
        %s1696 = scalar_lea.vmem %s5, %s1695
      $region60: #{encoder_block_forward.4} parent=55 // pred_fallthru
        _
      // Predicated region
      $region61: #{encoder_block_forward.4} parent=55 // pred_check
        %p1697 = pneg %p194
      $region62: #{encoder_block_forward.4} parent=55 // pred_check_branch
        %1699 = sbr.rel (%p1697) target = $region64
      $region63: #{encoder_block_forward.4} parent=55 // pred_region
        %p1700 = scmp.lt.s32.totalorder %s24, 1
        %s1701 = scalar_select %p1700, %s24, 1
        %p1702 = scmp.lt.s32.totalorder %s25, 1
        %s1703 = scalar_select %p1702, %s25, 1
        %s1704 = smul.addr %s1701, 2
        %s1705 = sadd.s32 %s1703, %s1704
        %s1706 = smul.addr %s1705, 2
        %s1707 = scalar_lea.vmem %s6, %s1706
      $region64: #{encoder_block_forward.4} parent=55 // pred_fallthru
        _
    $region56: #{encoder_block_forward.4} parent=5 // pred_fallthru
      _
  $region6: #{encoder_block_forward.4} parent=0 // loop_footer
    %s17 = sadd.s32 1, %s13
  $region7: #{encoder_block_forward.4} parent=0 // loop_footer_branch
    %12 = sbr.rel target = $region3
  $region8: #{encoder_block_forward.4} parent=0 // loop_exit
    _

</llo_original>
